<compile_context>
chip_gen: v7x
topology: tpu7x:2x2x1
jax: 0.10.0
libtpu: 0.0.40
codegen_flags: <defaults>
</compile_context>

<pallas_src>
import functools

import jax
import jax.numpy as jnp
from jax.experimental import pallas as pl
from jax.experimental.pallas import tpu as pltpu

# ----------------------------- config (small) --------------------------------
H = 32                 # hidden_size (768 in real BERT; small synthetic here)
NUM_HEADS = 2
HEAD_DIM = H // NUM_HEADS
NUM_LAYERS = 2
INTERMEDIATE = 4 * H
VOCAB = 100
MAX_POS = 16
TYPE_VOCAB = 2
NUM_LABELS = 2
LN_EPS = 1e-12
DROPOUT_RATE = 0.3     # nn.Dropout is identity at inference; kept for parity.

# order of weight arguments passed to the kernel (after x_emb, mask)
_WEIGHT_ORDER = (
    "emb_ln_g", "emb_ln_b",
    "wqkv", "bqkv", "wo", "bo",
    "ln1_g", "ln1_b",
    "wff1", "bff1", "wff2", "bff2",
    "ln2_g", "ln2_b",
    "wp", "bp", "wc", "bc",
)


# --------------------------- fused Pallas kernel ------------------------------
def _bert_fused_kernel(x_ref, mask_ref,
                       emb_g_ref, emb_b_ref,
                       wqkv_ref, bqkv_ref, wo_ref, bo_ref,
                       ln1g_ref, ln1b_ref,
                       wff1_ref, bff1_ref, wff2_ref, bff2_ref,
                       ln2g_ref, ln2b_ref,
                       wp_ref, bp_ref, wc_ref, bc_ref,
                       o_ref, *, num_heads, head_dim, num_layers):
    """One batch row of the BERT-classifier forward; weights stay in VMEM."""
    S = x_ref.shape[1]
    nh = num_heads
    bf16 = jnp.bfloat16

    def layernorm(x, g, b):
        # residual add already folded into x by the caller; f32 math throughout
        mu = jnp.mean(x, axis=-1, keepdims=True)
        var = jnp.mean((x - mu) ** 2, axis=-1, keepdims=True)
        return (x - mu) * jax.lax.rsqrt(var + LN_EPS) * g + b

    def gelu(x):
        # tanh-approximate GELU, f32.
        # TODO(synk): HF BERT 'gelu' is exact erf GELU; switch if erf lowering
        # is needed for bit-level parity.
        return 0.5 * x * (1.0 + jnp.tanh(0.7978845608028654
                                         * (x + 0.044715 * x * x * x)))

    # additive attention mask, (1, 1, S); broadcasts over heads and query axis
    madd = (1.0 - mask_ref[...]) * -1e9

    # embedding layernorm
    x = layernorm(x_ref[0].astype(jnp.float32), emb_g_ref[...], emb_b_ref[...])

    scale = 1.0 / (head_dim ** 0.5)

    for l in range(num_layers):          # static unroll; tiny synthetic depth
        # ---- self-attention: head-major QKV projection (one batched einsum) ----
        # wqkv_ref[l]: (3*nh, H, Dh) bf16; x broadcast over the 3*nh batch axis.
        xb = jnp.broadcast_to(x.astype(bf16), (3 * nh, S, H))
        qkv = (jnp.einsum('psh,phd->psd', xb, wqkv_ref[l],
                          preferred_element_type=jnp.float32)
               + bqkv_ref[l])                                  # (3*nh, S, Dh) f32
        q = qkv[:nh] * scale                                   # scale folded into q
        k = qkv[nh:2 * nh]
        v = qkv[2 * nh:3 * nh]

        # all heads at once: (nh, S, S) scores, softmax, (nh, S, Dh) context
        s = jnp.einsum('hqd,hkd->hqk', q.astype(bf16), k.astype(bf16),
                       preferred_element_type=jnp.float32) + madd
        s = s - jnp.max(s, axis=-1, keepdims=True)
        e = jnp.exp(s)
        p = e * pl.reciprocal(jnp.sum(e, axis=-1, keepdims=True), approx=True)
        ctx = jnp.einsum('hqk,hkd->hqd', p.astype(bf16), v.astype(bf16),
                         preferred_element_type=jnp.float32)   # (nh, S, Dh)

        # merge-heads + output projection: one batched matmul + head-sum
        # wo_ref[l]: (nh, Dh, H) bf16
        attn_h = jnp.einsum('hsd,hdk->hsk', ctx.astype(bf16), wo_ref[l],
                            preferred_element_type=jnp.float32)  # (nh, S, H)
        attn = jnp.sum(attn_h, axis=0) + bo_ref[l]               # (S, H)

        # residual + layernorm (fused)
        x = layernorm(x + attn, ln1g_ref[l], ln1b_ref[l])

        # ---- feed-forward ----
        ff = gelu(jnp.dot(x.astype(bf16), wff1_ref[l],
                          preferred_element_type=jnp.float32) + bff1_ref[l])
        ff = (jnp.dot(ff.astype(bf16), wff2_ref[l],
                      preferred_element_type=jnp.float32) + bff2_ref[l])
        x = layernorm(x + ff, ln2g_ref[l], ln2b_ref[l])

    # ---- pooler: [CLS] hidden state -> Linear -> tanh (== pooler_output) ----
    cls = x[0:1, :]                                            # single row slice
    pooled = jnp.tanh(jnp.dot(cls.astype(bf16), wp_ref[...],
                              preferred_element_type=jnp.float32) + bp_ref[...])

    # nn.Dropout(0.3): identity at inference (model.eval() semantics).
    # ---- classifier: Linear(hidden_size, num_labels) ----
    logits = (jnp.dot(pooled.astype(bf16), wc_ref[...],
                      preferred_element_type=jnp.float32) + bc_ref[...])
    o_ref[...] = logits.reshape(1, 1, NUM_LABELS).astype(o_ref.dtype)


# ------------------------- deterministic parameter init ----------------------
def init_params(key):
    keys = iter(jax.random.split(key, 16))

    def w(shape, dtype=jnp.bfloat16):
        # bf16 matmul weights (f32 accumulation in-kernel); f32 for everything else
        return (0.02 * jax.random.normal(next(keys), shape, jnp.float32)).astype(dtype)

    L, nh, dh = NUM_LAYERS, NUM_HEADS, HEAD_DIM
    return {
        "word_emb": w((VOCAB, H), jnp.float32),
        "pos_emb": w((MAX_POS, H), jnp.float32),
        "type_emb": w((TYPE_VOCAB, H), jnp.float32),
        "emb_ln_g": jnp.ones((1, H), jnp.float32),
        "emb_ln_b": jnp.zeros((1, H), jnp.float32),
        # per-layer weights stacked on a leading layer axis (indexed in-kernel);
        # QKV / out-proj stored head-major: p = [q_h0..q_h{nh-1}, k_*, v_*]
        "wqkv": w((L, 3 * nh, H, dh)),
        "bqkv": jnp.zeros((L, 3 * nh, 1, dh), jnp.float32),
        "wo": w((L, nh, dh, H)),
        "bo": jnp.zeros((L, 1, H), jnp.float32),
        "ln1_g": jnp.ones((L, 1, H), jnp.float32),
        "ln1_b": jnp.zeros((L, 1, H), jnp.float32),
        "wff1": w((L, H, INTERMEDIATE)),
        "bff1": jnp.zeros((L, 1, INTERMEDIATE), jnp.float32),
        "wff2": w((L, INTERMEDIATE, H)),
        "bff2": jnp.zeros((L, 1, H), jnp.float32),
        "ln2_g": jnp.ones((L, 1, H), jnp.float32),
        "ln2_b": jnp.zeros((L, 1, H), jnp.float32),
        "wp": w((H, H)),
        "bp": jnp.zeros((1, H), jnp.float32),
        "wc": w((H, NUM_LABELS)),
        "bc": jnp.zeros((1, NUM_LABELS), jnp.float32),
    }


# --------------------------------- forward -----------------------------------
def bert_sentiment_forward(params, input_ids, attention_mask):
    B, S = input_ids.shape
    assert S <= MAX_POS, "sequence length exceeds position-embedding table"

    # BERT embeddings: word + position + token_type(=0). Gather is plain-JAX glue;
    # the embedding LayerNorm runs inside the fused kernel.
    x_emb = (jnp.take(params["word_emb"], input_ids, axis=0)
             + params["pos_emb"][None, :S, :]
             + params["type_emb"][0][None, None, :])           # (B, S, H) f32

    # (B, 1, S) float mask row; additive form built and broadcast in-kernel.
    mask_rows = attention_mask.astype(jnp.float32).reshape(B, 1, S)

    weights = tuple(params[name] for name in _WEIGHT_ORDER)
    kernel_args = (x_emb, mask_rows) + weights

    VMEM = pltpu.MemorySpace.VMEM

    def _const_index_map(ndim):
        zeros = (0,) * ndim
        def index_map(b):
            return zeros
        return index_map

    def full_vmem_spec(a):
        # whole array resident in VMEM; block index never changes across grid
        return pl.BlockSpec(a.shape, _const_index_map(a.ndim), memory_space=VMEM)

    in_specs = [
        pl.BlockSpec((1, S, H), lambda b: (b, 0, 0), memory_space=VMEM),  # x_emb
        pl.BlockSpec((1, 1, S), lambda b: (b, 0, 0), memory_space=VMEM),  # mask
    ] + [full_vmem_spec(wgt) for wgt in weights]

    out_spec = pl.BlockSpec((1, 1, NUM_LABELS), lambda b: (b, 0, 0),
                            memory_space=VMEM)

    # Advisory cost estimate for XLA scheduling around the fused call.
    M = B * S
    flops_layer = (2 * M * H * (3 * H)                          # QKV projection
                   + 2 * 2 * B * NUM_HEADS * S * S * HEAD_DIM   # QK^T and PV
                   + 2 * M * H * H                              # attn out proj
                   + 2 * 2 * M * H * INTERMEDIATE)              # FFN in + out
    flops = NUM_LAYERS * flops_layer + 2 * B * H * H + 2 * B * H * NUM_LABELS
    transcendentals = (NUM_LAYERS * (B * NUM_HEADS * S * S + M * INTERMEDIATE)
                       + B * H)
    bytes_accessed = (sum(int(a.size) * a.dtype.itemsize for a in kernel_args)
                      + 4 * B * NUM_LABELS)

    logits3 = pl.pallas_call(
        functools.partial(_bert_fused_kernel, num_heads=NUM_HEADS,
                          head_dim=HEAD_DIM, num_layers=NUM_LAYERS),
        grid=(B,),
        in_specs=in_specs,
        out_specs=out_spec,
        out_shape=jax.ShapeDtypeStruct((B, 1, NUM_LABELS), jnp.float32),
        compiler_params=pltpu.CompilerParams(
            dimension_semantics=("parallel",)),   # uses both TCs on v7x
        cost_estimate=pl.CostEstimate(flops=flops,
                                      transcendentals=transcendentals,
                                      bytes_accessed=bytes_accessed),
    )(*kernel_args)
    return logits3.reshape(B, NUM_LABELS)


# ----------------------------------- main -------------------------------------
if __name__ == "__main__":
    key = jax.random.PRNGKey(0)
    pkey, ikey = jax.random.split(key)
    params = init_params(pkey)

    B, S = 2, 8
    input_ids = jax.random.randint(ikey, (B, S), 0, VOCAB, dtype=jnp.int32)
    attention_mask = jnp.ones((B, S), jnp.int32).at[1, 6:].set(0)  # pad last 2 of ex 1

    logits = jax.jit(bert_sentiment_forward)(params, input_ids, attention_mask)
    jax.block_until_ready(logits)
    assert logits.shape == (B, NUM_LABELS), logits.shape
    assert bool(jnp.all(jnp.isfinite(logits)))
    print("KERNEL_OK")
</pallas_src>

<mosaic_0001>
module attributes {stable_mosaic.version = 11 : i64} {
  func.func @_bert_fused_kernel(%arg0: i32, %arg1: memref<1x8x32xf32, #tpu.memory_space<vmem>>, %arg2: memref<1x1x8xf32, #tpu.memory_space<vmem>>, %arg3: memref<1x32xf32, #tpu.memory_space<vmem>>, %arg4: memref<1x32xf32, #tpu.memory_space<vmem>>, %arg5: memref<2x6x32x16xbf16, #tpu.memory_space<vmem>>, %arg6: memref<2x6x1x16xf32, #tpu.memory_space<vmem>>, %arg7: memref<2x2x16x32xbf16, #tpu.memory_space<vmem>>, %arg8: memref<2x1x32xf32, #tpu.memory_space<vmem>>, %arg9: memref<2x1x32xf32, #tpu.memory_space<vmem>>, %arg10: memref<2x1x32xf32, #tpu.memory_space<vmem>>, %arg11: memref<2x32x128xbf16, #tpu.memory_space<vmem>>, %arg12: memref<2x1x128xf32, #tpu.memory_space<vmem>>, %arg13: memref<2x128x32xbf16, #tpu.memory_space<vmem>>, %arg14: memref<2x1x32xf32, #tpu.memory_space<vmem>>, %arg15: memref<2x1x32xf32, #tpu.memory_space<vmem>>, %arg16: memref<2x1x32xf32, #tpu.memory_space<vmem>>, %arg17: memref<32x32xbf16, #tpu.memory_space<vmem>>, %arg18: memref<1x32xf32, #tpu.memory_space<vmem>>, %arg19: memref<32x2xbf16, #tpu.memory_space<vmem>>, %arg20: memref<1x2xf32, #tpu.memory_space<vmem>>, %arg21: memref<1x1x2xf32, #tpu.memory_space<vmem>>) attributes {dimension_semantics = [#tpu.dimension_semantics<parallel>], iteration_bounds = array<i64: 2>, scalar_prefetch = 0 : i64, scratch_operands = 0 : i64, tpu.core_type = #tpu.core_type<tc>, window_params = [{transform_indices = @transform_0, window_bounds = array<i64: 1, 8, 32>}, {transform_indices = @transform_1, window_bounds = array<i64: 1, 1, 8>}, {pipeline_mode = #tpu.pipeline_mode<synchronous>, transform_indices = @transform_2, window_bounds = array<i64: 1, 32>}, {pipeline_mode = #tpu.pipeline_mode<synchronous>, transform_indices = @transform_3, window_bounds = array<i64: 1, 32>}, {pipeline_mode = #tpu.pipeline_mode<synchronous>, transform_indices = @transform_4, window_bounds = array<i64: 2, 6, 32, 16>}, {pipeline_mode = #tpu.pipeline_mode<synchronous>, transform_indices = @transform_5, window_bounds = array<i64: 2, 6, 1, 16>}, {pipeline_mode = #tpu.pipeline_mode<synchronous>, transform_indices = @transform_6, window_bounds = array<i64: 2, 2, 16, 32>}, {pipeline_mode = #tpu.pipeline_mode<synchronous>, transform_indices = @transform_7, window_bounds = array<i64: 2, 1, 32>}, {pipeline_mode = #tpu.pipeline_mode<synchronous>, transform_indices = @transform_8, window_bounds = array<i64: 2, 1, 32>}, {pipeline_mode = #tpu.pipeline_mode<synchronous>, transform_indices = @transform_9, window_bounds = array<i64: 2, 1, 32>}, {pipeline_mode = #tpu.pipeline_mode<synchronous>, transform_indices = @transform_10, window_bounds = array<i64: 2, 32, 128>}, {pipeline_mode = #tpu.pipeline_mode<synchronous>, transform_indices = @transform_11, window_bounds = array<i64: 2, 1, 128>}, {pipeline_mode = #tpu.pipeline_mode<synchronous>, transform_indices = @transform_12, window_bounds = array<i64: 2, 128, 32>}, {pipeline_mode = #tpu.pipeline_mode<synchronous>, transform_indices = @transform_13, window_bounds = array<i64: 2, 1, 32>}, {pipeline_mode = #tpu.pipeline_mode<synchronous>, transform_indices = @transform_14, window_bounds = array<i64: 2, 1, 32>}, {pipeline_mode = #tpu.pipeline_mode<synchronous>, transform_indices = @transform_15, window_bounds = array<i64: 2, 1, 32>}, {pipeline_mode = #tpu.pipeline_mode<synchronous>, transform_indices = @transform_16, window_bounds = array<i64: 32, 32>}, {pipeline_mode = #tpu.pipeline_mode<synchronous>, transform_indices = @transform_17, window_bounds = array<i64: 1, 32>}, {pipeline_mode = #tpu.pipeline_mode<synchronous>, transform_indices = @transform_18, window_bounds = array<i64: 32, 2>}, {pipeline_mode = #tpu.pipeline_mode<synchronous>, transform_indices = @transform_19, window_bounds = array<i64: 1, 2>}, {transform_indices = @transform_20, window_bounds = array<i64: 1, 1, 2>}]} {
    %c0 = arith.constant 0 : index
    %c0_0 = arith.constant 0 : index
    %c0_1 = arith.constant 0 : index
    %0 = vector.load %arg2[%c0, %c0_0, %c0_1] : memref<1x1x8xf32, #tpu.memory_space<vmem>>, vector<1x1x8xf32>
    %cst = arith.constant 1.000000e+00 : f32
    %1 = vector.broadcast %cst : f32 to vector<1x1x8xf32>
    %2 = arith.subf %1, %0 : vector<1x1x8xf32>
    %cst_2 = arith.constant -1.000000e+09 : f32
    %3 = vector.broadcast %cst_2 : f32 to vector<1x1x8xf32>
    %4 = arith.mulf %2, %3 : vector<1x1x8xf32>
    %c0_3 = arith.constant 0 : index
    %c0_4 = arith.constant 0 : index
    %c0_5 = arith.constant 0 : index
    %5 = vector.load %arg1[%c0_3, %c0_4, %c0_5] : memref<1x8x32xf32, #tpu.memory_space<vmem>>, vector<1x8x32xf32>
    %6 = vector.shape_cast %5 : vector<1x8x32xf32> to vector<8x32xf32>
    %c0_6 = arith.constant 0 : index
    %c0_7 = arith.constant 0 : index
    %7 = vector.load %arg3[%c0_6, %c0_7] : memref<1x32xf32, #tpu.memory_space<vmem>>, vector<1x32xf32>
    %c0_8 = arith.constant 0 : index
    %c0_9 = arith.constant 0 : index
    %8 = vector.load %arg4[%c0_8, %c0_9] : memref<1x32xf32, #tpu.memory_space<vmem>>, vector<1x32xf32>
    %cst_10 = arith.constant dense<0.000000e+00> : vector<8xf32>
    %9 = vector.multi_reduction <add>, %6, %cst_10 [1] : vector<8x32xf32> to vector<8xf32>
    %10 = vector.shape_cast %9 : vector<8xf32> to vector<8x1xf32>
    %cst_11 = arith.constant 3.200000e+01 : f32
    %11 = vector.broadcast %cst_11 : f32 to vector<8x1xf32>
    %12 = arith.divf %10, %11 : vector<8x1xf32>
    %13 = vector.broadcast %12 : vector<8x1xf32> to vector<8x32xf32>
    %14 = arith.subf %6, %13 : vector<8x32xf32>
    %15 = arith.mulf %14, %14 : vector<8x32xf32>
    %cst_12 = arith.constant dense<0.000000e+00> : vector<8xf32>
    %16 = vector.multi_reduction <add>, %15, %cst_12 [1] : vector<8x32xf32> to vector<8xf32>
    %17 = vector.shape_cast %16 : vector<8xf32> to vector<8x1xf32>
    %cst_13 = arith.constant 3.200000e+01 : f32
    %18 = vector.broadcast %cst_13 : f32 to vector<8x1xf32>
    %19 = arith.divf %17, %18 : vector<8x1xf32>
    %20 = vector.broadcast %12 : vector<8x1xf32> to vector<8x32xf32>
    %21 = arith.subf %6, %20 : vector<8x32xf32>
    %cst_14 = arith.constant 9.99999996E-13 : f32
    %22 = vector.broadcast %cst_14 : f32 to vector<8x1xf32>
    %23 = arith.addf %19, %22 : vector<8x1xf32>
    %24 = math.rsqrt %23 : vector<8x1xf32>
    %25 = vector.broadcast %24 : vector<8x1xf32> to vector<8x32xf32>
    %26 = arith.mulf %21, %25 : vector<8x32xf32>
    %27 = vector.broadcast %7 : vector<1x32xf32> to vector<8x32xf32>
    %28 = arith.mulf %26, %27 : vector<8x32xf32>
    %29 = vector.broadcast %8 : vector<1x32xf32> to vector<8x32xf32>
    %30 = arith.addf %28, %29 : vector<8x32xf32>
    %31 = arith.truncf %30 : vector<8x32xf32> to vector<8x32xbf16>
    %32 = vector.shape_cast %31 : vector<8x32xbf16> to vector<1x8x32xbf16>
    %33 = vector.broadcast %32 : vector<1x8x32xbf16> to vector<6x8x32xbf16>
    %c0_15 = arith.constant 0 : index
    %c0_16 = arith.constant 0 : index
    %c0_17 = arith.constant 0 : index
    %c0_18 = arith.constant 0 : index
    %34 = vector.load %arg5[%c0_15, %c0_16, %c0_17, %c0_18] : memref<2x6x32x16xbf16, #tpu.memory_space<vmem>>, vector<1x6x32x16xbf16>
    %35 = vector.shape_cast %34 : vector<1x6x32x16xbf16> to vector<6x32x16xbf16>
    "tpu.trace_start"() <{level = 10 : i32, message = "psh,phd->psd"}> : () -> ()
    %cst_19 = arith.constant dense<0.000000e+00> : vector<6x8x16xf32>
    %36 = tpu.matmul %33, %35, %cst_19 {dimension_numbers = #tpu.dot_dimension_numbers<[2], [1], [1], [2], [0, 0, 0, 1, 1, 2], [0], [0]>} : vector<6x8x32xbf16>, vector<6x32x16xbf16>, vector<6x8x16xf32> -> vector<6x8x16xf32>
    "tpu.trace_stop"() : () -> ()
    %c0_20 = arith.constant 0 : index
    %c0_21 = arith.constant 0 : index
    %c0_22 = arith.constant 0 : index
    %c0_23 = arith.constant 0 : index
    %37 = vector.load %arg6[%c0_20, %c0_21, %c0_22, %c0_23] : memref<2x6x1x16xf32, #tpu.memory_space<vmem>>, vector<1x6x1x16xf32>
    %38 = vector.shape_cast %37 : vector<1x6x1x16xf32> to vector<6x1x16xf32>
    %39 = vector.broadcast %38 : vector<6x1x16xf32> to vector<6x8x16xf32>
    %40 = arith.addf %36, %39 : vector<6x8x16xf32>
    %41 = vector.extract_strided_slice %40 {offsets = [0, 0, 0], sizes = [2, 8, 16], strides = [1, 1, 1]} : vector<6x8x16xf32> to vector<2x8x16xf32>
    %cst_24 = arith.constant 2.500000e-01 : f32
    %42 = vector.broadcast %cst_24 : f32 to vector<2x8x16xf32>
    %43 = arith.mulf %41, %42 : vector<2x8x16xf32>
    %44 = vector.extract_strided_slice %40 {offsets = [2, 0, 0], sizes = [2, 8, 16], strides = [1, 1, 1]} : vector<6x8x16xf32> to vector<2x8x16xf32>
    %45 = vector.extract_strided_slice %40 {offsets = [4, 0, 0], sizes = [2, 8, 16], strides = [1, 1, 1]} : vector<6x8x16xf32> to vector<2x8x16xf32>
    %46 = arith.truncf %43 : vector<2x8x16xf32> to vector<2x8x16xbf16>
    %47 = arith.truncf %44 : vector<2x8x16xf32> to vector<2x8x16xbf16>
    "tpu.trace_start"() <{level = 10 : i32, message = "hqd,hkd->hqk"}> : () -> ()
    %cst_25 = arith.constant dense<0.000000e+00> : vector<2x8x8xf32>
    %48 = tpu.matmul %46, %47, %cst_25 {dimension_numbers = #tpu.dot_dimension_numbers<[2], [2], [1], [1], [0, 0, 0, 1, 1, 1], [0], [0]>} : vector<2x8x16xbf16>, vector<2x8x16xbf16>, vector<2x8x8xf32> -> vector<2x8x8xf32>
    "tpu.trace_stop"() : () -> ()
    %49 = vector.broadcast %4 : vector<1x1x8xf32> to vector<2x8x8xf32>
    %50 = arith.addf %48, %49 : vector<2x8x8xf32>
    %cst_26 = arith.constant dense<0xFF800000> : vector<2x8xf32>
    %51 = vector.multi_reduction <maximumf>, %50, %cst_26 [2] : vector<2x8x8xf32> to vector<2x8xf32>
    %52 = vector.shape_cast %51 : vector<2x8xf32> to vector<2x8x1xf32>
    %53 = vector.broadcast %52 : vector<2x8x1xf32> to vector<2x8x8xf32>
    %54 = arith.subf %50, %53 : vector<2x8x8xf32>
    %55 = math.exp %54 : vector<2x8x8xf32>
    %cst_27 = arith.constant dense<0.000000e+00> : vector<2x8xf32>
    %56 = vector.multi_reduction <add>, %55, %cst_27 [2] : vector<2x8x8xf32> to vector<2x8xf32>
    %57 = vector.shape_cast %56 : vector<2x8xf32> to vector<2x8x1xf32>
    %58 = tpu.reciprocal %57 {approx = true} : vector<2x8x1xf32> -> vector<2x8x1xf32>
    %59 = vector.broadcast %58 : vector<2x8x1xf32> to vector<2x8x8xf32>
    %60 = arith.mulf %55, %59 : vector<2x8x8xf32>
    %61 = arith.truncf %60 : vector<2x8x8xf32> to vector<2x8x8xbf16>
    %62 = arith.truncf %45 : vector<2x8x16xf32> to vector<2x8x16xbf16>
    "tpu.trace_start"() <{level = 10 : i32, message = "hqk,hkd->hqd"}> : () -> ()
    %cst_28 = arith.constant dense<0.000000e+00> : vector<2x8x16xf32>
    %63 = tpu.matmul %61, %62, %cst_28 {dimension_numbers = #tpu.dot_dimension_numbers<[2], [1], [1], [2], [0, 0, 0, 1, 1, 2], [0], [0]>} : vector<2x8x8xbf16>, vector<2x8x16xbf16>, vector<2x8x16xf32> -> vector<2x8x16xf32>
    "tpu.trace_stop"() : () -> ()
    %64 = arith.truncf %63 : vector<2x8x16xf32> to vector<2x8x16xbf16>
    %c0_29 = arith.constant 0 : index
    %c0_30 = arith.constant 0 : index
    %c0_31 = arith.constant 0 : index
    %c0_32 = arith.constant 0 : index
    %65 = vector.load %arg7[%c0_29, %c0_30, %c0_31, %c0_32] : memref<2x2x16x32xbf16, #tpu.memory_space<vmem>>, vector<1x2x16x32xbf16>
    %66 = vector.shape_cast %65 : vector<1x2x16x32xbf16> to vector<2x16x32xbf16>
    "tpu.trace_start"() <{level = 10 : i32, message = "hsd,hdk->hsk"}> : () -> ()
    %cst_33 = arith.constant dense<0.000000e+00> : vector<2x8x32xf32>
    %67 = tpu.matmul %64, %66, %cst_33 {dimension_numbers = #tpu.dot_dimension_numbers<[2], [1], [1], [2], [0, 0, 0, 1, 1, 2], [0], [0]>} : vector<2x8x16xbf16>, vector<2x16x32xbf16>, vector<2x8x32xf32> -> vector<2x8x32xf32>
    "tpu.trace_stop"() : () -> ()
    %cst_34 = arith.constant dense<0.000000e+00> : vector<8x32xf32>
    %68 = vector.multi_reduction <add>, %67, %cst_34 [0] : vector<2x8x32xf32> to vector<8x32xf32>
    %c0_35 = arith.constant 0 : index
    %c0_36 = arith.constant 0 : index
    %c0_37 = arith.constant 0 : index
    %69 = vector.load %arg8[%c0_35, %c0_36, %c0_37] : memref<2x1x32xf32, #tpu.memory_space<vmem>>, vector<1x1x32xf32>
    %70 = vector.shape_cast %69 : vector<1x1x32xf32> to vector<1x32xf32>
    %71 = vector.broadcast %70 : vector<1x32xf32> to vector<8x32xf32>
    %72 = arith.addf %68, %71 : vector<8x32xf32>
    %73 = arith.addf %30, %72 : vector<8x32xf32>
    %c0_38 = arith.constant 0 : index
    %c0_39 = arith.constant 0 : index
    %c0_40 = arith.constant 0 : index
    %74 = vector.load %arg9[%c0_38, %c0_39, %c0_40] : memref<2x1x32xf32, #tpu.memory_space<vmem>>, vector<1x1x32xf32>
    %75 = vector.shape_cast %74 : vector<1x1x32xf32> to vector<1x32xf32>
    %c0_41 = arith.constant 0 : index
    %c0_42 = arith.constant 0 : index
    %c0_43 = arith.constant 0 : index
    %76 = vector.load %arg10[%c0_41, %c0_42, %c0_43] : memref<2x1x32xf32, #tpu.memory_space<vmem>>, vector<1x1x32xf32>
    %77 = vector.shape_cast %76 : vector<1x1x32xf32> to vector<1x32xf32>
    %cst_44 = arith.constant dense<0.000000e+00> : vector<8xf32>
    %78 = vector.multi_reduction <add>, %73, %cst_44 [1] : vector<8x32xf32> to vector<8xf32>
    %79 = vector.shape_cast %78 : vector<8xf32> to vector<8x1xf32>
    %cst_45 = arith.constant 3.200000e+01 : f32
    %80 = vector.broadcast %cst_45 : f32 to vector<8x1xf32>
    %81 = arith.divf %79, %80 : vector<8x1xf32>
    %82 = vector.broadcast %81 : vector<8x1xf32> to vector<8x32xf32>
    %83 = arith.subf %73, %82 : vector<8x32xf32>
    %84 = arith.mulf %83, %83 : vector<8x32xf32>
    %cst_46 = arith.constant dense<0.000000e+00> : vector<8xf32>
    %85 = vector.multi_reduction <add>, %84, %cst_46 [1] : vector<8x32xf32> to vector<8xf32>
    %86 = vector.shape_cast %85 : vector<8xf32> to vector<8x1xf32>
    %cst_47 = arith.constant 3.200000e+01 : f32
    %87 = vector.broadcast %cst_47 : f32 to vector<8x1xf32>
    %88 = arith.divf %86, %87 : vector<8x1xf32>
    %89 = vector.broadcast %81 : vector<8x1xf32> to vector<8x32xf32>
    %90 = arith.subf %73, %89 : vector<8x32xf32>
    %cst_48 = arith.constant 9.99999996E-13 : f32
    %91 = vector.broadcast %cst_48 : f32 to vector<8x1xf32>
    %92 = arith.addf %88, %91 : vector<8x1xf32>
    %93 = math.rsqrt %92 : vector<8x1xf32>
    %94 = vector.broadcast %93 : vector<8x1xf32> to vector<8x32xf32>
    %95 = arith.mulf %90, %94 : vector<8x32xf32>
    %96 = vector.broadcast %75 : vector<1x32xf32> to vector<8x32xf32>
    %97 = arith.mulf %95, %96 : vector<8x32xf32>
    %98 = vector.broadcast %77 : vector<1x32xf32> to vector<8x32xf32>
    %99 = arith.addf %97, %98 : vector<8x32xf32>
    %100 = arith.truncf %99 : vector<8x32xf32> to vector<8x32xbf16>
    %c0_49 = arith.constant 0 : index
    %c0_50 = arith.constant 0 : index
    %c0_51 = arith.constant 0 : index
    %101 = vector.load %arg11[%c0_49, %c0_50, %c0_51] : memref<2x32x128xbf16, #tpu.memory_space<vmem>>, vector<1x32x128xbf16>
    %102 = vector.shape_cast %101 : vector<1x32x128xbf16> to vector<32x128xbf16>
    %cst_52 = arith.constant dense<0.000000e+00> : vector<8x128xf32>
    %103 = tpu.matmul %100, %102, %cst_52 {dimension_numbers = #tpu.dot_dimension_numbers<[1], [0], [0], [1], [0, 0, 1, 1], [], []>} : vector<8x32xbf16>, vector<32x128xbf16>, vector<8x128xf32> -> vector<8x128xf32>
    %c0_53 = arith.constant 0 : index
    %c0_54 = arith.constant 0 : index
    %c0_55 = arith.constant 0 : index
    %104 = vector.load %arg12[%c0_53, %c0_54, %c0_55] : memref<2x1x128xf32, #tpu.memory_space<vmem>>, vector<1x1x128xf32>
    %105 = vector.shape_cast %104 : vector<1x1x128xf32> to vector<1x128xf32>
    %106 = vector.broadcast %105 : vector<1x128xf32> to vector<8x128xf32>
    %107 = arith.addf %103, %106 : vector<8x128xf32>
    %cst_56 = arith.constant 5.000000e-01 : f32
    %108 = vector.broadcast %cst_56 : f32 to vector<8x128xf32>
    %109 = arith.mulf %108, %107 : vector<8x128xf32>
    %cst_57 = arith.constant 4.471500e-02 : f32
    %110 = vector.broadcast %cst_57 : f32 to vector<8x128xf32>
    %111 = arith.mulf %110, %107 : vector<8x128xf32>
    %112 = arith.mulf %111, %107 : vector<8x128xf32>
    %113 = arith.mulf %112, %107 : vector<8x128xf32>
    %114 = arith.addf %107, %113 : vector<8x128xf32>
    %cst_58 = arith.constant 0.797884583 : f32
    %115 = vector.broadcast %cst_58 : f32 to vector<8x128xf32>
    %116 = arith.mulf %115, %114 : vector<8x128xf32>
    %117 = math.tanh %116 : vector<8x128xf32>
    %cst_59 = arith.constant 1.000000e+00 : f32
    %118 = vector.broadcast %cst_59 : f32 to vector<8x128xf32>
    %119 = arith.addf %118, %117 : vector<8x128xf32>
    %120 = arith.mulf %109, %119 : vector<8x128xf32>
    %121 = arith.truncf %120 : vector<8x128xf32> to vector<8x128xbf16>
    %c0_60 = arith.constant 0 : index
    %c0_61 = arith.constant 0 : index
    %c0_62 = arith.constant 0 : index
    %122 = vector.load %arg13[%c0_60, %c0_61, %c0_62] : memref<2x128x32xbf16, #tpu.memory_space<vmem>>, vector<1x128x32xbf16>
    %123 = vector.shape_cast %122 : vector<1x128x32xbf16> to vector<128x32xbf16>
    %cst_63 = arith.constant dense<0.000000e+00> : vector<8x32xf32>
    %124 = tpu.matmul %121, %123, %cst_63 {dimension_numbers = #tpu.dot_dimension_numbers<[1], [0], [0], [1], [0, 0, 1, 1], [], []>} : vector<8x128xbf16>, vector<128x32xbf16>, vector<8x32xf32> -> vector<8x32xf32>
    %c0_64 = arith.constant 0 : index
    %c0_65 = arith.constant 0 : index
    %c0_66 = arith.constant 0 : index
    %125 = vector.load %arg14[%c0_64, %c0_65, %c0_66] : memref<2x1x32xf32, #tpu.memory_space<vmem>>, vector<1x1x32xf32>
    %126 = vector.shape_cast %125 : vector<1x1x32xf32> to vector<1x32xf32>
    %127 = vector.broadcast %126 : vector<1x32xf32> to vector<8x32xf32>
    %128 = arith.addf %124, %127 : vector<8x32xf32>
    %129 = arith.addf %99, %128 : vector<8x32xf32>
    %c0_67 = arith.constant 0 : index
    %c0_68 = arith.constant 0 : index
    %c0_69 = arith.constant 0 : index
    %130 = vector.load %arg15[%c0_67, %c0_68, %c0_69] : memref<2x1x32xf32, #tpu.memory_space<vmem>>, vector<1x1x32xf32>
    %131 = vector.shape_cast %130 : vector<1x1x32xf32> to vector<1x32xf32>
    %c0_70 = arith.constant 0 : index
    %c0_71 = arith.constant 0 : index
    %c0_72 = arith.constant 0 : index
    %132 = vector.load %arg16[%c0_70, %c0_71, %c0_72] : memref<2x1x32xf32, #tpu.memory_space<vmem>>, vector<1x1x32xf32>
    %133 = vector.shape_cast %132 : vector<1x1x32xf32> to vector<1x32xf32>
    %cst_73 = arith.constant dense<0.000000e+00> : vector<8xf32>
    %134 = vector.multi_reduction <add>, %129, %cst_73 [1] : vector<8x32xf32> to vector<8xf32>
    %135 = vector.shape_cast %134 : vector<8xf32> to vector<8x1xf32>
    %cst_74 = arith.constant 3.200000e+01 : f32
    %136 = vector.broadcast %cst_74 : f32 to vector<8x1xf32>
    %137 = arith.divf %135, %136 : vector<8x1xf32>
    %138 = vector.broadcast %137 : vector<8x1xf32> to vector<8x32xf32>
    %139 = arith.subf %129, %138 : vector<8x32xf32>
    %140 = arith.mulf %139, %139 : vector<8x32xf32>
    %cst_75 = arith.constant dense<0.000000e+00> : vector<8xf32>
    %141 = vector.multi_reduction <add>, %140, %cst_75 [1] : vector<8x32xf32> to vector<8xf32>
    %142 = vector.shape_cast %141 : vector<8xf32> to vector<8x1xf32>
    %cst_76 = arith.constant 3.200000e+01 : f32
    %143 = vector.broadcast %cst_76 : f32 to vector<8x1xf32>
    %144 = arith.divf %142, %143 : vector<8x1xf32>
    %145 = vector.broadcast %137 : vector<8x1xf32> to vector<8x32xf32>
    %146 = arith.subf %129, %145 : vector<8x32xf32>
    %cst_77 = arith.constant 9.99999996E-13 : f32
    %147 = vector.broadcast %cst_77 : f32 to vector<8x1xf32>
    %148 = arith.addf %144, %147 : vector<8x1xf32>
    %149 = math.rsqrt %148 : vector<8x1xf32>
    %150 = vector.broadcast %149 : vector<8x1xf32> to vector<8x32xf32>
    %151 = arith.mulf %146, %150 : vector<8x32xf32>
    %152 = vector.broadcast %131 : vector<1x32xf32> to vector<8x32xf32>
    %153 = arith.mulf %151, %152 : vector<8x32xf32>
    %154 = vector.broadcast %133 : vector<1x32xf32> to vector<8x32xf32>
    %155 = arith.addf %153, %154 : vector<8x32xf32>
    %156 = arith.truncf %155 : vector<8x32xf32> to vector<8x32xbf16>
    %157 = vector.shape_cast %156 : vector<8x32xbf16> to vector<1x8x32xbf16>
    %158 = vector.broadcast %157 : vector<1x8x32xbf16> to vector<6x8x32xbf16>
    %c1 = arith.constant 1 : index
    %c0_78 = arith.constant 0 : index
    %c0_79 = arith.constant 0 : index
    %c0_80 = arith.constant 0 : index
    %159 = vector.load %arg5[%c1, %c0_78, %c0_79, %c0_80] : memref<2x6x32x16xbf16, #tpu.memory_space<vmem>>, vector<1x6x32x16xbf16>
    %160 = vector.shape_cast %159 : vector<1x6x32x16xbf16> to vector<6x32x16xbf16>
    "tpu.trace_start"() <{level = 10 : i32, message = "psh,phd->psd"}> : () -> ()
    %cst_81 = arith.constant dense<0.000000e+00> : vector<6x8x16xf32>
    %161 = tpu.matmul %158, %160, %cst_81 {dimension_numbers = #tpu.dot_dimension_numbers<[2], [1], [1], [2], [0, 0, 0, 1, 1, 2], [0], [0]>} : vector<6x8x32xbf16>, vector<6x32x16xbf16>, vector<6x8x16xf32> -> vector<6x8x16xf32>
    "tpu.trace_stop"() : () -> ()
    %c1_82 = arith.constant 1 : index
    %c0_83 = arith.constant 0 : index
    %c0_84 = arith.constant 0 : index
    %c0_85 = arith.constant 0 : index
    %162 = vector.load %arg6[%c1_82, %c0_83, %c0_84, %c0_85] : memref<2x6x1x16xf32, #tpu.memory_space<vmem>>, vector<1x6x1x16xf32>
    %163 = vector.shape_cast %162 : vector<1x6x1x16xf32> to vector<6x1x16xf32>
    %164 = vector.broadcast %163 : vector<6x1x16xf32> to vector<6x8x16xf32>
    %165 = arith.addf %161, %164 : vector<6x8x16xf32>
    %166 = vector.extract_strided_slice %165 {offsets = [0, 0, 0], sizes = [2, 8, 16], strides = [1, 1, 1]} : vector<6x8x16xf32> to vector<2x8x16xf32>
    %cst_86 = arith.constant 2.500000e-01 : f32
    %167 = vector.broadcast %cst_86 : f32 to vector<2x8x16xf32>
    %168 = arith.mulf %166, %167 : vector<2x8x16xf32>
    %169 = vector.extract_strided_slice %165 {offsets = [2, 0, 0], sizes = [2, 8, 16], strides = [1, 1, 1]} : vector<6x8x16xf32> to vector<2x8x16xf32>
    %170 = vector.extract_strided_slice %165 {offsets = [4, 0, 0], sizes = [2, 8, 16], strides = [1, 1, 1]} : vector<6x8x16xf32> to vector<2x8x16xf32>
    %171 = arith.truncf %168 : vector<2x8x16xf32> to vector<2x8x16xbf16>
    %172 = arith.truncf %169 : vector<2x8x16xf32> to vector<2x8x16xbf16>
    "tpu.trace_start"() <{level = 10 : i32, message = "hqd,hkd->hqk"}> : () -> ()
    %cst_87 = arith.constant dense<0.000000e+00> : vector<2x8x8xf32>
    %173 = tpu.matmul %171, %172, %cst_87 {dimension_numbers = #tpu.dot_dimension_numbers<[2], [2], [1], [1], [0, 0, 0, 1, 1, 1], [0], [0]>} : vector<2x8x16xbf16>, vector<2x8x16xbf16>, vector<2x8x8xf32> -> vector<2x8x8xf32>
    "tpu.trace_stop"() : () -> ()
    %174 = vector.broadcast %4 : vector<1x1x8xf32> to vector<2x8x8xf32>
    %175 = arith.addf %173, %174 : vector<2x8x8xf32>
    %cst_88 = arith.constant dense<0xFF800000> : vector<2x8xf32>
    %176 = vector.multi_reduction <maximumf>, %175, %cst_88 [2] : vector<2x8x8xf32> to vector<2x8xf32>
    %177 = vector.shape_cast %176 : vector<2x8xf32> to vector<2x8x1xf32>
    %178 = vector.broadcast %177 : vector<2x8x1xf32> to vector<2x8x8xf32>
    %179 = arith.subf %175, %178 : vector<2x8x8xf32>
    %180 = math.exp %179 : vector<2x8x8xf32>
    %cst_89 = arith.constant dense<0.000000e+00> : vector<2x8xf32>
    %181 = vector.multi_reduction <add>, %180, %cst_89 [2] : vector<2x8x8xf32> to vector<2x8xf32>
    %182 = vector.shape_cast %181 : vector<2x8xf32> to vector<2x8x1xf32>
    %183 = tpu.reciprocal %182 {approx = true} : vector<2x8x1xf32> -> vector<2x8x1xf32>
    %184 = vector.broadcast %183 : vector<2x8x1xf32> to vector<2x8x8xf32>
    %185 = arith.mulf %180, %184 : vector<2x8x8xf32>
    %186 = arith.truncf %185 : vector<2x8x8xf32> to vector<2x8x8xbf16>
    %187 = arith.truncf %170 : vector<2x8x16xf32> to vector<2x8x16xbf16>
    "tpu.trace_start"() <{level = 10 : i32, message = "hqk,hkd->hqd"}> : () -> ()
    %cst_90 = arith.constant dense<0.000000e+00> : vector<2x8x16xf32>
    %188 = tpu.matmul %186, %187, %cst_90 {dimension_numbers = #tpu.dot_dimension_numbers<[2], [1], [1], [2], [0, 0, 0, 1, 1, 2], [0], [0]>} : vector<2x8x8xbf16>, vector<2x8x16xbf16>, vector<2x8x16xf32> -> vector<2x8x16xf32>
    "tpu.trace_stop"() : () -> ()
    %189 = arith.truncf %188 : vector<2x8x16xf32> to vector<2x8x16xbf16>
    %c1_91 = arith.constant 1 : index
    %c0_92 = arith.constant 0 : index
    %c0_93 = arith.constant 0 : index
    %c0_94 = arith.constant 0 : index
    %190 = vector.load %arg7[%c1_91, %c0_92, %c0_93, %c0_94] : memref<2x2x16x32xbf16, #tpu.memory_space<vmem>>, vector<1x2x16x32xbf16>
    %191 = vector.shape_cast %190 : vector<1x2x16x32xbf16> to vector<2x16x32xbf16>
    "tpu.trace_start"() <{level = 10 : i32, message = "hsd,hdk->hsk"}> : () -> ()
    %cst_95 = arith.constant dense<0.000000e+00> : vector<2x8x32xf32>
    %192 = tpu.matmul %189, %191, %cst_95 {dimension_numbers = #tpu.dot_dimension_numbers<[2], [1], [1], [2], [0, 0, 0, 1, 1, 2], [0], [0]>} : vector<2x8x16xbf16>, vector<2x16x32xbf16>, vector<2x8x32xf32> -> vector<2x8x32xf32>
    "tpu.trace_stop"() : () -> ()
    %cst_96 = arith.constant dense<0.000000e+00> : vector<8x32xf32>
    %193 = vector.multi_reduction <add>, %192, %cst_96 [0] : vector<2x8x32xf32> to vector<8x32xf32>
    %c1_97 = arith.constant 1 : index
    %c0_98 = arith.constant 0 : index
    %c0_99 = arith.constant 0 : index
    %194 = vector.load %arg8[%c1_97, %c0_98, %c0_99] : memref<2x1x32xf32, #tpu.memory_space<vmem>>, vector<1x1x32xf32>
    %195 = vector.shape_cast %194 : vector<1x1x32xf32> to vector<1x32xf32>
    %196 = vector.broadcast %195 : vector<1x32xf32> to vector<8x32xf32>
    %197 = arith.addf %193, %196 : vector<8x32xf32>
    %198 = arith.addf %155, %197 : vector<8x32xf32>
    %c1_100 = arith.constant 1 : index
    %c0_101 = arith.constant 0 : index
    %c0_102 = arith.constant 0 : index
    %199 = vector.load %arg9[%c1_100, %c0_101, %c0_102] : memref<2x1x32xf32, #tpu.memory_space<vmem>>, vector<1x1x32xf32>
    %200 = vector.shape_cast %199 : vector<1x1x32xf32> to vector<1x32xf32>
    %c1_103 = arith.constant 1 : index
    %c0_104 = arith.constant 0 : index
    %c0_105 = arith.constant 0 : index
    %201 = vector.load %arg10[%c1_103, %c0_104, %c0_105] : memref<2x1x32xf32, #tpu.memory_space<vmem>>, vector<1x1x32xf32>
    %202 = vector.shape_cast %201 : vector<1x1x32xf32> to vector<1x32xf32>
    %cst_106 = arith.constant dense<0.000000e+00> : vector<8xf32>
    %203 = vector.multi_reduction <add>, %198, %cst_106 [1] : vector<8x32xf32> to vector<8xf32>
    %204 = vector.shape_cast %203 : vector<8xf32> to vector<8x1xf32>
    %cst_107 = arith.constant 3.200000e+01 : f32
    %205 = vector.broadcast %cst_107 : f32 to vector<8x1xf32>
    %206 = arith.divf %204, %205 : vector<8x1xf32>
    %207 = vector.broadcast %206 : vector<8x1xf32> to vector<8x32xf32>
    %208 = arith.subf %198, %207 : vector<8x32xf32>
    %209 = arith.mulf %208, %208 : vector<8x32xf32>
    %cst_108 = arith.constant dense<0.000000e+00> : vector<8xf32>
    %210 = vector.multi_reduction <add>, %209, %cst_108 [1] : vector<8x32xf32> to vector<8xf32>
    %211 = vector.shape_cast %210 : vector<8xf32> to vector<8x1xf32>
    %cst_109 = arith.constant 3.200000e+01 : f32
    %212 = vector.broadcast %cst_109 : f32 to vector<8x1xf32>
    %213 = arith.divf %211, %212 : vector<8x1xf32>
    %214 = vector.broadcast %206 : vector<8x1xf32> to vector<8x32xf32>
    %215 = arith.subf %198, %214 : vector<8x32xf32>
    %cst_110 = arith.constant 9.99999996E-13 : f32
    %216 = vector.broadcast %cst_110 : f32 to vector<8x1xf32>
    %217 = arith.addf %213, %216 : vector<8x1xf32>
    %218 = math.rsqrt %217 : vector<8x1xf32>
    %219 = vector.broadcast %218 : vector<8x1xf32> to vector<8x32xf32>
    %220 = arith.mulf %215, %219 : vector<8x32xf32>
    %221 = vector.broadcast %200 : vector<1x32xf32> to vector<8x32xf32>
    %222 = arith.mulf %220, %221 : vector<8x32xf32>
    %223 = vector.broadcast %202 : vector<1x32xf32> to vector<8x32xf32>
    %224 = arith.addf %222, %223 : vector<8x32xf32>
    %225 = arith.truncf %224 : vector<8x32xf32> to vector<8x32xbf16>
    %c1_111 = arith.constant 1 : index
    %c0_112 = arith.constant 0 : index
    %c0_113 = arith.constant 0 : index
    %226 = vector.load %arg11[%c1_111, %c0_112, %c0_113] : memref<2x32x128xbf16, #tpu.memory_space<vmem>>, vector<1x32x128xbf16>
    %227 = vector.shape_cast %226 : vector<1x32x128xbf16> to vector<32x128xbf16>
    %cst_114 = arith.constant dense<0.000000e+00> : vector<8x128xf32>
    %228 = tpu.matmul %225, %227, %cst_114 {dimension_numbers = #tpu.dot_dimension_numbers<[1], [0], [0], [1], [0, 0, 1, 1], [], []>} : vector<8x32xbf16>, vector<32x128xbf16>, vector<8x128xf32> -> vector<8x128xf32>
    %c1_115 = arith.constant 1 : index
    %c0_116 = arith.constant 0 : index
    %c0_117 = arith.constant 0 : index
    %229 = vector.load %arg12[%c1_115, %c0_116, %c0_117] : memref<2x1x128xf32, #tpu.memory_space<vmem>>, vector<1x1x128xf32>
    %230 = vector.shape_cast %229 : vector<1x1x128xf32> to vector<1x128xf32>
    %231 = vector.broadcast %230 : vector<1x128xf32> to vector<8x128xf32>
    %232 = arith.addf %228, %231 : vector<8x128xf32>
    %cst_118 = arith.constant 5.000000e-01 : f32
    %233 = vector.broadcast %cst_118 : f32 to vector<8x128xf32>
    %234 = arith.mulf %233, %232 : vector<8x128xf32>
    %cst_119 = arith.constant 4.471500e-02 : f32
    %235 = vector.broadcast %cst_119 : f32 to vector<8x128xf32>
    %236 = arith.mulf %235, %232 : vector<8x128xf32>
    %237 = arith.mulf %236, %232 : vector<8x128xf32>
    %238 = arith.mulf %237, %232 : vector<8x128xf32>
    %239 = arith.addf %232, %238 : vector<8x128xf32>
    %cst_120 = arith.constant 0.797884583 : f32
    %240 = vector.broadcast %cst_120 : f32 to vector<8x128xf32>
    %241 = arith.mulf %240, %239 : vector<8x128xf32>
    %242 = math.tanh %241 : vector<8x128xf32>
    %cst_121 = arith.constant 1.000000e+00 : f32
    %243 = vector.broadcast %cst_121 : f32 to vector<8x128xf32>
    %244 = arith.addf %243, %242 : vector<8x128xf32>
    %245 = arith.mulf %234, %244 : vector<8x128xf32>
    %246 = arith.truncf %245 : vector<8x128xf32> to vector<8x128xbf16>
    %c1_122 = arith.constant 1 : index
    %c0_123 = arith.constant 0 : index
    %c0_124 = arith.constant 0 : index
    %247 = vector.load %arg13[%c1_122, %c0_123, %c0_124] : memref<2x128x32xbf16, #tpu.memory_space<vmem>>, vector<1x128x32xbf16>
    %248 = vector.shape_cast %247 : vector<1x128x32xbf16> to vector<128x32xbf16>
    %cst_125 = arith.constant dense<0.000000e+00> : vector<8x32xf32>
    %249 = tpu.matmul %246, %248, %cst_125 {dimension_numbers = #tpu.dot_dimension_numbers<[1], [0], [0], [1], [0, 0, 1, 1], [], []>} : vector<8x128xbf16>, vector<128x32xbf16>, vector<8x32xf32> -> vector<8x32xf32>
    %c1_126 = arith.constant 1 : index
    %c0_127 = arith.constant 0 : index
    %c0_128 = arith.constant 0 : index
    %250 = vector.load %arg14[%c1_126, %c0_127, %c0_128] : memref<2x1x32xf32, #tpu.memory_space<vmem>>, vector<1x1x32xf32>
    %251 = vector.shape_cast %250 : vector<1x1x32xf32> to vector<1x32xf32>
    %252 = vector.broadcast %251 : vector<1x32xf32> to vector<8x32xf32>
    %253 = arith.addf %249, %252 : vector<8x32xf32>
    %254 = arith.addf %224, %253 : vector<8x32xf32>
    %c1_129 = arith.constant 1 : index
    %c0_130 = arith.constant 0 : index
    %c0_131 = arith.constant 0 : index
    %255 = vector.load %arg15[%c1_129, %c0_130, %c0_131] : memref<2x1x32xf32, #tpu.memory_space<vmem>>, vector<1x1x32xf32>
    %256 = vector.shape_cast %255 : vector<1x1x32xf32> to vector<1x32xf32>
    %c1_132 = arith.constant 1 : index
    %c0_133 = arith.constant 0 : index
    %c0_134 = arith.constant 0 : index
    %257 = vector.load %arg16[%c1_132, %c0_133, %c0_134] : memref<2x1x32xf32, #tpu.memory_space<vmem>>, vector<1x1x32xf32>
    %258 = vector.shape_cast %257 : vector<1x1x32xf32> to vector<1x32xf32>
    %cst_135 = arith.constant dense<0.000000e+00> : vector<8xf32>
    %259 = vector.multi_reduction <add>, %254, %cst_135 [1] : vector<8x32xf32> to vector<8xf32>
    %260 = vector.shape_cast %259 : vector<8xf32> to vector<8x1xf32>
    %cst_136 = arith.constant 3.200000e+01 : f32
    %261 = vector.broadcast %cst_136 : f32 to vector<8x1xf32>
    %262 = arith.divf %260, %261 : vector<8x1xf32>
    %263 = vector.broadcast %262 : vector<8x1xf32> to vector<8x32xf32>
    %264 = arith.subf %254, %263 : vector<8x32xf32>
    %265 = arith.mulf %264, %264 : vector<8x32xf32>
    %cst_137 = arith.constant dense<0.000000e+00> : vector<8xf32>
    %266 = vector.multi_reduction <add>, %265, %cst_137 [1] : vector<8x32xf32> to vector<8xf32>
    %267 = vector.shape_cast %266 : vector<8xf32> to vector<8x1xf32>
    %cst_138 = arith.constant 3.200000e+01 : f32
    %268 = vector.broadcast %cst_138 : f32 to vector<8x1xf32>
    %269 = arith.divf %267, %268 : vector<8x1xf32>
    %270 = vector.broadcast %262 : vector<8x1xf32> to vector<8x32xf32>
    %271 = arith.subf %254, %270 : vector<8x32xf32>
    %cst_139 = arith.constant 9.99999996E-13 : f32
    %272 = vector.broadcast %cst_139 : f32 to vector<8x1xf32>
    %273 = arith.addf %269, %272 : vector<8x1xf32>
    %274 = math.rsqrt %273 : vector<8x1xf32>
    %275 = vector.broadcast %274 : vector<8x1xf32> to vector<8x32xf32>
    %276 = arith.mulf %271, %275 : vector<8x32xf32>
    %277 = vector.broadcast %256 : vector<1x32xf32> to vector<8x32xf32>
    %278 = arith.mulf %276, %277 : vector<8x32xf32>
    %279 = vector.broadcast %258 : vector<1x32xf32> to vector<8x32xf32>
    %280 = arith.addf %278, %279 : vector<8x32xf32>
    %281 = vector.extract_strided_slice %280 {offsets = [0, 0], sizes = [1, 32], strides = [1, 1]} : vector<8x32xf32> to vector<1x32xf32>
    %282 = arith.truncf %281 : vector<1x32xf32> to vector<1x32xbf16>
    %c0_140 = arith.constant 0 : index
    %c0_141 = arith.constant 0 : index
    %283 = vector.load %arg17[%c0_140, %c0_141] : memref<32x32xbf16, #tpu.memory_space<vmem>>, vector<32x32xbf16>
    %cst_142 = arith.constant dense<0.000000e+00> : vector<1x32xf32>
    %284 = tpu.matmul %282, %283, %cst_142 {dimension_numbers = #tpu.dot_dimension_numbers<[1], [0], [0], [1], [0, 0, 1, 1], [], []>} : vector<1x32xbf16>, vector<32x32xbf16>, vector<1x32xf32> -> vector<1x32xf32>
    %c0_143 = arith.constant 0 : index
    %c0_144 = arith.constant 0 : index
    %285 = vector.load %arg18[%c0_143, %c0_144] : memref<1x32xf32, #tpu.memory_space<vmem>>, vector<1x32xf32>
    %286 = arith.addf %284, %285 : vector<1x32xf32>
    %287 = math.tanh %286 : vector<1x32xf32>
    %288 = arith.truncf %287 : vector<1x32xf32> to vector<1x32xbf16>
    %c0_145 = arith.constant 0 : index
    %c0_146 = arith.constant 0 : index
    %289 = vector.load %arg19[%c0_145, %c0_146] : memref<32x2xbf16, #tpu.memory_space<vmem>>, vector<32x2xbf16>
    %cst_147 = arith.constant dense<0.000000e+00> : vector<1x2xf32>
    %290 = tpu.matmul %288, %289, %cst_147 {dimension_numbers = #tpu.dot_dimension_numbers<[1], [0], [0], [1], [0, 0, 1, 1], [], []>} : vector<1x32xbf16>, vector<32x2xbf16>, vector<1x2xf32> -> vector<1x2xf32>
    %c0_148 = arith.constant 0 : index
    %c0_149 = arith.constant 0 : index
    %291 = vector.load %arg20[%c0_148, %c0_149] : memref<1x2xf32, #tpu.memory_space<vmem>>, vector<1x2xf32>
    %292 = arith.addf %290, %291 : vector<1x2xf32>
    %293 = vector.shape_cast %292 : vector<1x2xf32> to vector<1x1x2xf32>
    %c0_150 = arith.constant 0 : index
    %c0_151 = arith.constant 0 : index
    %c0_152 = arith.constant 0 : index
    %294 = vector.load %arg21[%c0_150, %c0_151, %c0_152] : memref<1x1x2xf32, #tpu.memory_space<vmem>>, vector<1x1x2xf32>
    tpu.vector_store %arg21[%c0_150, %c0_151, %c0_152], %293 {strides = array<i32>} : memref<1x1x2xf32, #tpu.memory_space<vmem>>, vector<1x1x2xf32>,
    return
  }
  func.func @transform_0(%arg0: i32) -> (i32, i32, i32) {
    %c0_i32 = arith.constant 0 : i32
    %c0_i32_0 = arith.constant 0 : i32
    %c0_i32_1 = arith.constant 0 : i32
    return %arg0, %c0_i32, %c0_i32_0 : i32, i32, i32
  }
  func.func @transform_1(%arg0: i32) -> (i32, i32, i32) {
    %c0_i32 = arith.constant 0 : i32
    %c0_i32_0 = arith.constant 0 : i32
    %c0_i32_1 = arith.constant 0 : i32
    return %arg0, %c0_i32, %c0_i32_0 : i32, i32, i32
  }
  func.func @transform_2(%arg0: i32) -> (i32, i32) {
    %c0_i32 = arith.constant 0 : i32
    %c0_i32_0 = arith.constant 0 : i32
    %c0_i32_1 = arith.constant 0 : i32
    return %c0_i32, %c0_i32_0 : i32, i32
  }
  func.func @transform_3(%arg0: i32) -> (i32, i32) {
    %c0_i32 = arith.constant 0 : i32
    %c0_i32_0 = arith.constant 0 : i32
    %c0_i32_1 = arith.constant 0 : i32
    return %c0_i32, %c0_i32_0 : i32, i32
  }
  func.func @transform_4(%arg0: i32) -> (i32, i32, i32, i32) {
    %c0_i32 = arith.constant 0 : i32
    %c0_i32_0 = arith.constant 0 : i32
    %c0_i32_1 = arith.constant 0 : i32
    %c0_i32_2 = arith.constant 0 : i32
    %c0_i32_3 = arith.constant 0 : i32
    return %c0_i32, %c0_i32_0, %c0_i32_1, %c0_i32_2 : i32, i32, i32, i32
  }
  func.func @transform_5(%arg0: i32) -> (i32, i32, i32, i32) {
    %c0_i32 = arith.constant 0 : i32
    %c0_i32_0 = arith.constant 0 : i32
    %c0_i32_1 = arith.constant 0 : i32
    %c0_i32_2 = arith.constant 0 : i32
    %c0_i32_3 = arith.constant 0 : i32
    return %c0_i32, %c0_i32_0, %c0_i32_1, %c0_i32_2 : i32, i32, i32, i32
  }
  func.func @transform_6(%arg0: i32) -> (i32, i32, i32, i32) {
    %c0_i32 = arith.constant 0 : i32
    %c0_i32_0 = arith.constant 0 : i32
    %c0_i32_1 = arith.constant 0 : i32
    %c0_i32_2 = arith.constant 0 : i32
    %c0_i32_3 = arith.constant 0 : i32
    return %c0_i32, %c0_i32_0, %c0_i32_1, %c0_i32_2 : i32, i32, i32, i32
  }
  func.func @transform_7(%arg0: i32) -> (i32, i32, i32) {
    %c0_i32 = arith.constant 0 : i32
    %c0_i32_0 = arith.constant 0 : i32
    %c0_i32_1 = arith.constant 0 : i32
    %c0_i32_2 = arith.constant 0 : i32
    return %c0_i32, %c0_i32_0, %c0_i32_1 : i32, i32, i32
  }
  func.func @transform_8(%arg0: i32) -> (i32, i32, i32) {
    %c0_i32 = arith.constant 0 : i32
    %c0_i32_0 = arith.constant 0 : i32
    %c0_i32_1 = arith.constant 0 : i32
    %c0_i32_2 = arith.constant 0 : i32
    return %c0_i32, %c0_i32_0, %c0_i32_1 : i32, i32, i32
  }
  func.func @transform_9(%arg0: i32) -> (i32, i32, i32) {
    %c0_i32 = arith.constant 0 : i32
    %c0_i32_0 = arith.constant 0 : i32
    %c0_i32_1 = arith.constant 0 : i32
    %c0_i32_2 = arith.constant 0 : i32
    return %c0_i32, %c0_i32_0, %c0_i32_1 : i32, i32, i32
  }
  func.func @transform_10(%arg0: i32) -> (i32, i32, i32) {
    %c0_i32 = arith.constant 0 : i32
    %c0_i32_0 = arith.constant 0 : i32
    %c0_i32_1 = arith.constant 0 : i32
    %c0_i32_2 = arith.constant 0 : i32
    return %c0_i32, %c0_i32_0, %c0_i32_1 : i32, i32, i32
  }
  func.func @transform_11(%arg0: i32) -> (i32, i32, i32) {
    %c0_i32 = arith.constant 0 : i32
    %c0_i32_0 = arith.constant 0 : i32
    %c0_i32_1 = arith.constant 0 : i32
    %c0_i32_2 = arith.constant 0 : i32
    return %c0_i32, %c0_i32_0, %c0_i32_1 : i32, i32, i32
  }
  func.func @transform_12(%arg0: i32) -> (i32, i32, i32) {
    %c0_i32 = arith.constant 0 : i32
    %c0_i32_0 = arith.constant 0 : i32
    %c0_i32_1 = arith.constant 0 : i32
    %c0_i32_2 = arith.constant 0 : i32
    return %c0_i32, %c0_i32_0, %c0_i32_1 : i32, i32, i32
  }
  func.func @transform_13(%arg0: i32) -> (i32, i32, i32) {
    %c0_i32 = arith.constant 0 : i32
    %c0_i32_0 = arith.constant 0 : i32
    %c0_i32_1 = arith.constant 0 : i32
    %c0_i32_2 = arith.constant 0 : i32
    return %c0_i32, %c0_i32_0, %c0_i32_1 : i32, i32, i32
  }
  func.func @transform_14(%arg0: i32) -> (i32, i32, i32) {
    %c0_i32 = arith.constant 0 : i32
    %c0_i32_0 = arith.constant 0 : i32
    %c0_i32_1 = arith.constant 0 : i32
    %c0_i32_2 = arith.constant 0 : i32
    return %c0_i32, %c0_i32_0, %c0_i32_1 : i32, i32, i32
  }
  func.func @transform_15(%arg0: i32) -> (i32, i32, i32) {
    %c0_i32 = arith.constant 0 : i32
    %c0_i32_0 = arith.constant 0 : i32
    %c0_i32_1 = arith.constant 0 : i32
    %c0_i32_2 = arith.constant 0 : i32
    return %c0_i32, %c0_i32_0, %c0_i32_1 : i32, i32, i32
  }
  func.func @transform_16(%arg0: i32) -> (i32, i32) {
    %c0_i32 = arith.constant 0 : i32
    %c0_i32_0 = arith.constant 0 : i32
    %c0_i32_1 = arith.constant 0 : i32
    return %c0_i32, %c0_i32_0 : i32, i32
  }
  func.func @transform_17(%arg0: i32) -> (i32, i32) {
    %c0_i32 = arith.constant 0 : i32
    %c0_i32_0 = arith.constant 0 : i32
    %c0_i32_1 = arith.constant 0 : i32
    return %c0_i32, %c0_i32_0 : i32, i32
  }
  func.func @transform_18(%arg0: i32) -> (i32, i32) {
    %c0_i32 = arith.constant 0 : i32
    %c0_i32_0 = arith.constant 0 : i32
    %c0_i32_1 = arith.constant 0 : i32
    return %c0_i32, %c0_i32_0 : i32, i32
  }
  func.func @transform_19(%arg0: i32) -> (i32, i32) {
    %c0_i32 = arith.constant 0 : i32
    %c0_i32_0 = arith.constant 0 : i32
    %c0_i32_1 = arith.constant 0 : i32
    return %c0_i32, %c0_i32_0 : i32, i32
  }
  func.func @transform_20(%arg0: i32) -> (i32, i32, i32) {
    %c0_i32 = arith.constant 0 : i32
    %c0_i32_0 = arith.constant 0 : i32
    %c0_i32_1 = arith.constant 0 : i32
    return %arg0, %c0_i32, %c0_i32_0 : i32, i32, i32
  }
}

</mosaic_0001>

<llo_original>
// kernel: bert_sentiment_forward.1
$region0: #{bert_sentiment_forward.1}
  #allocation0 [shape = 'u32[]', space=smem, size = 0x4, offset = 0x4, fixed_abs, tag = 'smem constant byte address 0x4 - core index']
  #allocation1 [shape = 'u32[144,128]{1,0:T(1,128)}', space=vmem, size = 0x12000, scoped, tag = 'internal scratch']
  %s0 = inlined_call_operand.vmem [shape: f32[2,8,32], index: 0, kind: input, shape index: {}]
  %s1 = inlined_call_operand.vmem [shape: f32[2,1,8], index: 1, kind: input, shape index: {}]
  %s2 = inlined_call_operand.vmem [shape: f32[1,32], index: 2, kind: input, shape index: {}]
  %s3 = inlined_call_operand.vmem [shape: f32[1,32], index: 3, kind: input, shape index: {}]
  %s4 = inlined_call_operand.vmem [shape: bf16[2,6,32,16], index: 4, kind: input, shape index: {}]
  %s5 = inlined_call_operand.vmem [shape: f32[2,6,1,16], index: 5, kind: input, shape index: {}]
  %s6 = inlined_call_operand.vmem [shape: bf16[2,2,16,32], index: 6, kind: input, shape index: {}]
  %s7 = inlined_call_operand.vmem [shape: f32[2,1,32], index: 7, kind: input, shape index: {}]
  %s8 = inlined_call_operand.vmem [shape: f32[2,1,32], index: 8, kind: input, shape index: {}]
  %s9 = inlined_call_operand.vmem [shape: f32[2,1,32], index: 9, kind: input, shape index: {}]
  %s10 = inlined_call_operand.vmem [shape: bf16[2,32,128], index: 10, kind: input, shape index: {}]
  %s11 = inlined_call_operand.vmem [shape: f32[2,1,128], index: 11, kind: input, shape index: {}]
  %s12 = inlined_call_operand.vmem [shape: bf16[2,128,32], index: 12, kind: input, shape index: {}]
  %s13 = inlined_call_operand.vmem [shape: f32[2,1,32], index: 13, kind: input, shape index: {}]
  %s14 = inlined_call_operand.vmem [shape: f32[2,1,32], index: 14, kind: input, shape index: {}]
  %s15 = inlined_call_operand.vmem [shape: f32[2,1,32], index: 15, kind: input, shape index: {}]
  %s16 = inlined_call_operand.vmem [shape: bf16[32,32], index: 16, kind: input, shape index: {}]
  %s17 = inlined_call_operand.vmem [shape: f32[1,32], index: 17, kind: input, shape index: {}]
  %s18 = inlined_call_operand.vmem [shape: bf16[32,2], index: 18, kind: input, shape index: {}]
  %s19 = inlined_call_operand.vmem [shape: f32[1,2], index: 19, kind: input, shape index: {}]
  %s20 = inlined_call_operand.hbm [shape: f32[2,1,2], index: 20, kind: output, shape index: {}]
  %s21 = sld [smem:[#allocation0]]
  $region113: #{bert_sentiment_forward.1} parent=0
    _
  %s23 = ssub.s32 1, %s21
  %s24 = scalar_select 0, %s23, %s21
  $region1: #{bert_sentiment_forward.1} parent=0
    #allocation2 [shape = 'u8[1024]{0}', space=vmem, size = 0x400, scoped, tag = 'output window, operand 0']
    #allocation3 [shape = 's32[2]{0}', space=sflag, size = 0x8, scoped, tag = 'scoped memory for bert_sentiment_forward.1']
    %25 = vsyncpa [#allocation3], 0
    %s26 = scalar_lea.sflag [#allocation3], 1
    %27 = vsyncpa %s26, 0
    loop: start=0, step=1, limit=4
    $region2: #{bert_sentiment_forward.1} parent=1 // loop_pre_header
      _
    $region3: #{bert_sentiment_forward.1} parent=1 // loop_header
      %s29 = sphi 0, %s33
      %p30 = scmp.ge.s32.totalorder %s29, 4
      %s39 = sphi 0, %s41
      %s42 = sphi 0, %s39
      %s43 = sphi 0, %s42
      %s59 = sphi 0, %s43
      %s65 = sphi 0, %s67
      %s68 = sphi 0, %s65
      %s69 = sphi 0, %s68
      %s85 = sphi 0, %s69
      %s89 = sphi 0, %s89
      %s91 = sphi 0, %s89
      %s92 = sphi 0, %s91
      %s106 = sphi 0, %s92
      %s110 = sphi 0, %s110
      %s112 = sphi 0, %s110
      %s113 = sphi 0, %s112
      %s127 = sphi 0, %s113
      %s131 = sphi 0, %s131
      %s133 = sphi 0, %s131
      %s134 = sphi 0, %s133
      %s148 = sphi 0, %s134
      %s152 = sphi 0, %s152
      %s154 = sphi 0, %s152
      %s155 = sphi 0, %s154
      %s169 = sphi 0, %s155
      %s173 = sphi 0, %s173
      %s175 = sphi 0, %s173
      %s176 = sphi 0, %s175
      %s190 = sphi 0, %s176
      %s194 = sphi 0, %s194
      %s196 = sphi 0, %s194
      %s197 = sphi 0, %s196
      %s211 = sphi 0, %s197
      %s215 = sphi 0, %s215
      %s217 = sphi 0, %s215
      %s218 = sphi 0, %s217
      %s232 = sphi 0, %s218
      %s236 = sphi 0, %s236
      %s238 = sphi 0, %s236
      %s239 = sphi 0, %s238
      %s253 = sphi 0, %s239
      %s257 = sphi 0, %s257
      %s259 = sphi 0, %s257
      %s260 = sphi 0, %s259
      %s274 = sphi 0, %s260
      %s278 = sphi 0, %s278
      %s280 = sphi 0, %s278
      %s281 = sphi 0, %s280
      %s295 = sphi 0, %s281
      %s299 = sphi 0, %s299
      %s301 = sphi 0, %s299
      %s302 = sphi 0, %s301
      %s316 = sphi 0, %s302
      %s320 = sphi 0, %s320
      %s322 = sphi 0, %s320
      %s323 = sphi 0, %s322
      %s337 = sphi 0, %s323
      %s341 = sphi 0, %s341
      %s343 = sphi 0, %s341
      %s344 = sphi 0, %s343
      %s358 = sphi 0, %s344
      %s362 = sphi 0, %s362
      %s364 = sphi 0, %s362
      %s365 = sphi 0, %s364
      %s379 = sphi 0, %s365
      %s383 = sphi 0, %s383
      %s385 = sphi 0, %s383
      %s386 = sphi 0, %s385
      %s400 = sphi 0, %s386
      %s404 = sphi 0, %s404
      %s406 = sphi 0, %s404
      %s407 = sphi 0, %s406
      %s421 = sphi 0, %s407
      %s425 = sphi 0, %s425
      %s427 = sphi 0, %s425
      %s428 = sphi 0, %s427
      %s442 = sphi 0, %s428
      %s446 = sphi 0, %s446
      %s448 = sphi 0, %s446
      %s449 = sphi 0, %s448
      %s463 = sphi 0, %s449
      %s469 = sphi 0, %s471
      %s472 = sphi 0, %s469
      %s473 = sphi 0, %s472
      %s489 = sphi 0, %s473
    $region4: #{bert_sentiment_forward.1} parent=1 // loop_header_branch
      %32 = sbr.rel (%p30) target = $region8
    $region5: #{bert_sentiment_forward.1} parent=1 // loop_body
      %s34 = ssub.s32 %s29, 1
      %s35 = ssub.s32 %s29, 2
      %s36 = sadd.s32 %s29, 1
      %s37 = ssub.s32 %s29, %s36
      %p38 = scmp.eq.s32.totalorder %s37, 0
      %s40 = sadd.s32 %s39, 1
      %s41 = scalar_select %p38, %s39, %s40
      %p44 = pneg %p38
      %p45 = scmp.eq.s32.totalorder %s29, 1
      %p46 = por %p44, %p45
      %p47 = scmp.ne.s32.totalorder %s39, %s42
      %p48 = scmp.eq.s32.totalorder %s29, 0
      %p49 = por %p47, %p48
      %p50 = scmp.ne.s32.totalorder %s39, %s42
      %p51 = scmp.eq.s32.totalorder %s34, 1
      %p52 = por %p50, %p51
      %p53 = scmp.ne.s32.totalorder %s42, %s43
      %p54 = scmp.eq.s32.totalorder %s34, 0
      %p55 = por %p53, %p54
      %p56 = scmp.ne.s32.totalorder %s42, %s43
      %p57 = scmp.eq.s32.totalorder %s35, 1
      %p58 = por %p56, %p57
      %p60 = scmp.ne.s32.totalorder %s43, %s59
      %p61 = scmp.eq.s32.totalorder %s35, 0
      %p62 = por %p60, %p61
      %s63 = ssub.s32 %s29, %s36
      %p64 = scmp.eq.s32.totalorder %s63, 0
      %s66 = sadd.s32 %s65, 1
      %s67 = scalar_select %p64, %s65, %s66
      %p70 = pneg %p64
      %p71 = scmp.eq.s32.totalorder %s29, 1
      %p72 = por %p70, %p71
      %p73 = scmp.ne.s32.totalorder %s65, %s68
      %p74 = scmp.eq.s32.totalorder %s29, 0
      %p75 = por %p73, %p74
      %p76 = scmp.ne.s32.totalorder %s65, %s68
      %p77 = scmp.eq.s32.totalorder %s34, 1
      %p78 = por %p76, %p77
      %p79 = scmp.ne.s32.totalorder %s68, %s69
      %p80 = scmp.eq.s32.totalorder %s34, 0
      %p81 = por %p79, %p80
      %p82 = scmp.ne.s32.totalorder %s68, %s69
      %p83 = scmp.eq.s32.totalorder %s35, 1
      %p84 = por %p82, %p83
      %p86 = scmp.ne.s32.totalorder %s69, %s85
      %p87 = scmp.eq.s32.totalorder %s35, 0
      %p88 = por %p86, %p87
      %s90 = sadd.s32 %s89, 1
      %p93 = scmp.eq.s32.totalorder %s29, 1
      %p94 = scmp.ne.s32.totalorder %s89, %s91
      %p95 = scmp.eq.s32.totalorder %s29, 0
      %p96 = por %p94, %p95
      %p97 = scmp.ne.s32.totalorder %s89, %s91
      %p98 = scmp.eq.s32.totalorder %s34, 1
      %p99 = por %p97, %p98
      %p100 = scmp.ne.s32.totalorder %s91, %s92
      %p101 = scmp.eq.s32.totalorder %s34, 0
      %p102 = por %p100, %p101
      %p103 = scmp.ne.s32.totalorder %s91, %s92
      %p104 = scmp.eq.s32.totalorder %s35, 1
      %p105 = por %p103, %p104
      %p107 = scmp.ne.s32.totalorder %s92, %s106
      %p108 = scmp.eq.s32.totalorder %s35, 0
      %p109 = por %p107, %p108
      %s111 = sadd.s32 %s110, 1
      %p114 = scmp.eq.s32.totalorder %s29, 1
      %p115 = scmp.ne.s32.totalorder %s110, %s112
      %p116 = scmp.eq.s32.totalorder %s29, 0
      %p117 = por %p115, %p116
      %p118 = scmp.ne.s32.totalorder %s110, %s112
      %p119 = scmp.eq.s32.totalorder %s34, 1
      %p120 = por %p118, %p119
      %p121 = scmp.ne.s32.totalorder %s112, %s113
      %p122 = scmp.eq.s32.totalorder %s34, 0
      %p123 = por %p121, %p122
      %p124 = scmp.ne.s32.totalorder %s112, %s113
      %p125 = scmp.eq.s32.totalorder %s35, 1
      %p126 = por %p124, %p125
      %p128 = scmp.ne.s32.totalorder %s113, %s127
      %p129 = scmp.eq.s32.totalorder %s35, 0
      %p130 = por %p128, %p129
      %s132 = sadd.s32 %s131, 1
      %p135 = scmp.eq.s32.totalorder %s29, 1
      %p136 = scmp.ne.s32.totalorder %s131, %s133
      %p137 = scmp.eq.s32.totalorder %s29, 0
      %p138 = por %p136, %p137
      %p139 = scmp.ne.s32.totalorder %s131, %s133
      %p140 = scmp.eq.s32.totalorder %s34, 1
      %p141 = por %p139, %p140
      %p142 = scmp.ne.s32.totalorder %s133, %s134
      %p143 = scmp.eq.s32.totalorder %s34, 0
      %p144 = por %p142, %p143
      %p145 = scmp.ne.s32.totalorder %s133, %s134
      %p146 = scmp.eq.s32.totalorder %s35, 1
      %p147 = por %p145, %p146
      %p149 = scmp.ne.s32.totalorder %s134, %s148
      %p150 = scmp.eq.s32.totalorder %s35, 0
      %p151 = por %p149, %p150
      %s153 = sadd.s32 %s152, 1
      %p156 = scmp.eq.s32.totalorder %s29, 1
      %p157 = scmp.ne.s32.totalorder %s152, %s154
      %p158 = scmp.eq.s32.totalorder %s29, 0
      %p159 = por %p157, %p158
      %p160 = scmp.ne.s32.totalorder %s152, %s154
      %p161 = scmp.eq.s32.totalorder %s34, 1
      %p162 = por %p160, %p161
      %p163 = scmp.ne.s32.totalorder %s154, %s155
      %p164 = scmp.eq.s32.totalorder %s34, 0
      %p165 = por %p163, %p164
      %p166 = scmp.ne.s32.totalorder %s154, %s155
      %p167 = scmp.eq.s32.totalorder %s35, 1
      %p168 = por %p166, %p167
      %p170 = scmp.ne.s32.totalorder %s155, %s169
      %p171 = scmp.eq.s32.totalorder %s35, 0
      %p172 = por %p170, %p171
      %s174 = sadd.s32 %s173, 1
      %p177 = scmp.eq.s32.totalorder %s29, 1
      %p178 = scmp.ne.s32.totalorder %s173, %s175
      %p179 = scmp.eq.s32.totalorder %s29, 0
      %p180 = por %p178, %p179
      %p181 = scmp.ne.s32.totalorder %s173, %s175
      %p182 = scmp.eq.s32.totalorder %s34, 1
      %p183 = por %p181, %p182
      %p184 = scmp.ne.s32.totalorder %s175, %s176
      %p185 = scmp.eq.s32.totalorder %s34, 0
      %p186 = por %p184, %p185
      %p187 = scmp.ne.s32.totalorder %s175, %s176
      %p188 = scmp.eq.s32.totalorder %s35, 1
      %p189 = por %p187, %p188
      %p191 = scmp.ne.s32.totalorder %s176, %s190
      %p192 = scmp.eq.s32.totalorder %s35, 0
      %p193 = por %p191, %p192
      %s195 = sadd.s32 %s194, 1
      %p198 = scmp.eq.s32.totalorder %s29, 1
      %p199 = scmp.ne.s32.totalorder %s194, %s196
      %p200 = scmp.eq.s32.totalorder %s29, 0
      %p201 = por %p199, %p200
      %p202 = scmp.ne.s32.totalorder %s194, %s196
      %p203 = scmp.eq.s32.totalorder %s34, 1
      %p204 = por %p202, %p203
      %p205 = scmp.ne.s32.totalorder %s196, %s197
      %p206 = scmp.eq.s32.totalorder %s34, 0
      %p207 = por %p205, %p206
      %p208 = scmp.ne.s32.totalorder %s196, %s197
      %p209 = scmp.eq.s32.totalorder %s35, 1
      %p210 = por %p208, %p209
      %p212 = scmp.ne.s32.totalorder %s197, %s211
      %p213 = scmp.eq.s32.totalorder %s35, 0
      %p214 = por %p212, %p213
      %s216 = sadd.s32 %s215, 1
      %p219 = scmp.eq.s32.totalorder %s29, 1
      %p220 = scmp.ne.s32.totalorder %s215, %s217
      %p221 = scmp.eq.s32.totalorder %s29, 0
      %p222 = por %p220, %p221
      %p223 = scmp.ne.s32.totalorder %s215, %s217
      %p224 = scmp.eq.s32.totalorder %s34, 1
      %p225 = por %p223, %p224
      %p226 = scmp.ne.s32.totalorder %s217, %s218
      %p227 = scmp.eq.s32.totalorder %s34, 0
      %p228 = por %p226, %p227
      %p229 = scmp.ne.s32.totalorder %s217, %s218
      %p230 = scmp.eq.s32.totalorder %s35, 1
      %p231 = por %p229, %p230
      %p233 = scmp.ne.s32.totalorder %s218, %s232
      %p234 = scmp.eq.s32.totalorder %s35, 0
      %p235 = por %p233, %p234
      %s237 = sadd.s32 %s236, 1
      %p240 = scmp.eq.s32.totalorder %s29, 1
      %p241 = scmp.ne.s32.totalorder %s236, %s238
      %p242 = scmp.eq.s32.totalorder %s29, 0
      %p243 = por %p241, %p242
      %p244 = scmp.ne.s32.totalorder %s236, %s238
      %p245 = scmp.eq.s32.totalorder %s34, 1
      %p246 = por %p244, %p245
      %p247 = scmp.ne.s32.totalorder %s238, %s239
      %p248 = scmp.eq.s32.totalorder %s34, 0
      %p249 = por %p247, %p248
      %p250 = scmp.ne.s32.totalorder %s238, %s239
      %p251 = scmp.eq.s32.totalorder %s35, 1
      %p252 = por %p250, %p251
      %p254 = scmp.ne.s32.totalorder %s239, %s253
      %p255 = scmp.eq.s32.totalorder %s35, 0
      %p256 = por %p254, %p255
      %s258 = sadd.s32 %s257, 1
      %p261 = scmp.eq.s32.totalorder %s29, 1
      %p262 = scmp.ne.s32.totalorder %s257, %s259
      %p263 = scmp.eq.s32.totalorder %s29, 0
      %p264 = por %p262, %p263
      %p265 = scmp.ne.s32.totalorder %s257, %s259
      %p266 = scmp.eq.s32.totalorder %s34, 1
      %p267 = por %p265, %p266
      %p268 = scmp.ne.s32.totalorder %s259, %s260
      %p269 = scmp.eq.s32.totalorder %s34, 0
      %p270 = por %p268, %p269
      %p271 = scmp.ne.s32.totalorder %s259, %s260
      %p272 = scmp.eq.s32.totalorder %s35, 1
      %p273 = por %p271, %p272
      %p275 = scmp.ne.s32.totalorder %s260, %s274
      %p276 = scmp.eq.s32.totalorder %s35, 0
      %p277 = por %p275, %p276
      %s279 = sadd.s32 %s278, 1
      %p282 = scmp.eq.s32.totalorder %s29, 1
      %p283 = scmp.ne.s32.totalorder %s278, %s280
      %p284 = scmp.eq.s32.totalorder %s29, 0
      %p285 = por %p283, %p284
      %p286 = scmp.ne.s32.totalorder %s278, %s280
      %p287 = scmp.eq.s32.totalorder %s34, 1
      %p288 = por %p286, %p287
      %p289 = scmp.ne.s32.totalorder %s280, %s281
      %p290 = scmp.eq.s32.totalorder %s34, 0
      %p291 = por %p289, %p290
      %p292 = scmp.ne.s32.totalorder %s280, %s281
      %p293 = scmp.eq.s32.totalorder %s35, 1
      %p294 = por %p292, %p293
      %p296 = scmp.ne.s32.totalorder %s281, %s295
      %p297 = scmp.eq.s32.totalorder %s35, 0
      %p298 = por %p296, %p297
      %s300 = sadd.s32 %s299, 1
      %p303 = scmp.eq.s32.totalorder %s29, 1
      %p304 = scmp.ne.s32.totalorder %s299, %s301
      %p305 = scmp.eq.s32.totalorder %s29, 0
      %p306 = por %p304, %p305
      %p307 = scmp.ne.s32.totalorder %s299, %s301
      %p308 = scmp.eq.s32.totalorder %s34, 1
      %p309 = por %p307, %p308
      %p310 = scmp.ne.s32.totalorder %s301, %s302
      %p311 = scmp.eq.s32.totalorder %s34, 0
      %p312 = por %p310, %p311
      %p313 = scmp.ne.s32.totalorder %s301, %s302
      %p314 = scmp.eq.s32.totalorder %s35, 1
      %p315 = por %p313, %p314
      %p317 = scmp.ne.s32.totalorder %s302, %s316
      %p318 = scmp.eq.s32.totalorder %s35, 0
      %p319 = por %p317, %p318
      %s321 = sadd.s32 %s320, 1
      %p324 = scmp.eq.s32.totalorder %s29, 1
      %p325 = scmp.ne.s32.totalorder %s320, %s322
      %p326 = scmp.eq.s32.totalorder %s29, 0
      %p327 = por %p325, %p326
      %p328 = scmp.ne.s32.totalorder %s320, %s322
      %p329 = scmp.eq.s32.totalorder %s34, 1
      %p330 = por %p328, %p329
      %p331 = scmp.ne.s32.totalorder %s322, %s323
      %p332 = scmp.eq.s32.totalorder %s34, 0
      %p333 = por %p331, %p332
      %p334 = scmp.ne.s32.totalorder %s322, %s323
      %p335 = scmp.eq.s32.totalorder %s35, 1
      %p336 = por %p334, %p335
      %p338 = scmp.ne.s32.totalorder %s323, %s337
      %p339 = scmp.eq.s32.totalorder %s35, 0
      %p340 = por %p338, %p339
      %s342 = sadd.s32 %s341, 1
      %p345 = scmp.eq.s32.totalorder %s29, 1
      %p346 = scmp.ne.s32.totalorder %s341, %s343
      %p347 = scmp.eq.s32.totalorder %s29, 0
      %p348 = por %p346, %p347
      %p349 = scmp.ne.s32.totalorder %s341, %s343
      %p350 = scmp.eq.s32.totalorder %s34, 1
      %p351 = por %p349, %p350
      %p352 = scmp.ne.s32.totalorder %s343, %s344
      %p353 = scmp.eq.s32.totalorder %s34, 0
      %p354 = por %p352, %p353
      %p355 = scmp.ne.s32.totalorder %s343, %s344
      %p356 = scmp.eq.s32.totalorder %s35, 1
      %p357 = por %p355, %p356
      %p359 = scmp.ne.s32.totalorder %s344, %s358
      %p360 = scmp.eq.s32.totalorder %s35, 0
      %p361 = por %p359, %p360
      %s363 = sadd.s32 %s362, 1
      %p366 = scmp.eq.s32.totalorder %s29, 1
      %p367 = scmp.ne.s32.totalorder %s362, %s364
      %p368 = scmp.eq.s32.totalorder %s29, 0
      %p369 = por %p367, %p368
      %p370 = scmp.ne.s32.totalorder %s362, %s364
      %p371 = scmp.eq.s32.totalorder %s34, 1
      %p372 = por %p370, %p371
      %p373 = scmp.ne.s32.totalorder %s364, %s365
      %p374 = scmp.eq.s32.totalorder %s34, 0
      %p375 = por %p373, %p374
      %p376 = scmp.ne.s32.totalorder %s364, %s365
      %p377 = scmp.eq.s32.totalorder %s35, 1
      %p378 = por %p376, %p377
      %p380 = scmp.ne.s32.totalorder %s365, %s379
      %p381 = scmp.eq.s32.totalorder %s35, 0
      %p382 = por %p380, %p381
      %s384 = sadd.s32 %s383, 1
      %p387 = scmp.eq.s32.totalorder %s29, 1
      %p388 = scmp.ne.s32.totalorder %s383, %s385
      %p389 = scmp.eq.s32.totalorder %s29, 0
      %p390 = por %p388, %p389
      %p391 = scmp.ne.s32.totalorder %s383, %s385
      %p392 = scmp.eq.s32.totalorder %s34, 1
      %p393 = por %p391, %p392
      %p394 = scmp.ne.s32.totalorder %s385, %s386
      %p395 = scmp.eq.s32.totalorder %s34, 0
      %p396 = por %p394, %p395
      %p397 = scmp.ne.s32.totalorder %s385, %s386
      %p398 = scmp.eq.s32.totalorder %s35, 1
      %p399 = por %p397, %p398
      %p401 = scmp.ne.s32.totalorder %s386, %s400
      %p402 = scmp.eq.s32.totalorder %s35, 0
      %p403 = por %p401, %p402
      %s405 = sadd.s32 %s404, 1
      %p408 = scmp.eq.s32.totalorder %s29, 1
      %p409 = scmp.ne.s32.totalorder %s404, %s406
      %p410 = scmp.eq.s32.totalorder %s29, 0
      %p411 = por %p409, %p410
      %p412 = scmp.ne.s32.totalorder %s404, %s406
      %p413 = scmp.eq.s32.totalorder %s34, 1
      %p414 = por %p412, %p413
      %p415 = scmp.ne.s32.totalorder %s406, %s407
      %p416 = scmp.eq.s32.totalorder %s34, 0
      %p417 = por %p415, %p416
      %p418 = scmp.ne.s32.totalorder %s406, %s407
      %p419 = scmp.eq.s32.totalorder %s35, 1
      %p420 = por %p418, %p419
      %p422 = scmp.ne.s32.totalorder %s407, %s421
      %p423 = scmp.eq.s32.totalorder %s35, 0
      %p424 = por %p422, %p423
      %s426 = sadd.s32 %s425, 1
      %p429 = scmp.eq.s32.totalorder %s29, 1
      %p430 = scmp.ne.s32.totalorder %s425, %s427
      %p431 = scmp.eq.s32.totalorder %s29, 0
      %p432 = por %p430, %p431
      %p433 = scmp.ne.s32.totalorder %s425, %s427
      %p434 = scmp.eq.s32.totalorder %s34, 1
      %p435 = por %p433, %p434
      %p436 = scmp.ne.s32.totalorder %s427, %s428
      %p437 = scmp.eq.s32.totalorder %s34, 0
      %p438 = por %p436, %p437
      %p439 = scmp.ne.s32.totalorder %s427, %s428
      %p440 = scmp.eq.s32.totalorder %s35, 1
      %p441 = por %p439, %p440
      %p443 = scmp.ne.s32.totalorder %s428, %s442
      %p444 = scmp.eq.s32.totalorder %s35, 0
      %p445 = por %p443, %p444
      %s447 = sadd.s32 %s446, 1
      %p450 = scmp.eq.s32.totalorder %s29, 1
      %p451 = scmp.ne.s32.totalorder %s446, %s448
      %p452 = scmp.eq.s32.totalorder %s29, 0
      %p453 = por %p451, %p452
      %p454 = scmp.ne.s32.totalorder %s446, %s448
      %p455 = scmp.eq.s32.totalorder %s34, 1
      %p456 = por %p454, %p455
      %p457 = scmp.ne.s32.totalorder %s448, %s449
      %p458 = scmp.eq.s32.totalorder %s34, 0
      %p459 = por %p457, %p458
      %p460 = scmp.ne.s32.totalorder %s448, %s449
      %p461 = scmp.eq.s32.totalorder %s35, 1
      %p462 = por %p460, %p461
      %p464 = scmp.ne.s32.totalorder %s449, %s463
      %p465 = scmp.eq.s32.totalorder %s35, 0
      %p466 = por %p464, %p465
      %s467 = ssub.s32 %s29, %s36
      %p468 = scmp.eq.s32.totalorder %s467, 0
      %s470 = sadd.s32 %s469, 1
      %s471 = scalar_select %p468, %s469, %s470
      %p474 = pneg %p468
      %p475 = scmp.eq.s32.totalorder %s29, 1
      %p476 = por %p474, %p475
      %p477 = scmp.ne.s32.totalorder %s469, %s472
      %p478 = scmp.eq.s32.totalorder %s29, 0
      %p479 = por %p477, %p478
      %p480 = scmp.ne.s32.totalorder %s469, %s472
      %p481 = scmp.eq.s32.totalorder %s34, 1
      %p482 = por %p480, %p481
      %p483 = scmp.ne.s32.totalorder %s472, %s473
      %p484 = scmp.eq.s32.totalorder %s34, 0
      %p485 = por %p483, %p484
      %p486 = scmp.ne.s32.totalorder %s472, %s473
      %p487 = scmp.eq.s32.totalorder %s35, 1
      %p488 = por %p486, %p487
      %p490 = scmp.ne.s32.totalorder %s473, %s489
      %p491 = scmp.eq.s32.totalorder %s35, 0
      %p492 = por %p490, %p491
      %p493 = scmp.le.s32.totalorder 1, %s29
      %p494 = scmp.lt.s32.totalorder %s29, 3
      %p495 = pnand %p493, %p494
      %p496 = pneg %p495
      // Predicated region
      $region9: #{bert_sentiment_forward.1} parent=5 // pred_check
        _
      $region10: #{bert_sentiment_forward.1} parent=5 // pred_check_branch
        %498 = sbr.rel (%p495) target = $region12
      $region11: #{bert_sentiment_forward.1} parent=5 // pred_region
        %s499 = ssub.s32 %s29, 1
        // Predicated region
        $region13: #{bert_sentiment_forward.1} parent=11 // pred_check
          %p500 = pneg %p102
        $region14: #{bert_sentiment_forward.1} parent=11 // pred_check_branch
          %502 = sbr.rel (%p500) target = $region16
        $region15: #{bert_sentiment_forward.1} parent=11 // pred_region
          _
        $region16: #{bert_sentiment_forward.1} parent=11 // pred_fallthru
          _
        // Predicated region
        $region17: #{bert_sentiment_forward.1} parent=11 // pred_check
          %p503 = pneg %p123
        $region18: #{bert_sentiment_forward.1} parent=11 // pred_check_branch
          %505 = sbr.rel (%p503) target = $region20
        $region19: #{bert_sentiment_forward.1} parent=11 // pred_region
          _
        $region20: #{bert_sentiment_forward.1} parent=11 // pred_fallthru
          _
        // Predicated region
        $region21: #{bert_sentiment_forward.1} parent=11 // pred_check
          %p506 = pneg %p144
        $region22: #{bert_sentiment_forward.1} parent=11 // pred_check_branch
          %508 = sbr.rel (%p506) target = $region24
        $region23: #{bert_sentiment_forward.1} parent=11 // pred_region
          _
        $region24: #{bert_sentiment_forward.1} parent=11 // pred_fallthru
          _
        // Predicated region
        $region25: #{bert_sentiment_forward.1} parent=11 // pred_check
          %p509 = pneg %p165
        $region26: #{bert_sentiment_forward.1} parent=11 // pred_check_branch
          %511 = sbr.rel (%p509) target = $region28
        $region27: #{bert_sentiment_forward.1} parent=11 // pred_region
          _
        $region28: #{bert_sentiment_forward.1} parent=11 // pred_fallthru
          _
        // Predicated region
        $region29: #{bert_sentiment_forward.1} parent=11 // pred_check
          %p512 = pneg %p186
        $region30: #{bert_sentiment_forward.1} parent=11 // pred_check_branch
          %514 = sbr.rel (%p512) target = $region32
        $region31: #{bert_sentiment_forward.1} parent=11 // pred_region
          _
        $region32: #{bert_sentiment_forward.1} parent=11 // pred_fallthru
          _
        // Predicated region
        $region33: #{bert_sentiment_forward.1} parent=11 // pred_check
          %p515 = pneg %p207
        $region34: #{bert_sentiment_forward.1} parent=11 // pred_check_branch
          %517 = sbr.rel (%p515) target = $region36
        $region35: #{bert_sentiment_forward.1} parent=11 // pred_region
          _
        $region36: #{bert_sentiment_forward.1} parent=11 // pred_fallthru
          _
        // Predicated region
        $region37: #{bert_sentiment_forward.1} parent=11 // pred_check
          %p518 = pneg %p228
        $region38: #{bert_sentiment_forward.1} parent=11 // pred_check_branch
          %520 = sbr.rel (%p518) target = $region40
        $region39: #{bert_sentiment_forward.1} parent=11 // pred_region
          _
        $region40: #{bert_sentiment_forward.1} parent=11 // pred_fallthru
          _
        // Predicated region
        $region41: #{bert_sentiment_forward.1} parent=11 // pred_check
          %p521 = pneg %p249
        $region42: #{bert_sentiment_forward.1} parent=11 // pred_check_branch
          %523 = sbr.rel (%p521) target = $region44
        $region43: #{bert_sentiment_forward.1} parent=11 // pred_region
          _
        $region44: #{bert_sentiment_forward.1} parent=11 // pred_fallthru
          _
        // Predicated region
        $region45: #{bert_sentiment_forward.1} parent=11 // pred_check
          %p524 = pneg %p270
        $region46: #{bert_sentiment_forward.1} parent=11 // pred_check_branch
          %526 = sbr.rel (%p524) target = $region48
        $region47: #{bert_sentiment_forward.1} parent=11 // pred_region
          _
        $region48: #{bert_sentiment_forward.1} parent=11 // pred_fallthru
          _
        // Predicated region
        $region49: #{bert_sentiment_forward.1} parent=11 // pred_check
          %p527 = pneg %p291
        $region50: #{bert_sentiment_forward.1} parent=11 // pred_check_branch
          %529 = sbr.rel (%p527) target = $region52
        $region51: #{bert_sentiment_forward.1} parent=11 // pred_region
          _
        $region52: #{bert_sentiment_forward.1} parent=11 // pred_fallthru
          _
        // Predicated region
        $region53: #{bert_sentiment_forward.1} parent=11 // pred_check
          %p530 = pneg %p312
        $region54: #{bert_sentiment_forward.1} parent=11 // pred_check_branch
          %532 = sbr.rel (%p530) target = $region56
        $region55: #{bert_sentiment_forward.1} parent=11 // pred_region
          _
        $region56: #{bert_sentiment_forward.1} parent=11 // pred_fallthru
          _
        // Predicated region
        $region57: #{bert_sentiment_forward.1} parent=11 // pred_check
          %p533 = pneg %p333
        $region58: #{bert_sentiment_forward.1} parent=11 // pred_check_branch
          %535 = sbr.rel (%p533) target = $region60
        $region59: #{bert_sentiment_forward.1} parent=11 // pred_region
          _
        $region60: #{bert_sentiment_forward.1} parent=11 // pred_fallthru
          _
        // Predicated region
        $region61: #{bert_sentiment_forward.1} parent=11 // pred_check
          %p536 = pneg %p354
        $region62: #{bert_sentiment_forward.1} parent=11 // pred_check_branch
          %538 = sbr.rel (%p536) target = $region64
        $region63: #{bert_sentiment_forward.1} parent=11 // pred_region
          _
        $region64: #{bert_sentiment_forward.1} parent=11 // pred_fallthru
          _
        // Predicated region
        $region65: #{bert_sentiment_forward.1} parent=11 // pred_check
          %p539 = pneg %p375
        $region66: #{bert_sentiment_forward.1} parent=11 // pred_check_branch
          %541 = sbr.rel (%p539) target = $region68
        $region67: #{bert_sentiment_forward.1} parent=11 // pred_region
          _
        $region68: #{bert_sentiment_forward.1} parent=11 // pred_fallthru
          _
        // Predicated region
        $region69: #{bert_sentiment_forward.1} parent=11 // pred_check
          %p542 = pneg %p396
        $region70: #{bert_sentiment_forward.1} parent=11 // pred_check_branch
          %544 = sbr.rel (%p542) target = $region72
        $region71: #{bert_sentiment_forward.1} parent=11 // pred_region
          _
        $region72: #{bert_sentiment_forward.1} parent=11 // pred_fallthru
          _
        // Predicated region
        $region73: #{bert_sentiment_forward.1} parent=11 // pred_check
          %p545 = pneg %p417
        $region74: #{bert_sentiment_forward.1} parent=11 // pred_check_branch
          %547 = sbr.rel (%p545) target = $region76
        $region75: #{bert_sentiment_forward.1} parent=11 // pred_region
          _
        $region76: #{bert_sentiment_forward.1} parent=11 // pred_fallthru
          _
        // Predicated region
        $region77: #{bert_sentiment_forward.1} parent=11 // pred_check
          %p548 = pneg %p438
        $region78: #{bert_sentiment_forward.1} parent=11 // pred_check_branch
          %550 = sbr.rel (%p548) target = $region80
        $region79: #{bert_sentiment_forward.1} parent=11 // pred_region
          _
        $region80: #{bert_sentiment_forward.1} parent=11 // pred_fallthru
          _
        // Predicated region
        $region81: #{bert_sentiment_forward.1} parent=11 // pred_check
          %p551 = pneg %p459
        $region82: #{bert_sentiment_forward.1} parent=11 // pred_check_branch
          %553 = sbr.rel (%p551) target = $region84
        $region83: #{bert_sentiment_forward.1} parent=11 // pred_region
          _
        $region84: #{bert_sentiment_forward.1} parent=11 // pred_fallthru
          _
      $region12: #{bert_sentiment_forward.1} parent=5 // pred_fallthru
        _
      %p554 = scmp.lt.s32.totalorder %s29, 2
      // Predicated region
      $region85: #{bert_sentiment_forward.1} parent=5 // pred_check
        %p555 = pneg %p554
      $region86: #{bert_sentiment_forward.1} parent=5 // pred_check_branch
        %557 = sbr.rel (%p555) target = $region88
      $region87: #{bert_sentiment_forward.1} parent=5 // pred_region
        // Predicated region
        $region89: #{bert_sentiment_forward.1} parent=87 // pred_check
          %p558 = pneg %p49
        $region90: #{bert_sentiment_forward.1} parent=87 // pred_check_branch
          %560 = sbr.rel (%p558) target = $region92
        $region91: #{bert_sentiment_forward.1} parent=87 // pred_region
          %p561 = scmp.lt.s32.totalorder %s29, 1
          %s562 = scalar_select %p561, %s29, 1
          %s563 = smul.addr %s562, 8
          %s564 = scalar_lea.vmem %s0, %s563
        $region92: #{bert_sentiment_forward.1} parent=87 // pred_fallthru
          _
        // Predicated region
        $region93: #{bert_sentiment_forward.1} parent=87 // pred_check
          %p565 = pneg %p75
        $region94: #{bert_sentiment_forward.1} parent=87 // pred_check_branch
          %567 = sbr.rel (%p565) target = $region96
        $region95: #{bert_sentiment_forward.1} parent=87 // pred_region
          %p568 = scmp.lt.s32.totalorder %s29, 1
          %s569 = scalar_select %p568, %s29, 1
          %s570 = scalar_lea.vmem %s1, %s569
        $region96: #{bert_sentiment_forward.1} parent=87 // pred_fallthru
          _
      $region88: #{bert_sentiment_forward.1} parent=5 // pred_fallthru
        _
      %p571 = scmp.le.s32.totalorder 1, %s29
      %p572 = scmp.lt.s32.totalorder %s29, 3
      %p573 = pnand %p571, %p572
      %p574 = pneg %p573
      // Predicated region
      $region97: #{bert_sentiment_forward.1} parent=5 // pred_check
        _
      $region98: #{bert_sentiment_forward.1} parent=5 // pred_check_branch
        %576 = sbr.rel (%p573) target = $region100
      $region99: #{bert_sentiment_forward.1} parent=5 // pred_region
        %s577 = ssub.s32 %s29, 1
        %p578 = scmp.lt.s32.totalorder %s34, 1
        %s579 = scalar_select %p578, %s34, 1
        %s580 = smul.addr %s579, 8
        %s581 = scalar_lea.vmem %s0, %s580
        %p582 = pneg %p55
        %p583 = pneg %p52
        %p584 = scmp.lt.s32.totalorder %s34, 1
        %s585 = scalar_select %p584, %s34, 1
        %s586 = scalar_lea.vmem %s1, %s585
        %p587 = pneg %p81
        %p588 = pneg %p78
        %p589 = pneg %p102
        %p590 = pneg %p99
        %p591 = pneg %p123
        %p592 = pneg %p120
        %p593 = pneg %p144
        %p594 = pneg %p141
        %p595 = pneg %p165
        %p596 = pneg %p162
        %p597 = pneg %p186
        %p598 = pneg %p183
        %p599 = pneg %p207
        %p600 = pneg %p204
        %p601 = pneg %p228
        %p602 = pneg %p225
        %p603 = pneg %p249
        %p604 = pneg %p246
        %p605 = pneg %p270
        %p606 = pneg %p267
        %p607 = pneg %p291
        %p608 = pneg %p288
        %p609 = pneg %p312
        %p610 = pneg %p309
        %p611 = pneg %p333
        %p612 = pneg %p330
        %p613 = pneg %p354
        %p614 = pneg %p351
        %p615 = pneg %p375
        %p616 = pneg %p372
        %p617 = pneg %p396
        %p618 = pneg %p393
        %p619 = pneg %p417
        %p620 = pneg %p414
        %p621 = pneg %p438
        %p622 = pneg %p435
        %p623 = pneg %p459
        %p624 = pneg %p456
        %p625 = pneg %p485
        %p626 = pneg %p482
        %s627 = sand.u32 %s472, 1
        %s628 = scalar_lea.sflag [#allocation3], %s627
        %s629 = sand.u32 %s472, 1
        %s630 = scalar_lea.vmem [#allocation2], %s629
        %p631 = scmp.lt.s32.totalorder %s34, 1
        %s632 = scalar_select %p631, %s34, 1
        %s633 = smul.addr %s632, 8
        %s634 = scalar_lea.vmem %s0, %s633
        %p635 = scmp.lt.s32.totalorder %s34, 1
        %s636 = scalar_select %p635, %s34, 1
        %s637 = scalar_lea.vmem %s1, %s636
        %v639 = vld [vmem:[%s637] sm:$0x1]
        %v640 = vsub.f32 1.0, %v639
        %v641 = vmul.f32 %v640, -1e+09
        %v642 = vld [vmem:[%s634] sm:$0xff]
        %v643 = vld [vmem:[%s2] sm:$0x1]
        %v644 = vld [vmem:[%s3] sm:$0x1]
        %vm645 = vcmask 261120
        %v646 = vsel %vm645, %v642, 0.0
        %647 = vadd.xlane.f32.xlu0 %v646
        %v648 = vpop.xlane.xlu0 %647
        %v649 = vrcp.pop 32.0
        %v650 = vmul.f32 %v648, %v649
        %v651 = vsub.f32 %v642, %v650
        %v652 = vmul.f32 %v651, %v651
        %v653 = vsel %vm645, %v652, 0.0
        %654 = vadd.xlane.f32.xlu0 %v653
        %v655 = vpop.xlane.xlu0 %654
        %v656 = vmul.f32 %v655, %v649
        %v657 = vadd.f32 %v656, 1e-12
        %v658 = vrsqrt.pop %v657
        %v659 = vmul.f32 %v651, %v658
        %v661 = vlaneseq
        %v662 = vshrl.u32 %v661, 7
        %v663 = vsub.s32 0, %v662
        %v664 = vrot.slane %v643, %v663
        %v666 = vmul.f32 %v659, %v664
        %v668 = vlaneseq
        %v669 = vshrl.u32 %v668, 7
        %v670 = vsub.s32 0, %v669
        %v671 = vrot.slane %v644, %v670
        %v673 = vadd.f32 %v666, %v671
        %v674 = vpack.c.bf16 %v673, %v673
        %v675 = vld [vmem:[%s4] sm:$0xf]
        %v676 = vld [vmem:[%s4 + $0x4] sm:$0xf]
        %v677 = vld [vmem:[%s4 + $0x8] sm:$0xf]
        %v678 = vld [vmem:[%s4 + $0xc] sm:$0xf]
        %v679 = vld [vmem:[%s4 + $0x10] sm:$0xf]
        %v680 = vld [vmem:[%s4 + $0x14] sm:$0xf]
        %v681 = vld [vmem:[%s4 + $0x18] sm:$0xf]
        %v682 = vld [vmem:[%s4 + $0x1c] sm:$0xf]
        %v683 = vld [vmem:[%s4 + $0x20] sm:$0xf]
        %v684 = vld [vmem:[%s4 + $0x24] sm:$0xf]
        %v685 = vld [vmem:[%s4 + $0x28] sm:$0xf]
        %v686 = vld [vmem:[%s4 + $0x2c] sm:$0xf]
        %v687 = vld [vmem:[%s4 + $0x30] sm:$0xf]
        %v688 = vld [vmem:[%s4 + $0x34] sm:$0xf]
        %v689 = vld [vmem:[%s4 + $0x38] sm:$0xf]
        %v690 = vld [vmem:[%s4 + $0x3c] sm:$0xf]
        %v691 = vld [vmem:[%s4 + $0x40] sm:$0xf]
        %v692 = vld [vmem:[%s4 + $0x44] sm:$0xf]
        %v693 = vld [vmem:[%s4 + $0x48] sm:$0xf]
        %v694 = vld [vmem:[%s4 + $0x4c] sm:$0xf]
        %v695 = vld [vmem:[%s4 + $0x50] sm:$0xf]
        %v696 = vld [vmem:[%s4 + $0x54] sm:$0xf]
        %v697 = vld [vmem:[%s4 + $0x58] sm:$0xf]
        %v698 = vld [vmem:[%s4 + $0x5c] sm:$0xf]
        %v699 = vld [vmem:[%s5] sm:$0x1]
        %v700 = vld [vmem:[%s5 + $0x1] sm:$0x1]
        %v701 = vld [vmem:[%s5 + $0x2] sm:$0x1]
        %v702 = vld [vmem:[%s5 + $0x3] sm:$0x1]
        %v703 = vld [vmem:[%s5 + $0x4] sm:$0x1]
        %v704 = vld [vmem:[%s5 + $0x5] sm:$0x1]
        %v711 = vlaneseq
        %v712 = vshrl.u32 %v711, 7
        %v713 = vsub.s32 0, %v712
        %v714 = vrot.slane %v699, %v713
        %v715 = vlaneseq
        %v716 = vshrl.u32 %v715, 7
        %v717 = vsub.s32 0, %v716
        %v718 = vrot.slane %v700, %v717
        %v719 = vlaneseq
        %v720 = vshrl.u32 %v719, 7
        %v721 = vsub.s32 0, %v720
        %v722 = vrot.slane %v701, %v721
        %v723 = vlaneseq
        %v724 = vshrl.u32 %v723, 7
        %v725 = vsub.s32 0, %v724
        %v726 = vrot.slane %v702, %v725
        %v727 = vlaneseq
        %v728 = vshrl.u32 %v727, 7
        %v729 = vsub.s32 0, %v728
        %v730 = vrot.slane %v703, %v729
        %v731 = vlaneseq
        %v732 = vshrl.u32 %v731, 7
        %v733 = vsub.s32 0, %v732
        %v734 = vrot.slane %v704, %v733
        %v745 = vunpack.c.l.b16 %v675
        %v746 = vunpack.c.l.b16 %v676
        %v747 = vunpack.c.l.b16 %v677
        %v748 = vunpack.c.l.b16 %v678
        %v749 = vpack.c.b16 %v746, %v745
        %v750 = vpack.c.b16 %v748, %v747
        %v754 = vsel %vm645, %v674, 0
        %756 = vmatprep.subr.bf16.mxu0 0
        %757 = vmatpush1.bf16.msra.mxu0 %v749
        %758 = vmatprep.subr.bf16.mxu0 0
        %759 = vmatpush1.bf16.msra.mxu0 %v750
        %760 = vmatprep.subr.bf16.mxu0 0
        %761 = vmatpush1.bf16.msra.mxu0 0
        %762 = vmatprep.subr.bf16.mxu0 0
        %763 = vmatpush1.bf16.msra.mxu0 0
        %764 = vmatprep.subr.bf16.mxu0 0
        %765 = vmatpush1.bf16.msra.mxu0 0
        %766 = vmatprep.subr.bf16.mxu0 0
        %767 = vmatpush1.bf16.msra.mxu0 0
        %768 = vmatprep.subr.bf16.mxu0 0
        %769 = vmatpush1.bf16.msra.mxu0 0
        %770 = vmatprep.subr.bf16.mxu0 0
        %771 = vmatpush1.bf16.msra.mxu0 0
        %772 = vmatprep.subr.bf16.mxu0 0
        %773 = vmatpush1.bf16.msra.mxu0 0
        %774 = vmatprep.subr.bf16.mxu0 0
        %775 = vmatpush1.bf16.msra.mxu0 0
        %776 = vmatprep.subr.bf16.mxu0 0
        %777 = vmatpush1.bf16.msra.mxu0 0
        %778 = vmatprep.subr.bf16.mxu0 0
        %779 = vmatpush1.bf16.msra.mxu0 0
        %780 = vmatprep.subr.bf16.mxu0 0
        %781 = vmatpush1.bf16.msra.mxu0 0
        %782 = vmatprep.subr.bf16.mxu0 0
        %783 = vmatpush1.bf16.msra.mxu0 0
        %784 = vmatprep.subr.bf16.mxu0 0
        %785 = vmatpush1.bf16.msra.mxu0 0
        %786 = vmatprep.subr.bf16.mxu0 0
        %787 = vmatpush1.bf16.msra.mxu0 0
        %788 = vmatprep.mubr.bf16.mxu0 0
        %789 = vmatmul.mubr.bf16.gmra.mrb[0].mxu0 %v754
        %v790 = vpop.f32.mrb[0].mxu0
        %v791 = vadd.f32 %v714, %v790
        %v792 = vpop.f32.mrb[0].mxu0
        %v793 = vpop.f32.mrb[0].mxu0
        %v794 = vpop.f32.mrb[0].mxu0
        %795 = vdwg.mxu0
        %v800 = vunpack.c.l.b16 %v679
        %v801 = vunpack.c.l.b16 %v680
        %v802 = vunpack.c.l.b16 %v681
        %v803 = vunpack.c.l.b16 %v682
        %v804 = vpack.c.b16 %v801, %v800
        %v805 = vpack.c.b16 %v803, %v802
        %808 = vmatprep.subr.bf16.mxu0 0
        %809 = vmatpush1.bf16.msra.mxu0 %v804
        %810 = vmatprep.subr.bf16.mxu0 0
        %811 = vmatpush1.bf16.msra.mxu0 %v805
        %812 = vmatprep.subr.bf16.mxu0 0
        %813 = vmatpush1.bf16.msra.mxu0 0
        %814 = vmatprep.subr.bf16.mxu0 0
        %815 = vmatpush1.bf16.msra.mxu0 0
        %816 = vmatprep.subr.bf16.mxu0 0
        %817 = vmatpush1.bf16.msra.mxu0 0
        %818 = vmatprep.subr.bf16.mxu0 0
        %819 = vmatpush1.bf16.msra.mxu0 0
        %820 = vmatprep.subr.bf16.mxu0 0
        %821 = vmatpush1.bf16.msra.mxu0 0
        %822 = vmatprep.subr.bf16.mxu0 0
        %823 = vmatpush1.bf16.msra.mxu0 0
        %824 = vmatprep.subr.bf16.mxu0 0
        %825 = vmatpush1.bf16.msra.mxu0 0
        %826 = vmatprep.subr.bf16.mxu0 0
        %827 = vmatpush1.bf16.msra.mxu0 0
        %828 = vmatprep.subr.bf16.mxu0 0
        %829 = vmatpush1.bf16.msra.mxu0 0
        %830 = vmatprep.subr.bf16.mxu0 0
        %831 = vmatpush1.bf16.msra.mxu0 0
        %832 = vmatprep.subr.bf16.mxu0 0
        %833 = vmatpush1.bf16.msra.mxu0 0
        %834 = vmatprep.subr.bf16.mxu0 0
        %835 = vmatpush1.bf16.msra.mxu0 0
        %836 = vmatprep.subr.bf16.mxu0 0
        %837 = vmatpush1.bf16.msra.mxu0 0
        %838 = vmatprep.subr.bf16.mxu0 0
        %839 = vmatpush1.bf16.msra.mxu0 0
        %840 = vmatprep.mubr.bf16.mxu0 0
        %841 = vmatmul.mubr.bf16.gmra.mrb[0].mxu0 %v754
        %v842 = vpop.f32.mrb[0].mxu0
        %v843 = vadd.f32 %v718, %v842
        %v844 = vpop.f32.mrb[0].mxu0
        %v845 = vpop.f32.mrb[0].mxu0
        %v846 = vpop.f32.mrb[0].mxu0
        %847 = vdwg.mxu0
        %v852 = vunpack.c.l.b16 %v683
        %v853 = vunpack.c.l.b16 %v684
        %v854 = vunpack.c.l.b16 %v685
        %v855 = vunpack.c.l.b16 %v686
        %v856 = vpack.c.b16 %v853, %v852
        %v857 = vpack.c.b16 %v855, %v854
        %860 = vmatprep.subr.bf16.mxu0 0
        %861 = vmatpush1.bf16.msra.mxu0 %v856
        %862 = vmatprep.subr.bf16.mxu0 0
        %863 = vmatpush1.bf16.msra.mxu0 %v857
        %864 = vmatprep.subr.bf16.mxu0 0
        %865 = vmatpush1.bf16.msra.mxu0 0
        %866 = vmatprep.subr.bf16.mxu0 0
        %867 = vmatpush1.bf16.msra.mxu0 0
        %868 = vmatprep.subr.bf16.mxu0 0
        %869 = vmatpush1.bf16.msra.mxu0 0
        %870 = vmatprep.subr.bf16.mxu0 0
        %871 = vmatpush1.bf16.msra.mxu0 0
        %872 = vmatprep.subr.bf16.mxu0 0
        %873 = vmatpush1.bf16.msra.mxu0 0
        %874 = vmatprep.subr.bf16.mxu0 0
        %875 = vmatpush1.bf16.msra.mxu0 0
        %876 = vmatprep.subr.bf16.mxu0 0
        %877 = vmatpush1.bf16.msra.mxu0 0
        %878 = vmatprep.subr.bf16.mxu0 0
        %879 = vmatpush1.bf16.msra.mxu0 0
        %880 = vmatprep.subr.bf16.mxu0 0
        %881 = vmatpush1.bf16.msra.mxu0 0
        %882 = vmatprep.subr.bf16.mxu0 0
        %883 = vmatpush1.bf16.msra.mxu0 0
        %884 = vmatprep.subr.bf16.mxu0 0
        %885 = vmatpush1.bf16.msra.mxu0 0
        %886 = vmatprep.subr.bf16.mxu0 0
        %887 = vmatpush1.bf16.msra.mxu0 0
        %888 = vmatprep.subr.bf16.mxu0 0
        %889 = vmatpush1.bf16.msra.mxu0 0
        %890 = vmatprep.subr.bf16.mxu0 0
        %891 = vmatpush1.bf16.msra.mxu0 0
        %892 = vmatprep.mubr.bf16.mxu0 0
        %893 = vmatmul.mubr.bf16.gmra.mrb[0].mxu0 %v754
        %v894 = vpop.f32.mrb[0].mxu0
        %v895 = vadd.f32 %v722, %v894
        %v896 = vpop.f32.mrb[0].mxu0
        %v897 = vpop.f32.mrb[0].mxu0
        %v898 = vpop.f32.mrb[0].mxu0
        %899 = vdwg.mxu0
        %v904 = vunpack.c.l.b16 %v687
        %v905 = vunpack.c.l.b16 %v688
        %v906 = vunpack.c.l.b16 %v689
        %v907 = vunpack.c.l.b16 %v690
        %v908 = vpack.c.b16 %v905, %v904
        %v909 = vpack.c.b16 %v907, %v906
        %912 = vmatprep.subr.bf16.mxu0 0
        %913 = vmatpush1.bf16.msra.mxu0 %v908
        %914 = vmatprep.subr.bf16.mxu0 0
        %915 = vmatpush1.bf16.msra.mxu0 %v909
        %916 = vmatprep.subr.bf16.mxu0 0
        %917 = vmatpush1.bf16.msra.mxu0 0
        %918 = vmatprep.subr.bf16.mxu0 0
        %919 = vmatpush1.bf16.msra.mxu0 0
        %920 = vmatprep.subr.bf16.mxu0 0
        %921 = vmatpush1.bf16.msra.mxu0 0
        %922 = vmatprep.subr.bf16.mxu0 0
        %923 = vmatpush1.bf16.msra.mxu0 0
        %924 = vmatprep.subr.bf16.mxu0 0
        %925 = vmatpush1.bf16.msra.mxu0 0
        %926 = vmatprep.subr.bf16.mxu0 0
        %927 = vmatpush1.bf16.msra.mxu0 0
        %928 = vmatprep.subr.bf16.mxu0 0
        %929 = vmatpush1.bf16.msra.mxu0 0
        %930 = vmatprep.subr.bf16.mxu0 0
        %931 = vmatpush1.bf16.msra.mxu0 0
        %932 = vmatprep.subr.bf16.mxu0 0
        %933 = vmatpush1.bf16.msra.mxu0 0
        %934 = vmatprep.subr.bf16.mxu0 0
        %935 = vmatpush1.bf16.msra.mxu0 0
        %936 = vmatprep.subr.bf16.mxu0 0
        %937 = vmatpush1.bf16.msra.mxu0 0
        %938 = vmatprep.subr.bf16.mxu0 0
        %939 = vmatpush1.bf16.msra.mxu0 0
        %940 = vmatprep.subr.bf16.mxu0 0
        %941 = vmatpush1.bf16.msra.mxu0 0
        %942 = vmatprep.subr.bf16.mxu0 0
        %943 = vmatpush1.bf16.msra.mxu0 0
        %944 = vmatprep.mubr.bf16.mxu0 0
        %945 = vmatmul.mubr.bf16.gmra.mrb[0].mxu0 %v754
        %v946 = vpop.f32.mrb[0].mxu0
        %v947 = vadd.f32 %v726, %v946
        %v948 = vpop.f32.mrb[0].mxu0
        %v949 = vpop.f32.mrb[0].mxu0
        %v950 = vpop.f32.mrb[0].mxu0
        %951 = vdwg.mxu0
        %v956 = vunpack.c.l.b16 %v691
        %v957 = vunpack.c.l.b16 %v692
        %v958 = vunpack.c.l.b16 %v693
        %v959 = vunpack.c.l.b16 %v694
        %v960 = vpack.c.b16 %v957, %v956
        %v961 = vpack.c.b16 %v959, %v958
        %964 = vmatprep.subr.bf16.mxu0 0
        %965 = vmatpush1.bf16.msra.mxu0 %v960
        %966 = vmatprep.subr.bf16.mxu0 0
        %967 = vmatpush1.bf16.msra.mxu0 %v961
        %968 = vmatprep.subr.bf16.mxu0 0
        %969 = vmatpush1.bf16.msra.mxu0 0
        %970 = vmatprep.subr.bf16.mxu0 0
        %971 = vmatpush1.bf16.msra.mxu0 0
        %972 = vmatprep.subr.bf16.mxu0 0
        %973 = vmatpush1.bf16.msra.mxu0 0
        %974 = vmatprep.subr.bf16.mxu0 0
        %975 = vmatpush1.bf16.msra.mxu0 0
        %976 = vmatprep.subr.bf16.mxu0 0
        %977 = vmatpush1.bf16.msra.mxu0 0
        %978 = vmatprep.subr.bf16.mxu0 0
        %979 = vmatpush1.bf16.msra.mxu0 0
        %980 = vmatprep.subr.bf16.mxu0 0
        %981 = vmatpush1.bf16.msra.mxu0 0
        %982 = vmatprep.subr.bf16.mxu0 0
        %983 = vmatpush1.bf16.msra.mxu0 0
        %984 = vmatprep.subr.bf16.mxu0 0
        %985 = vmatpush1.bf16.msra.mxu0 0
        %986 = vmatprep.subr.bf16.mxu0 0
        %987 = vmatpush1.bf16.msra.mxu0 0
        %988 = vmatprep.subr.bf16.mxu0 0
        %989 = vmatpush1.bf16.msra.mxu0 0
        %990 = vmatprep.subr.bf16.mxu0 0
        %991 = vmatpush1.bf16.msra.mxu0 0
        %992 = vmatprep.subr.bf16.mxu0 0
        %993 = vmatpush1.bf16.msra.mxu0 0
        %994 = vmatprep.subr.bf16.mxu0 0
        %995 = vmatpush1.bf16.msra.mxu0 0
        %996 = vmatprep.mubr.bf16.mxu0 0
        %997 = vmatmul.mubr.bf16.gmra.mrb[0].mxu0 %v754
        %v998 = vpop.f32.mrb[0].mxu0
        %v999 = vadd.f32 %v730, %v998
        %v1000 = vpop.f32.mrb[0].mxu0
        %v1001 = vpop.f32.mrb[0].mxu0
        %v1002 = vpop.f32.mrb[0].mxu0
        %1003 = vdwg.mxu0
        %v1008 = vunpack.c.l.b16 %v695
        %v1009 = vunpack.c.l.b16 %v696
        %v1010 = vunpack.c.l.b16 %v697
        %v1011 = vunpack.c.l.b16 %v698
        %v1012 = vpack.c.b16 %v1009, %v1008
        %v1013 = vpack.c.b16 %v1011, %v1010
        %1016 = vmatprep.subr.bf16.mxu0 0
        %1017 = vmatpush1.bf16.msra.mxu0 %v1012
        %1018 = vmatprep.subr.bf16.mxu0 0
        %1019 = vmatpush1.bf16.msra.mxu0 %v1013
        %1020 = vmatprep.subr.bf16.mxu0 0
        %1021 = vmatpush1.bf16.msra.mxu0 0
        %1022 = vmatprep.subr.bf16.mxu0 0
        %1023 = vmatpush1.bf16.msra.mxu0 0
        %1024 = vmatprep.subr.bf16.mxu0 0
        %1025 = vmatpush1.bf16.msra.mxu0 0
        %1026 = vmatprep.subr.bf16.mxu0 0
        %1027 = vmatpush1.bf16.msra.mxu0 0
        %1028 = vmatprep.subr.bf16.mxu0 0
        %1029 = vmatpush1.bf16.msra.mxu0 0
        %1030 = vmatprep.subr.bf16.mxu0 0
        %1031 = vmatpush1.bf16.msra.mxu0 0
        %1032 = vmatprep.subr.bf16.mxu0 0
        %1033 = vmatpush1.bf16.msra.mxu0 0
        %1034 = vmatprep.subr.bf16.mxu0 0
        %1035 = vmatpush1.bf16.msra.mxu0 0
        %1036 = vmatprep.subr.bf16.mxu0 0
        %1037 = vmatpush1.bf16.msra.mxu0 0
        %1038 = vmatprep.subr.bf16.mxu0 0
        %1039 = vmatpush1.bf16.msra.mxu0 0
        %1040 = vmatprep.subr.bf16.mxu0 0
        %1041 = vmatpush1.bf16.msra.mxu0 0
        %1042 = vmatprep.subr.bf16.mxu0 0
        %1043 = vmatpush1.bf16.msra.mxu0 0
        %1044 = vmatprep.subr.bf16.mxu0 0
        %1045 = vmatpush1.bf16.msra.mxu0 0
        %1046 = vmatprep.subr.bf16.mxu0 0
        %1047 = vmatpush1.bf16.msra.mxu0 0
        %1048 = vmatprep.mubr.bf16.mxu0 0
        %1049 = vmatmul.mubr.bf16.gmra.mrb[0].mxu0 %v754
        %v1050 = vpop.f32.mrb[0].mxu0
        %v1051 = vadd.f32 %v734, %v1050
        %v1052 = vpop.f32.mrb[0].mxu0
        %v1053 = vpop.f32.mrb[0].mxu0
        %v1054 = vpop.f32.mrb[0].mxu0
        %1055 = vdwg.mxu0
        %v1056 = vmul.f32 %v791, 0.25
        %v1057 = vmul.f32 %v843, 0.25
        %v1058 = vpack.c.bf16 %v1056, %v1056
        %v1059 = vpack.c.bf16 %v1057, %v1057
        %v1060 = vpack.c.bf16 %v895, %v895
        %v1061 = vpack.c.bf16 %v947, %v947
        %v1063 = vlaneseq
        %v1064 = vshrl.u32 %v1063, 7
        %v1065 = vsub.s32 0, %v1064
        %v1066 = vrot.slane %v641, %v1065
        %vm1068 = vcmask 130048
        %v1070 = vsel %vm1068, %v1058, 0
        %v1073 = vsel %vm1068, %v1060, 0
        %1075 = vmatprep.subr.bf16.mxu0 0
        %1076 = vmatpush1.bf16.xpose.msra.mxu0 %v1073
        %1077 = vmatprep.subr.bf16.mxu0 0
        %1078 = vmatpush1.bf16.xpose.msra.mxu0 0
        %1079 = vmatprep.subr.bf16.mxu0 0
        %1080 = vmatpush1.bf16.xpose.msra.mxu0 0
        %1081 = vmatprep.subr.bf16.mxu0 0
        %1082 = vmatpush1.bf16.xpose.msra.mxu0 0
        %1083 = vmatprep.subr.bf16.mxu0 0
        %1084 = vmatpush1.bf16.xpose.msra.mxu0 0
        %1085 = vmatprep.subr.bf16.mxu0 0
        %1086 = vmatpush1.bf16.xpose.msra.mxu0 0
        %1087 = vmatprep.subr.bf16.mxu0 0
        %1088 = vmatpush1.bf16.xpose.msra.mxu0 0
        %1089 = vmatprep.subr.bf16.mxu0 0
        %1090 = vmatpush1.bf16.xpose.msra.mxu0 0
        %1091 = vmatprep.subr.bf16.mxu0 0
        %1092 = vmatpush1.bf16.xpose.msra.mxu0 0
        %1093 = vmatprep.subr.bf16.mxu0 0
        %1094 = vmatpush1.bf16.xpose.msra.mxu0 0
        %1095 = vmatprep.subr.bf16.mxu0 0
        %1096 = vmatpush1.bf16.xpose.msra.mxu0 0
        %1097 = vmatprep.subr.bf16.mxu0 0
        %1098 = vmatpush1.bf16.xpose.msra.mxu0 0
        %1099 = vmatprep.subr.bf16.mxu0 0
        %1100 = vmatpush1.bf16.xpose.msra.mxu0 0
        %1101 = vmatprep.subr.bf16.mxu0 0
        %1102 = vmatpush1.bf16.xpose.msra.mxu0 0
        %1103 = vmatprep.subr.bf16.mxu0 0
        %1104 = vmatpush1.bf16.xpose.msra.mxu0 0
        %1105 = vmatprep.subr.bf16.mxu0 0
        %1106 = vmatpush1.bf16.xpose.msra.mxu0 0
        %1107 = vmatprep.mubr.bf16.mxu0 0
        %1108 = vmatmul.mubr.bf16.gmra.mrb[0].mxu0 %v1070
        %v1109 = vpop.f32.mrb[0].mxu0
        %v1110 = vadd.f32 %v1066, %v1109
        %v1111 = vpop.f32.mrb[0].mxu0
        %v1112 = vpop.f32.mrb[0].mxu0
        %v1113 = vpop.f32.mrb[0].mxu0
        %1114 = vdwg.mxu0
        %v1116 = vsel %vm1068, %v1059, 0
        %v1119 = vsel %vm1068, %v1061, 0
        %1121 = vmatprep.subr.bf16.mxu0 0
        %1122 = vmatpush1.bf16.xpose.msra.mxu0 %v1119
        %1123 = vmatprep.subr.bf16.mxu0 0
        %1124 = vmatpush1.bf16.xpose.msra.mxu0 0
        %1125 = vmatprep.subr.bf16.mxu0 0
        %1126 = vmatpush1.bf16.xpose.msra.mxu0 0
        %1127 = vmatprep.subr.bf16.mxu0 0
        %1128 = vmatpush1.bf16.xpose.msra.mxu0 0
        %1129 = vmatprep.subr.bf16.mxu0 0
        %1130 = vmatpush1.bf16.xpose.msra.mxu0 0
        %1131 = vmatprep.subr.bf16.mxu0 0
        %1132 = vmatpush1.bf16.xpose.msra.mxu0 0
        %1133 = vmatprep.subr.bf16.mxu0 0
        %1134 = vmatpush1.bf16.xpose.msra.mxu0 0
        %1135 = vmatprep.subr.bf16.mxu0 0
        %1136 = vmatpush1.bf16.xpose.msra.mxu0 0
        %1137 = vmatprep.subr.bf16.mxu0 0
        %1138 = vmatpush1.bf16.xpose.msra.mxu0 0
        %1139 = vmatprep.subr.bf16.mxu0 0
        %1140 = vmatpush1.bf16.xpose.msra.mxu0 0
        %1141 = vmatprep.subr.bf16.mxu0 0
        %1142 = vmatpush1.bf16.xpose.msra.mxu0 0
        %1143 = vmatprep.subr.bf16.mxu0 0
        %1144 = vmatpush1.bf16.xpose.msra.mxu0 0
        %1145 = vmatprep.subr.bf16.mxu0 0
        %1146 = vmatpush1.bf16.xpose.msra.mxu0 0
        %1147 = vmatprep.subr.bf16.mxu0 0
        %1148 = vmatpush1.bf16.xpose.msra.mxu0 0
        %1149 = vmatprep.subr.bf16.mxu0 0
        %1150 = vmatpush1.bf16.xpose.msra.mxu0 0
        %1151 = vmatprep.subr.bf16.mxu0 0
        %1152 = vmatpush1.bf16.xpose.msra.mxu0 0
        %1153 = vmatprep.mubr.bf16.mxu0 0
        %1154 = vmatmul.mubr.bf16.gmra.mrb[0].mxu0 %v1116
        %v1155 = vpop.f32.mrb[0].mxu0
        %v1156 = vadd.f32 %v1066, %v1155
        %v1157 = vpop.f32.mrb[0].mxu0
        %v1158 = vpop.f32.mrb[0].mxu0
        %v1159 = vpop.f32.mrb[0].mxu0
        %1160 = vdwg.mxu0
        %vm1161 = vcmask 64512
        %v1162 = vsel %vm1161, %v1110, -inf
        %1163 = vmax.xlane.f32.xlu0 %v1162
        %v1164 = vpop.xlane.xlu0 %1163
        %v1165 = vsel %vm1161, %v1156, -inf
        %1166 = vmax.xlane.f32.xlu0 %v1165
        %v1167 = vpop.xlane.xlu0 %1166
        %v1168 = vsub.f32 %v1110, %v1164
        %v1169 = vsub.f32 %v1156, %v1167
        %v1170 = vmul.f32 %v1168, 1.442695
        %v1171 = vpow.pop %v1170
        %v1172 = vmul.f32 %v1169, 1.442695
        %v1173 = vpow.pop %v1172
        %v1174 = vsel %vm1161, %v1171, 0.0
        %1175 = vadd.xlane.f32.xlu0 %v1174
        %v1176 = vpop.xlane.xlu0 %1175
        %v1177 = vsel %vm1161, %v1173, 0.0
        %1178 = vadd.xlane.f32.xlu0 %v1177
        %v1179 = vpop.xlane.xlu0 %1178
        %v1180 = vrcp.pop %v1176
        %v1181 = vrcp.pop %v1179
        %v1182 = vmul.f32 %v1171, %v1180
        %v1183 = vmul.f32 %v1173, %v1181
        %v1184 = vpack.c.bf16 %v1182, %v1182
        %v1185 = vpack.c.bf16 %v1183, %v1183
        %v1186 = vpack.c.bf16 %v999, %v999
        %v1187 = vpack.c.bf16 %v1051, %v1051
        %v1189 = vsel %vm1161, %v1184, 0
        %vm1191 = vcmask 1043456
        %v1193 = vsel %vm1191, %v1186, 0
        %1195 = vmatprep.subr.bf16.mxu0 0
        %1196 = vmatpush1.bf16.msra.mxu0 %v1193
        %1197 = vmatprep.subr.bf16.mxu0 0
        %1198 = vmatpush1.bf16.msra.mxu0 0
        %1199 = vmatprep.subr.bf16.mxu0 0
        %1200 = vmatpush1.bf16.msra.mxu0 0
        %1201 = vmatprep.subr.bf16.mxu0 0
        %1202 = vmatpush1.bf16.msra.mxu0 0
        %1203 = vmatprep.subr.bf16.mxu0 0
        %1204 = vmatpush1.bf16.msra.mxu0 0
        %1205 = vmatprep.subr.bf16.mxu0 0
        %1206 = vmatpush1.bf16.msra.mxu0 0
        %1207 = vmatprep.subr.bf16.mxu0 0
        %1208 = vmatpush1.bf16.msra.mxu0 0
        %1209 = vmatprep.subr.bf16.mxu0 0
        %1210 = vmatpush1.bf16.msra.mxu0 0
        %1211 = vmatprep.subr.bf16.mxu0 0
        %1212 = vmatpush1.bf16.msra.mxu0 0
        %1213 = vmatprep.subr.bf16.mxu0 0
        %1214 = vmatpush1.bf16.msra.mxu0 0
        %1215 = vmatprep.subr.bf16.mxu0 0
        %1216 = vmatpush1.bf16.msra.mxu0 0
        %1217 = vmatprep.subr.bf16.mxu0 0
        %1218 = vmatpush1.bf16.msra.mxu0 0
        %1219 = vmatprep.subr.bf16.mxu0 0
        %1220 = vmatpush1.bf16.msra.mxu0 0
        %1221 = vmatprep.subr.bf16.mxu0 0
        %1222 = vmatpush1.bf16.msra.mxu0 0
        %1223 = vmatprep.subr.bf16.mxu0 0
        %1224 = vmatpush1.bf16.msra.mxu0 0
        %1225 = vmatprep.subr.bf16.mxu0 0
        %1226 = vmatpush1.bf16.msra.mxu0 0
        %1227 = vmatprep.mubr.bf16.mxu0 0
        %1228 = vmatmul.mubr.bf16.gmra.mrb[0].mxu0 %v1189
        %v1229 = vpop.f32.mrb[0].mxu0
        %v1230 = vadd.f32 0.0, %v1229
        %v1231 = vpop.f32.mrb[0].mxu0
        %v1232 = vpop.f32.mrb[0].mxu0
        %v1233 = vpop.f32.mrb[0].mxu0
        %1234 = vdwg.mxu0
        %v1236 = vsel %vm1161, %v1185, 0
        %v1239 = vsel %vm1191, %v1187, 0
        %1241 = vmatprep.subr.bf16.mxu0 0
        %1242 = vmatpush1.bf16.msra.mxu0 %v1239
        %1243 = vmatprep.subr.bf16.mxu0 0
        %1244 = vmatpush1.bf16.msra.mxu0 0
        %1245 = vmatprep.subr.bf16.mxu0 0
        %1246 = vmatpush1.bf16.msra.mxu0 0
        %1247 = vmatprep.subr.bf16.mxu0 0
        %1248 = vmatpush1.bf16.msra.mxu0 0
        %1249 = vmatprep.subr.bf16.mxu0 0
        %1250 = vmatpush1.bf16.msra.mxu0 0
        %1251 = vmatprep.subr.bf16.mxu0 0
        %1252 = vmatpush1.bf16.msra.mxu0 0
        %1253 = vmatprep.subr.bf16.mxu0 0
        %1254 = vmatpush1.bf16.msra.mxu0 0
        %1255 = vmatprep.subr.bf16.mxu0 0
        %1256 = vmatpush1.bf16.msra.mxu0 0
        %1257 = vmatprep.subr.bf16.mxu0 0
        %1258 = vmatpush1.bf16.msra.mxu0 0
        %1259 = vmatprep.subr.bf16.mxu0 0
        %1260 = vmatpush1.bf16.msra.mxu0 0
        %1261 = vmatprep.subr.bf16.mxu0 0
        %1262 = vmatpush1.bf16.msra.mxu0 0
        %1263 = vmatprep.subr.bf16.mxu0 0
        %1264 = vmatpush1.bf16.msra.mxu0 0
        %1265 = vmatprep.subr.bf16.mxu0 0
        %1266 = vmatpush1.bf16.msra.mxu0 0
        %1267 = vmatprep.subr.bf16.mxu0 0
        %1268 = vmatpush1.bf16.msra.mxu0 0
        %1269 = vmatprep.subr.bf16.mxu0 0
        %1270 = vmatpush1.bf16.msra.mxu0 0
        %1271 = vmatprep.subr.bf16.mxu0 0
        %1272 = vmatpush1.bf16.msra.mxu0 0
        %1273 = vmatprep.mubr.bf16.mxu0 0
        %1274 = vmatmul.mubr.bf16.gmra.mrb[0].mxu0 %v1236
        %v1275 = vpop.f32.mrb[0].mxu0
        %v1276 = vadd.f32 0.0, %v1275
        %v1277 = vpop.f32.mrb[0].mxu0
        %v1278 = vpop.f32.mrb[0].mxu0
        %v1279 = vpop.f32.mrb[0].mxu0
        %1280 = vdwg.mxu0
        %v1281 = vpack.c.bf16 %v1230, %v1230
        %v1282 = vpack.c.bf16 %v1276, %v1276
        %v1283 = vld [vmem:[%s6] sm:$0xf]
        %v1284 = vld [vmem:[%s6 + $0x4] sm:$0xf]
        %v1285 = vld [vmem:[%s6 + $0x8] sm:$0xf]
        %v1286 = vld [vmem:[%s6 + $0xc] sm:$0xf]
        %v1289 = vunpack.c.l.b16 %v1283
        %v1290 = vunpack.c.l.b16 %v1284
        %v1291 = vpack.c.b16 %v1290, %v1289
        %v1294 = vsel %vm1068, %v1281, 0
        %1296 = vmatprep.subr.bf16.mxu0 0
        %1297 = vmatpush1.bf16.msra.mxu0 %v1291
        %1298 = vmatprep.subr.bf16.mxu0 0
        %1299 = vmatpush1.bf16.msra.mxu0 0
        %1300 = vmatprep.subr.bf16.mxu0 0
        %1301 = vmatpush1.bf16.msra.mxu0 0
        %1302 = vmatprep.subr.bf16.mxu0 0
        %1303 = vmatpush1.bf16.msra.mxu0 0
        %1304 = vmatprep.subr.bf16.mxu0 0
        %1305 = vmatpush1.bf16.msra.mxu0 0
        %1306 = vmatprep.subr.bf16.mxu0 0
        %1307 = vmatpush1.bf16.msra.mxu0 0
        %1308 = vmatprep.subr.bf16.mxu0 0
        %1309 = vmatpush1.bf16.msra.mxu0 0
        %1310 = vmatprep.subr.bf16.mxu0 0
        %1311 = vmatpush1.bf16.msra.mxu0 0
        %1312 = vmatprep.subr.bf16.mxu0 0
        %1313 = vmatpush1.bf16.msra.mxu0 0
        %1314 = vmatprep.subr.bf16.mxu0 0
        %1315 = vmatpush1.bf16.msra.mxu0 0
        %1316 = vmatprep.subr.bf16.mxu0 0
        %1317 = vmatpush1.bf16.msra.mxu0 0
        %1318 = vmatprep.subr.bf16.mxu0 0
        %1319 = vmatpush1.bf16.msra.mxu0 0
        %1320 = vmatprep.subr.bf16.mxu0 0
        %1321 = vmatpush1.bf16.msra.mxu0 0
        %1322 = vmatprep.subr.bf16.mxu0 0
        %1323 = vmatpush1.bf16.msra.mxu0 0
        %1324 = vmatprep.subr.bf16.mxu0 0
        %1325 = vmatpush1.bf16.msra.mxu0 0
        %1326 = vmatprep.subr.bf16.mxu0 0
        %1327 = vmatpush1.bf16.msra.mxu0 0
        %1328 = vmatprep.mubr.bf16.mxu0 0
        %1329 = vmatmul.mubr.bf16.gmra.mrb[0].mxu0 %v1294
        %v1330 = vpop.f32.mrb[0].mxu0
        %v1331 = vadd.f32 0.0, %v1330
        %v1332 = vpop.f32.mrb[0].mxu0
        %v1333 = vpop.f32.mrb[0].mxu0
        %v1334 = vpop.f32.mrb[0].mxu0
        %1335 = vdwg.mxu0
        %v1338 = vunpack.c.l.b16 %v1285
        %v1339 = vunpack.c.l.b16 %v1286
        %v1340 = vpack.c.b16 %v1339, %v1338
        %v1343 = vsel %vm1068, %v1282, 0
        %1345 = vmatprep.subr.bf16.mxu0 0
        %1346 = vmatpush1.bf16.msra.mxu0 %v1340
        %1347 = vmatprep.subr.bf16.mxu0 0
        %1348 = vmatpush1.bf16.msra.mxu0 0
        %1349 = vmatprep.subr.bf16.mxu0 0
        %1350 = vmatpush1.bf16.msra.mxu0 0
        %1351 = vmatprep.subr.bf16.mxu0 0
        %1352 = vmatpush1.bf16.msra.mxu0 0
        %1353 = vmatprep.subr.bf16.mxu0 0
        %1354 = vmatpush1.bf16.msra.mxu0 0
        %1355 = vmatprep.subr.bf16.mxu0 0
        %1356 = vmatpush1.bf16.msra.mxu0 0
        %1357 = vmatprep.subr.bf16.mxu0 0
        %1358 = vmatpush1.bf16.msra.mxu0 0
        %1359 = vmatprep.subr.bf16.mxu0 0
        %1360 = vmatpush1.bf16.msra.mxu0 0
        %1361 = vmatprep.subr.bf16.mxu0 0
        %1362 = vmatpush1.bf16.msra.mxu0 0
        %1363 = vmatprep.subr.bf16.mxu0 0
        %1364 = vmatpush1.bf16.msra.mxu0 0
        %1365 = vmatprep.subr.bf16.mxu0 0
        %1366 = vmatpush1.bf16.msra.mxu0 0
        %1367 = vmatprep.subr.bf16.mxu0 0
        %1368 = vmatpush1.bf16.msra.mxu0 0
        %1369 = vmatprep.subr.bf16.mxu0 0
        %1370 = vmatpush1.bf16.msra.mxu0 0
        %1371 = vmatprep.subr.bf16.mxu0 0
        %1372 = vmatpush1.bf16.msra.mxu0 0
        %1373 = vmatprep.subr.bf16.mxu0 0
        %1374 = vmatpush1.bf16.msra.mxu0 0
        %1375 = vmatprep.subr.bf16.mxu0 0
        %1376 = vmatpush1.bf16.msra.mxu0 0
        %1377 = vmatprep.mubr.bf16.mxu0 0
        %1378 = vmatmul.mubr.bf16.gmra.mrb[0].mxu0 %v1343
        %v1379 = vpop.f32.mrb[0].mxu0
        %v1380 = vadd.f32 0.0, %v1379
        %v1381 = vpop.f32.mrb[0].mxu0
        %v1382 = vpop.f32.mrb[0].mxu0
        %v1383 = vpop.f32.mrb[0].mxu0
        %1384 = vdwg.mxu0
        %v1385 = vsel %vm645, %v1331, 0.0
        %v1386 = vsel %vm645, %v1380, 0.0
        %v1387 = vadd.f32 %v1385, %v1386
        %v1388 = vld [vmem:[%s7] sm:$0x1]
        %v1390 = vlaneseq
        %v1391 = vshrl.u32 %v1390, 7
        %v1392 = vsub.s32 0, %v1391
        %v1393 = vrot.slane %v1388, %v1392
        %v1395 = vadd.f32 %v1387, %v1393
        %v1396 = vadd.f32 %v673, %v1395
        %v1397 = vld [vmem:[%s8] sm:$0x1]
        %v1398 = vld [vmem:[%s9] sm:$0x1]
        %v1399 = vsel %vm645, %v1396, 0.0
        %1400 = vadd.xlane.f32.xlu0 %v1399
        %v1401 = vpop.xlane.xlu0 %1400
        %v1402 = vmul.f32 %v1401, %v649
        %v1403 = vsub.f32 %v1396, %v1402
        %v1404 = vmul.f32 %v1403, %v1403
        %v1405 = vsel %vm645, %v1404, 0.0
        %1406 = vadd.xlane.f32.xlu0 %v1405
        %v1407 = vpop.xlane.xlu0 %1406
        %v1408 = vmul.f32 %v1407, %v649
        %v1409 = vadd.f32 %v1408, 1e-12
        %v1410 = vrsqrt.pop %v1409
        %v1411 = vmul.f32 %v1403, %v1410
        %v1413 = vlaneseq
        %v1414 = vshrl.u32 %v1413, 7
        %v1415 = vsub.s32 0, %v1414
        %v1416 = vrot.slane %v1397, %v1415
        %v1418 = vmul.f32 %v1411, %v1416
        %v1420 = vlaneseq
        %v1421 = vshrl.u32 %v1420, 7
        %v1422 = vsub.s32 0, %v1421
        %v1423 = vrot.slane %v1398, %v1422
        %v1425 = vadd.f32 %v1418, %v1423
        %v1426 = vpack.c.bf16 %v1425, %v1425
        %v1427 = vld [vmem:[%s10] sm:$0xf]
        %v1428 = vld [vmem:[%s10 + $0x4] sm:$0xf]
        %v1429 = vld [vmem:[%s10 + $0x8] sm:$0xf]
        %v1430 = vld [vmem:[%s10 + $0xc] sm:$0xf]
        %v1431 = vld [vmem:[%s11] sm:$0x1]
        %v1433 = vlaneseq
        %v1434 = vshrl.u32 %v1433, 7
        %v1435 = vsub.s32 0, %v1434
        %v1436 = vrot.slane %v1431, %v1435
        %v1442 = vunpack.c.l.b16 %v1427
        %v1443 = vunpack.c.l.b16 %v1428
        %v1444 = vunpack.c.l.b16 %v1429
        %v1445 = vunpack.c.l.b16 %v1430
        %v1446 = vpack.c.b16 %v1443, %v1442
        %v1447 = vpack.c.b16 %v1445, %v1444
        %v1451 = vsel %vm645, %v1426, 0
        %1453 = vmatprep.subr.bf16.mxu0 0
        %1454 = vmatpush1.bf16.msra.mxu0 %v1446
        %1455 = vmatprep.subr.bf16.mxu0 0
        %1456 = vmatpush1.bf16.msra.mxu0 %v1447
        %1457 = vmatprep.subr.bf16.mxu0 0
        %1458 = vmatpush1.bf16.msra.mxu0 0
        %1459 = vmatprep.subr.bf16.mxu0 0
        %1460 = vmatpush1.bf16.msra.mxu0 0
        %1461 = vmatprep.subr.bf16.mxu0 0
        %1462 = vmatpush1.bf16.msra.mxu0 0
        %1463 = vmatprep.subr.bf16.mxu0 0
        %1464 = vmatpush1.bf16.msra.mxu0 0
        %1465 = vmatprep.subr.bf16.mxu0 0
        %1466 = vmatpush1.bf16.msra.mxu0 0
        %1467 = vmatprep.subr.bf16.mxu0 0
        %1468 = vmatpush1.bf16.msra.mxu0 0
        %1469 = vmatprep.subr.bf16.mxu0 0
        %1470 = vmatpush1.bf16.msra.mxu0 0
        %1471 = vmatprep.subr.bf16.mxu0 0
        %1472 = vmatpush1.bf16.msra.mxu0 0
        %1473 = vmatprep.subr.bf16.mxu0 0
        %1474 = vmatpush1.bf16.msra.mxu0 0
        %1475 = vmatprep.subr.bf16.mxu0 0
        %1476 = vmatpush1.bf16.msra.mxu0 0
        %1477 = vmatprep.subr.bf16.mxu0 0
        %1478 = vmatpush1.bf16.msra.mxu0 0
        %1479 = vmatprep.subr.bf16.mxu0 0
        %1480 = vmatpush1.bf16.msra.mxu0 0
        %1481 = vmatprep.subr.bf16.mxu0 0
        %1482 = vmatpush1.bf16.msra.mxu0 0
        %1483 = vmatprep.subr.bf16.mxu0 0
        %1484 = vmatpush1.bf16.msra.mxu0 0
        %1485 = vmatprep.mubr.bf16.mxu0 0
        %1486 = vmatmul.mubr.bf16.gmra.mrb[0].mxu0 %v1451
        %v1487 = vpop.f32.mrb[0].mxu0
        %v1488 = vadd.f32 %v1436, %v1487
        %v1489 = vpop.f32.mrb[0].mxu0
        %v1490 = vpop.f32.mrb[0].mxu0
        %v1491 = vpop.f32.mrb[0].mxu0
        %1492 = vdwg.mxu0
        %v1493 = vmul.f32 %v1488, 0.5
        %v1494 = vmul.f32 %v1488, 0.044715
        %v1495 = vmul.f32 %v1494, %v1488
        %v1496 = vmul.f32 %v1495, %v1488
        %v1497 = vadd.f32 %v1488, %v1496
        %v1498 = vmul.f32 %v1497, 0.7978846
        %v1499 = vtanh.pop %v1498
        %v1500 = vadd.f32 %v1499, 1.0
        %v1501 = vmul.f32 %v1493, %v1500
        %v1502 = vpack.c.bf16 %v1501, %v1501
        %v1503 = vld [vmem:[%s12] sm:$0xf]
        %v1504 = vld [vmem:[%s12 + $0x4] sm:$0xf]
        %v1505 = vld [vmem:[%s12 + $0x8] sm:$0xf]
        %v1506 = vld [vmem:[%s12 + $0xc] sm:$0xf]
        %v1507 = vld [vmem:[%s12 + $0x10] sm:$0xf]
        %v1508 = vld [vmem:[%s12 + $0x14] sm:$0xf]
        %v1509 = vld [vmem:[%s12 + $0x18] sm:$0xf]
        %v1510 = vld [vmem:[%s12 + $0x1c] sm:$0xf]
        %v1511 = vld [vmem:[%s12 + $0x20] sm:$0xf]
        %v1512 = vld [vmem:[%s12 + $0x24] sm:$0xf]
        %v1513 = vld [vmem:[%s12 + $0x28] sm:$0xf]
        %v1514 = vld [vmem:[%s12 + $0x2c] sm:$0xf]
        %v1515 = vld [vmem:[%s12 + $0x30] sm:$0xf]
        %v1516 = vld [vmem:[%s12 + $0x34] sm:$0xf]
        %v1517 = vld [vmem:[%s12 + $0x38] sm:$0xf]
        %v1518 = vld [vmem:[%s12 + $0x3c] sm:$0xf]
        %v1519 = vld [vmem:[%s13] sm:$0x1]
        %v1521 = vlaneseq
        %v1522 = vshrl.u32 %v1521, 7
        %v1523 = vsub.s32 0, %v1522
        %v1524 = vrot.slane %v1519, %v1523
        %v1542 = vunpack.c.l.b16 %v1503
        %v1543 = vunpack.c.l.b16 %v1504
        %v1544 = vunpack.c.l.b16 %v1505
        %v1545 = vunpack.c.l.b16 %v1506
        %v1546 = vunpack.c.l.b16 %v1507
        %v1547 = vunpack.c.l.b16 %v1508
        %v1548 = vunpack.c.l.b16 %v1509
        %v1549 = vunpack.c.l.b16 %v1510
        %v1550 = vunpack.c.l.b16 %v1511
        %v1551 = vunpack.c.l.b16 %v1512
        %v1552 = vunpack.c.l.b16 %v1513
        %v1553 = vunpack.c.l.b16 %v1514
        %v1554 = vunpack.c.l.b16 %v1515
        %v1555 = vunpack.c.l.b16 %v1516
        %v1556 = vunpack.c.l.b16 %v1517
        %v1557 = vunpack.c.l.b16 %v1518
        %v1558 = vpack.c.b16 %v1543, %v1542
        %v1559 = vpack.c.b16 %v1545, %v1544
        %v1560 = vpack.c.b16 %v1547, %v1546
        %v1561 = vpack.c.b16 %v1549, %v1548
        %v1562 = vpack.c.b16 %v1551, %v1550
        %v1563 = vpack.c.b16 %v1553, %v1552
        %v1564 = vpack.c.b16 %v1555, %v1554
        %v1565 = vpack.c.b16 %v1557, %v1556
        %1574 = vmatprep.subr.bf16.mxu0 0
        %1575 = vmatpush1.bf16.msra.mxu0 %v1558
        %1576 = vmatprep.subr.bf16.mxu0 0
        %1577 = vmatpush1.bf16.msra.mxu0 %v1559
        %1578 = vmatprep.subr.bf16.mxu0 0
        %1579 = vmatpush1.bf16.msra.mxu0 %v1560
        %1580 = vmatprep.subr.bf16.mxu0 0
        %1581 = vmatpush1.bf16.msra.mxu0 %v1561
        %1582 = vmatprep.subr.bf16.mxu0 0
        %1583 = vmatpush1.bf16.msra.mxu0 %v1562
        %1584 = vmatprep.subr.bf16.mxu0 0
        %1585 = vmatpush1.bf16.msra.mxu0 %v1563
        %1586 = vmatprep.subr.bf16.mxu0 0
        %1587 = vmatpush1.bf16.msra.mxu0 %v1564
        %1588 = vmatprep.subr.bf16.mxu0 0
        %1589 = vmatpush1.bf16.msra.mxu0 %v1565
        %1590 = vmatprep.subr.bf16.mxu0 0
        %1591 = vmatpush1.bf16.msra.mxu0 0
        %1592 = vmatprep.subr.bf16.mxu0 0
        %1593 = vmatpush1.bf16.msra.mxu0 0
        %1594 = vmatprep.subr.bf16.mxu0 0
        %1595 = vmatpush1.bf16.msra.mxu0 0
        %1596 = vmatprep.subr.bf16.mxu0 0
        %1597 = vmatpush1.bf16.msra.mxu0 0
        %1598 = vmatprep.subr.bf16.mxu0 0
        %1599 = vmatpush1.bf16.msra.mxu0 0
        %1600 = vmatprep.subr.bf16.mxu0 0
        %1601 = vmatpush1.bf16.msra.mxu0 0
        %1602 = vmatprep.subr.bf16.mxu0 0
        %1603 = vmatpush1.bf16.msra.mxu0 0
        %1604 = vmatprep.subr.bf16.mxu0 0
        %1605 = vmatpush1.bf16.msra.mxu0 0
        %1606 = vmatprep.mubr.bf16.mxu0 0
        %1607 = vmatmul.mubr.bf16.gmra.mrb[0].mxu0 %v1502
        %v1608 = vpop.f32.mrb[0].mxu0
        %v1609 = vadd.f32 %v1524, %v1608
        %v1610 = vpop.f32.mrb[0].mxu0
        %v1611 = vpop.f32.mrb[0].mxu0
        %v1612 = vpop.f32.mrb[0].mxu0
        %1613 = vdwg.mxu0
        %v1614 = vadd.f32 %v1425, %v1609
        %v1615 = vld [vmem:[%s14] sm:$0x1]
        %v1616 = vld [vmem:[%s15] sm:$0x1]
        %v1617 = vsel %vm645, %v1614, 0.0
        %1618 = vadd.xlane.f32.xlu0 %v1617
        %v1619 = vpop.xlane.xlu0 %1618
        %v1620 = vmul.f32 %v1619, %v649
        %v1621 = vsub.f32 %v1614, %v1620
        %v1622 = vmul.f32 %v1621, %v1621
        %v1623 = vsel %vm645, %v1622, 0.0
        %1624 = vadd.xlane.f32.xlu0 %v1623
        %v1625 = vpop.xlane.xlu0 %1624
        %v1626 = vmul.f32 %v1625, %v649
        %v1627 = vadd.f32 %v1626, 1e-12
        %v1628 = vrsqrt.pop %v1627
        %v1629 = vmul.f32 %v1621, %v1628
        %v1631 = vlaneseq
        %v1632 = vshrl.u32 %v1631, 7
        %v1633 = vsub.s32 0, %v1632
        %v1634 = vrot.slane %v1615, %v1633
        %v1636 = vmul.f32 %v1629, %v1634
        %v1638 = vlaneseq
        %v1639 = vshrl.u32 %v1638, 7
        %v1640 = vsub.s32 0, %v1639
        %v1641 = vrot.slane %v1616, %v1640
        %v1643 = vadd.f32 %v1636, %v1641
        %v1644 = vpack.c.bf16 %v1643, %v1643
        %s1645 = scalar_lea.vmem %s4, 96
        %v1646 = vld [vmem:[%s1645] sm:$0xf]
        %v1647 = vld [vmem:[%s1645 + $0x4] sm:$0xf]
        %v1648 = vld [vmem:[%s1645 + $0x8] sm:$0xf]
        %v1649 = vld [vmem:[%s1645 + $0xc] sm:$0xf]
        %v1650 = vld [vmem:[%s1645 + $0x10] sm:$0xf]
        %v1651 = vld [vmem:[%s1645 + $0x14] sm:$0xf]
        %v1652 = vld [vmem:[%s1645 + $0x18] sm:$0xf]
        %v1653 = vld [vmem:[%s1645 + $0x1c] sm:$0xf]
        %v1654 = vld [vmem:[%s1645 + $0x20] sm:$0xf]
        %v1655 = vld [vmem:[%s1645 + $0x24] sm:$0xf]
        %v1656 = vld [vmem:[%s1645 + $0x28] sm:$0xf]
        %v1657 = vld [vmem:[%s1645 + $0x2c] sm:$0xf]
        %v1658 = vld [vmem:[%s1645 + $0x30] sm:$0xf]
        %v1659 = vld [vmem:[%s1645 + $0x34] sm:$0xf]
        %v1660 = vld [vmem:[%s1645 + $0x38] sm:$0xf]
        %v1661 = vld [vmem:[%s1645 + $0x3c] sm:$0xf]
        %v1662 = vld [vmem:[%s1645 + $0x40] sm:$0xf]
        %v1663 = vld [vmem:[%s1645 + $0x44] sm:$0xf]
        %v1664 = vld [vmem:[%s1645 + $0x48] sm:$0xf]
        %v1665 = vld [vmem:[%s1645 + $0x4c] sm:$0xf]
        %v1666 = vld [vmem:[%s1645 + $0x50] sm:$0xf]
        %v1667 = vld [vmem:[%s1645 + $0x54] sm:$0xf]
        %v1668 = vld [vmem:[%s1645 + $0x58] sm:$0xf]
        %v1669 = vld [vmem:[%s1645 + $0x5c] sm:$0xf]
        %s1670 = scalar_lea.vmem %s5, 6
        %v1671 = vld [vmem:[%s1670] sm:$0x1]
        %v1672 = vld [vmem:[%s1670 + $0x1] sm:$0x1]
        %v1673 = vld [vmem:[%s1670 + $0x2] sm:$0x1]
        %v1674 = vld [vmem:[%s1670 + $0x3] sm:$0x1]
        %v1675 = vld [vmem:[%s1670 + $0x4] sm:$0x1]
        %v1676 = vld [vmem:[%s1670 + $0x5] sm:$0x1]
        %v1683 = vlaneseq
        %v1684 = vshrl.u32 %v1683, 7
        %v1685 = vsub.s32 0, %v1684
        %v1686 = vrot.slane %v1671, %v1685
        %v1687 = vlaneseq
        %v1688 = vshrl.u32 %v1687, 7
        %v1689 = vsub.s32 0, %v1688
        %v1690 = vrot.slane %v1672, %v1689
        %v1691 = vlaneseq
        %v1692 = vshrl.u32 %v1691, 7
        %v1693 = vsub.s32 0, %v1692
        %v1694 = vrot.slane %v1673, %v1693
        %v1695 = vlaneseq
        %v1696 = vshrl.u32 %v1695, 7
        %v1697 = vsub.s32 0, %v1696
        %v1698 = vrot.slane %v1674, %v1697
        %v1699 = vlaneseq
        %v1700 = vshrl.u32 %v1699, 7
        %v1701 = vsub.s32 0, %v1700
        %v1702 = vrot.slane %v1675, %v1701
        %v1703 = vlaneseq
        %v1704 = vshrl.u32 %v1703, 7
        %v1705 = vsub.s32 0, %v1704
        %v1706 = vrot.slane %v1676, %v1705
        %v1717 = vunpack.c.l.b16 %v1646
        %v1718 = vunpack.c.l.b16 %v1647
        %v1719 = vunpack.c.l.b16 %v1648
        %v1720 = vunpack.c.l.b16 %v1649
        %v1721 = vpack.c.b16 %v1718, %v1717
        %v1722 = vpack.c.b16 %v1720, %v1719
        %v1726 = vsel %vm645, %v1644, 0
        %1728 = vmatprep.subr.bf16.mxu0 0
        %1729 = vmatpush1.bf16.msra.mxu0 %v1721
        %1730 = vmatprep.subr.bf16.mxu0 0
        %1731 = vmatpush1.bf16.msra.mxu0 %v1722
        %1732 = vmatprep.subr.bf16.mxu0 0
        %1733 = vmatpush1.bf16.msra.mxu0 0
        %1734 = vmatprep.subr.bf16.mxu0 0
        %1735 = vmatpush1.bf16.msra.mxu0 0
        %1736 = vmatprep.subr.bf16.mxu0 0
        %1737 = vmatpush1.bf16.msra.mxu0 0
        %1738 = vmatprep.subr.bf16.mxu0 0
        %1739 = vmatpush1.bf16.msra.mxu0 0
        %1740 = vmatprep.subr.bf16.mxu0 0
        %1741 = vmatpush1.bf16.msra.mxu0 0
        %1742 = vmatprep.subr.bf16.mxu0 0
        %1743 = vmatpush1.bf16.msra.mxu0 0
        %1744 = vmatprep.subr.bf16.mxu0 0
        %1745 = vmatpush1.bf16.msra.mxu0 0
        %1746 = vmatprep.subr.bf16.mxu0 0
        %1747 = vmatpush1.bf16.msra.mxu0 0
        %1748 = vmatprep.subr.bf16.mxu0 0
        %1749 = vmatpush1.bf16.msra.mxu0 0
        %1750 = vmatprep.subr.bf16.mxu0 0
        %1751 = vmatpush1.bf16.msra.mxu0 0
        %1752 = vmatprep.subr.bf16.mxu0 0
        %1753 = vmatpush1.bf16.msra.mxu0 0
        %1754 = vmatprep.subr.bf16.mxu0 0
        %1755 = vmatpush1.bf16.msra.mxu0 0
        %1756 = vmatprep.subr.bf16.mxu0 0
        %1757 = vmatpush1.bf16.msra.mxu0 0
        %1758 = vmatprep.subr.bf16.mxu0 0
        %1759 = vmatpush1.bf16.msra.mxu0 0
        %1760 = vmatprep.mubr.bf16.mxu0 0
        %1761 = vmatmul.mubr.bf16.gmra.mrb[0].mxu0 %v1726
        %v1762 = vpop.f32.mrb[0].mxu0
        %v1763 = vadd.f32 %v1686, %v1762
        %v1764 = vpop.f32.mrb[0].mxu0
        %v1765 = vpop.f32.mrb[0].mxu0
        %v1766 = vpop.f32.mrb[0].mxu0
        %1767 = vdwg.mxu0
        %v1772 = vunpack.c.l.b16 %v1650
        %v1773 = vunpack.c.l.b16 %v1651
        %v1774 = vunpack.c.l.b16 %v1652
        %v1775 = vunpack.c.l.b16 %v1653
        %v1776 = vpack.c.b16 %v1773, %v1772
        %v1777 = vpack.c.b16 %v1775, %v1774
        %1780 = vmatprep.subr.bf16.mxu0 0
        %1781 = vmatpush1.bf16.msra.mxu0 %v1776
        %1782 = vmatprep.subr.bf16.mxu0 0
        %1783 = vmatpush1.bf16.msra.mxu0 %v1777
        %1784 = vmatprep.subr.bf16.mxu0 0
        %1785 = vmatpush1.bf16.msra.mxu0 0
        %1786 = vmatprep.subr.bf16.mxu0 0
        %1787 = vmatpush1.bf16.msra.mxu0 0
        %1788 = vmatprep.subr.bf16.mxu0 0
        %1789 = vmatpush1.bf16.msra.mxu0 0
        %1790 = vmatprep.subr.bf16.mxu0 0
        %1791 = vmatpush1.bf16.msra.mxu0 0
        %1792 = vmatprep.subr.bf16.mxu0 0
        %1793 = vmatpush1.bf16.msra.mxu0 0
        %1794 = vmatprep.subr.bf16.mxu0 0
        %1795 = vmatpush1.bf16.msra.mxu0 0
        %1796 = vmatprep.subr.bf16.mxu0 0
        %1797 = vmatpush1.bf16.msra.mxu0 0
        %1798 = vmatprep.subr.bf16.mxu0 0
        %1799 = vmatpush1.bf16.msra.mxu0 0
        %1800 = vmatprep.subr.bf16.mxu0 0
        %1801 = vmatpush1.bf16.msra.mxu0 0
        %1802 = vmatprep.subr.bf16.mxu0 0
        %1803 = vmatpush1.bf16.msra.mxu0 0
        %1804 = vmatprep.subr.bf16.mxu0 0
        %1805 = vmatpush1.bf16.msra.mxu0 0
        %1806 = vmatprep.subr.bf16.mxu0 0
        %1807 = vmatpush1.bf16.msra.mxu0 0
        %1808 = vmatprep.subr.bf16.mxu0 0
        %1809 = vmatpush1.bf16.msra.mxu0 0
        %1810 = vmatprep.subr.bf16.mxu0 0
        %1811 = vmatpush1.bf16.msra.mxu0 0
        %1812 = vmatprep.mubr.bf16.mxu0 0
        %1813 = vmatmul.mubr.bf16.gmra.mrb[0].mxu0 %v1726
        %v1814 = vpop.f32.mrb[0].mxu0
        %v1815 = vadd.f32 %v1690, %v1814
        %v1816 = vpop.f32.mrb[0].mxu0
        %v1817 = vpop.f32.mrb[0].mxu0
        %v1818 = vpop.f32.mrb[0].mxu0
        %1819 = vdwg.mxu0
        %v1824 = vunpack.c.l.b16 %v1654
        %v1825 = vunpack.c.l.b16 %v1655
        %v1826 = vunpack.c.l.b16 %v1656
        %v1827 = vunpack.c.l.b16 %v1657
        %v1828 = vpack.c.b16 %v1825, %v1824
        %v1829 = vpack.c.b16 %v1827, %v1826
        %1832 = vmatprep.subr.bf16.mxu0 0
        %1833 = vmatpush1.bf16.msra.mxu0 %v1828
        %1834 = vmatprep.subr.bf16.mxu0 0
        %1835 = vmatpush1.bf16.msra.mxu0 %v1829
        %1836 = vmatprep.subr.bf16.mxu0 0
        %1837 = vmatpush1.bf16.msra.mxu0 0
        %1838 = vmatprep.subr.bf16.mxu0 0
        %1839 = vmatpush1.bf16.msra.mxu0 0
        %1840 = vmatprep.subr.bf16.mxu0 0
        %1841 = vmatpush1.bf16.msra.mxu0 0
        %1842 = vmatprep.subr.bf16.mxu0 0
        %1843 = vmatpush1.bf16.msra.mxu0 0
        %1844 = vmatprep.subr.bf16.mxu0 0
        %1845 = vmatpush1.bf16.msra.mxu0 0
        %1846 = vmatprep.subr.bf16.mxu0 0
        %1847 = vmatpush1.bf16.msra.mxu0 0
        %1848 = vmatprep.subr.bf16.mxu0 0
        %1849 = vmatpush1.bf16.msra.mxu0 0
        %1850 = vmatprep.subr.bf16.mxu0 0
        %1851 = vmatpush1.bf16.msra.mxu0 0
        %1852 = vmatprep.subr.bf16.mxu0 0
        %1853 = vmatpush1.bf16.msra.mxu0 0
        %1854 = vmatprep.subr.bf16.mxu0 0
        %1855 = vmatpush1.bf16.msra.mxu0 0
        %1856 = vmatprep.subr.bf16.mxu0 0
        %1857 = vmatpush1.bf16.msra.mxu0 0
        %1858 = vmatprep.subr.bf16.mxu0 0
        %1859 = vmatpush1.bf16.msra.mxu0 0
        %1860 = vmatprep.subr.bf16.mxu0 0
        %1861 = vmatpush1.bf16.msra.mxu0 0
        %1862 = vmatprep.subr.bf16.mxu0 0
        %1863 = vmatpush1.bf16.msra.mxu0 0
        %1864 = vmatprep.mubr.bf16.mxu0 0
        %1865 = vmatmul.mubr.bf16.gmra.mrb[0].mxu0 %v1726
        %v1866 = vpop.f32.mrb[0].mxu0
        %v1867 = vadd.f32 %v1694, %v1866
        %v1868 = vpop.f32.mrb[0].mxu0
        %v1869 = vpop.f32.mrb[0].mxu0
        %v1870 = vpop.f32.mrb[0].mxu0
        %1871 = vdwg.mxu0
        %v1876 = vunpack.c.l.b16 %v1658
        %v1877 = vunpack.c.l.b16 %v1659
        %v1878 = vunpack.c.l.b16 %v1660
        %v1879 = vunpack.c.l.b16 %v1661
        %v1880 = vpack.c.b16 %v1877, %v1876
        %v1881 = vpack.c.b16 %v1879, %v1878
        %1884 = vmatprep.subr.bf16.mxu0 0
        %1885 = vmatpush1.bf16.msra.mxu0 %v1880
        %1886 = vmatprep.subr.bf16.mxu0 0
        %1887 = vmatpush1.bf16.msra.mxu0 %v1881
        %1888 = vmatprep.subr.bf16.mxu0 0
        %1889 = vmatpush1.bf16.msra.mxu0 0
        %1890 = vmatprep.subr.bf16.mxu0 0
        %1891 = vmatpush1.bf16.msra.mxu0 0
        %1892 = vmatprep.subr.bf16.mxu0 0
        %1893 = vmatpush1.bf16.msra.mxu0 0
        %1894 = vmatprep.subr.bf16.mxu0 0
        %1895 = vmatpush1.bf16.msra.mxu0 0
        %1896 = vmatprep.subr.bf16.mxu0 0
        %1897 = vmatpush1.bf16.msra.mxu0 0
        %1898 = vmatprep.subr.bf16.mxu0 0
        %1899 = vmatpush1.bf16.msra.mxu0 0
        %1900 = vmatprep.subr.bf16.mxu0 0
        %1901 = vmatpush1.bf16.msra.mxu0 0
        %1902 = vmatprep.subr.bf16.mxu0 0
        %1903 = vmatpush1.bf16.msra.mxu0 0
        %1904 = vmatprep.subr.bf16.mxu0 0
        %1905 = vmatpush1.bf16.msra.mxu0 0
        %1906 = vmatprep.subr.bf16.mxu0 0
        %1907 = vmatpush1.bf16.msra.mxu0 0
        %1908 = vmatprep.subr.bf16.mxu0 0
        %1909 = vmatpush1.bf16.msra.mxu0 0
        %1910 = vmatprep.subr.bf16.mxu0 0
        %1911 = vmatpush1.bf16.msra.mxu0 0
        %1912 = vmatprep.subr.bf16.mxu0 0
        %1913 = vmatpush1.bf16.msra.mxu0 0
        %1914 = vmatprep.subr.bf16.mxu0 0
        %1915 = vmatpush1.bf16.msra.mxu0 0
        %1916 = vmatprep.mubr.bf16.mxu0 0
        %1917 = vmatmul.mubr.bf16.gmra.mrb[0].mxu0 %v1726
        %v1918 = vpop.f32.mrb[0].mxu0
        %v1919 = vadd.f32 %v1698, %v1918
        %v1920 = vpop.f32.mrb[0].mxu0
        %v1921 = vpop.f32.mrb[0].mxu0
        %v1922 = vpop.f32.mrb[0].mxu0
        %1923 = vdwg.mxu0
        %v1928 = vunpack.c.l.b16 %v1662
        %v1929 = vunpack.c.l.b16 %v1663
        %v1930 = vunpack.c.l.b16 %v1664
        %v1931 = vunpack.c.l.b16 %v1665
        %v1932 = vpack.c.b16 %v1929, %v1928
        %v1933 = vpack.c.b16 %v1931, %v1930
        %1936 = vmatprep.subr.bf16.mxu0 0
        %1937 = vmatpush1.bf16.msra.mxu0 %v1932
        %1938 = vmatprep.subr.bf16.mxu0 0
        %1939 = vmatpush1.bf16.msra.mxu0 %v1933
        %1940 = vmatprep.subr.bf16.mxu0 0
        %1941 = vmatpush1.bf16.msra.mxu0 0
        %1942 = vmatprep.subr.bf16.mxu0 0
        %1943 = vmatpush1.bf16.msra.mxu0 0
        %1944 = vmatprep.subr.bf16.mxu0 0
        %1945 = vmatpush1.bf16.msra.mxu0 0
        %1946 = vmatprep.subr.bf16.mxu0 0
        %1947 = vmatpush1.bf16.msra.mxu0 0
        %1948 = vmatprep.subr.bf16.mxu0 0
        %1949 = vmatpush1.bf16.msra.mxu0 0
        %1950 = vmatprep.subr.bf16.mxu0 0
        %1951 = vmatpush1.bf16.msra.mxu0 0
        %1952 = vmatprep.subr.bf16.mxu0 0
        %1953 = vmatpush1.bf16.msra.mxu0 0
        %1954 = vmatprep.subr.bf16.mxu0 0
        %1955 = vmatpush1.bf16.msra.mxu0 0
        %1956 = vmatprep.subr.bf16.mxu0 0
        %1957 = vmatpush1.bf16.msra.mxu0 0
        %1958 = vmatprep.subr.bf16.mxu0 0
        %1959 = vmatpush1.bf16.msra.mxu0 0
        %1960 = vmatprep.subr.bf16.mxu0 0
        %1961 = vmatpush1.bf16.msra.mxu0 0
        %1962 = vmatprep.subr.bf16.mxu0 0
        %1963 = vmatpush1.bf16.msra.mxu0 0
        %1964 = vmatprep.subr.bf16.mxu0 0
        %1965 = vmatpush1.bf16.msra.mxu0 0
        %1966 = vmatprep.subr.bf16.mxu0 0
        %1967 = vmatpush1.bf16.msra.mxu0 0
        %1968 = vmatprep.mubr.bf16.mxu0 0
        %1969 = vmatmul.mubr.bf16.gmra.mrb[0].mxu0 %v1726
        %v1970 = vpop.f32.mrb[0].mxu0
        %v1971 = vadd.f32 %v1702, %v1970
        %v1972 = vpop.f32.mrb[0].mxu0
        %v1973 = vpop.f32.mrb[0].mxu0
        %v1974 = vpop.f32.mrb[0].mxu0
        %1975 = vdwg.mxu0
        %v1980 = vunpack.c.l.b16 %v1666
        %v1981 = vunpack.c.l.b16 %v1667
        %v1982 = vunpack.c.l.b16 %v1668
        %v1983 = vunpack.c.l.b16 %v1669
        %v1984 = vpack.c.b16 %v1981, %v1980
        %v1985 = vpack.c.b16 %v1983, %v1982
        %1988 = vmatprep.subr.bf16.mxu0 0
        %1989 = vmatpush1.bf16.msra.mxu0 %v1984
        %1990 = vmatprep.subr.bf16.mxu0 0
        %1991 = vmatpush1.bf16.msra.mxu0 %v1985
        %1992 = vmatprep.subr.bf16.mxu0 0
        %1993 = vmatpush1.bf16.msra.mxu0 0
        %1994 = vmatprep.subr.bf16.mxu0 0
        %1995 = vmatpush1.bf16.msra.mxu0 0
        %1996 = vmatprep.subr.bf16.mxu0 0
        %1997 = vmatpush1.bf16.msra.mxu0 0
        %1998 = vmatprep.subr.bf16.mxu0 0
        %1999 = vmatpush1.bf16.msra.mxu0 0
        %2000 = vmatprep.subr.bf16.mxu0 0
        %2001 = vmatpush1.bf16.msra.mxu0 0
        %2002 = vmatprep.subr.bf16.mxu0 0
        %2003 = vmatpush1.bf16.msra.mxu0 0
        %2004 = vmatprep.subr.bf16.mxu0 0
        %2005 = vmatpush1.bf16.msra.mxu0 0
        %2006 = vmatprep.subr.bf16.mxu0 0
        %2007 = vmatpush1.bf16.msra.mxu0 0
        %2008 = vmatprep.subr.bf16.mxu0 0
        %2009 = vmatpush1.bf16.msra.mxu0 0
        %2010 = vmatprep.subr.bf16.mxu0 0
        %2011 = vmatpush1.bf16.msra.mxu0 0
        %2012 = vmatprep.subr.bf16.mxu0 0
        %2013 = vmatpush1.bf16.msra.mxu0 0
        %2014 = vmatprep.subr.bf16.mxu0 0
        %2015 = vmatpush1.bf16.msra.mxu0 0
        %2016 = vmatprep.subr.bf16.mxu0 0
        %2017 = vmatpush1.bf16.msra.mxu0 0
        %2018 = vmatprep.subr.bf16.mxu0 0
        %2019 = vmatpush1.bf16.msra.mxu0 0
        %2020 = vmatprep.mubr.bf16.mxu0 0
        %2021 = vmatmul.mubr.bf16.gmra.mrb[0].mxu0 %v1726
        %v2022 = vpop.f32.mrb[0].mxu0
        %v2023 = vadd.f32 %v1706, %v2022
        %v2024 = vpop.f32.mrb[0].mxu0
        %v2025 = vpop.f32.mrb[0].mxu0
        %v2026 = vpop.f32.mrb[0].mxu0
        %2027 = vdwg.mxu0
        %v2028 = vmul.f32 %v1763, 0.25
        %v2029 = vmul.f32 %v1815, 0.25
        %v2030 = vpack.c.bf16 %v2028, %v2028
        %v2031 = vpack.c.bf16 %v2029, %v2029
        %v2032 = vpack.c.bf16 %v1867, %v1867
        %v2033 = vpack.c.bf16 %v1919, %v1919
        %v2035 = vsel %vm1068, %v2030, 0
        %v2038 = vsel %vm1068, %v2032, 0
        %2040 = vmatprep.subr.bf16.mxu0 0
        %2041 = vmatpush1.bf16.xpose.msra.mxu0 %v2038
        %2042 = vmatprep.subr.bf16.mxu0 0
        %2043 = vmatpush1.bf16.xpose.msra.mxu0 0
        %2044 = vmatprep.subr.bf16.mxu0 0
        %2045 = vmatpush1.bf16.xpose.msra.mxu0 0
        %2046 = vmatprep.subr.bf16.mxu0 0
        %2047 = vmatpush1.bf16.xpose.msra.mxu0 0
        %2048 = vmatprep.subr.bf16.mxu0 0
        %2049 = vmatpush1.bf16.xpose.msra.mxu0 0
        %2050 = vmatprep.subr.bf16.mxu0 0
        %2051 = vmatpush1.bf16.xpose.msra.mxu0 0
        %2052 = vmatprep.subr.bf16.mxu0 0
        %2053 = vmatpush1.bf16.xpose.msra.mxu0 0
        %2054 = vmatprep.subr.bf16.mxu0 0
        %2055 = vmatpush1.bf16.xpose.msra.mxu0 0
        %2056 = vmatprep.subr.bf16.mxu0 0
        %2057 = vmatpush1.bf16.xpose.msra.mxu0 0
        %2058 = vmatprep.subr.bf16.mxu0 0
        %2059 = vmatpush1.bf16.xpose.msra.mxu0 0
        %2060 = vmatprep.subr.bf16.mxu0 0
        %2061 = vmatpush1.bf16.xpose.msra.mxu0 0
        %2062 = vmatprep.subr.bf16.mxu0 0
        %2063 = vmatpush1.bf16.xpose.msra.mxu0 0
        %2064 = vmatprep.subr.bf16.mxu0 0
        %2065 = vmatpush1.bf16.xpose.msra.mxu0 0
        %2066 = vmatprep.subr.bf16.mxu0 0
        %2067 = vmatpush1.bf16.xpose.msra.mxu0 0
        %2068 = vmatprep.subr.bf16.mxu0 0
        %2069 = vmatpush1.bf16.xpose.msra.mxu0 0
        %2070 = vmatprep.subr.bf16.mxu0 0
        %2071 = vmatpush1.bf16.xpose.msra.mxu0 0
        %2072 = vmatprep.mubr.bf16.mxu0 0
        %2073 = vmatmul.mubr.bf16.gmra.mrb[0].mxu0 %v2035
        %v2074 = vpop.f32.mrb[0].mxu0
        %v2075 = vadd.f32 %v1066, %v2074
        %v2076 = vpop.f32.mrb[0].mxu0
        %v2077 = vpop.f32.mrb[0].mxu0
        %v2078 = vpop.f32.mrb[0].mxu0
        %2079 = vdwg.mxu0
        %v2081 = vsel %vm1068, %v2031, 0
        %v2084 = vsel %vm1068, %v2033, 0
        %2086 = vmatprep.subr.bf16.mxu0 0
        %2087 = vmatpush1.bf16.xpose.msra.mxu0 %v2084
        %2088 = vmatprep.subr.bf16.mxu0 0
        %2089 = vmatpush1.bf16.xpose.msra.mxu0 0
        %2090 = vmatprep.subr.bf16.mxu0 0
        %2091 = vmatpush1.bf16.xpose.msra.mxu0 0
        %2092 = vmatprep.subr.bf16.mxu0 0
        %2093 = vmatpush1.bf16.xpose.msra.mxu0 0
        %2094 = vmatprep.subr.bf16.mxu0 0
        %2095 = vmatpush1.bf16.xpose.msra.mxu0 0
        %2096 = vmatprep.subr.bf16.mxu0 0
        %2097 = vmatpush1.bf16.xpose.msra.mxu0 0
        %2098 = vmatprep.subr.bf16.mxu0 0
        %2099 = vmatpush1.bf16.xpose.msra.mxu0 0
        %2100 = vmatprep.subr.bf16.mxu0 0
        %2101 = vmatpush1.bf16.xpose.msra.mxu0 0
        %2102 = vmatprep.subr.bf16.mxu0 0
        %2103 = vmatpush1.bf16.xpose.msra.mxu0 0
        %2104 = vmatprep.subr.bf16.mxu0 0
        %2105 = vmatpush1.bf16.xpose.msra.mxu0 0
        %2106 = vmatprep.subr.bf16.mxu0 0
        %2107 = vmatpush1.bf16.xpose.msra.mxu0 0
        %2108 = vmatprep.subr.bf16.mxu0 0
        %2109 = vmatpush1.bf16.xpose.msra.mxu0 0
        %2110 = vmatprep.subr.bf16.mxu0 0
        %2111 = vmatpush1.bf16.xpose.msra.mxu0 0
        %2112 = vmatprep.subr.bf16.mxu0 0
        %2113 = vmatpush1.bf16.xpose.msra.mxu0 0
        %2114 = vmatprep.subr.bf16.mxu0 0
        %2115 = vmatpush1.bf16.xpose.msra.mxu0 0
        %2116 = vmatprep.subr.bf16.mxu0 0
        %2117 = vmatpush1.bf16.xpose.msra.mxu0 0
        %2118 = vmatprep.mubr.bf16.mxu0 0
        %2119 = vmatmul.mubr.bf16.gmra.mrb[0].mxu0 %v2081
        %v2120 = vpop.f32.mrb[0].mxu0
        %v2121 = vadd.f32 %v1066, %v2120
        %v2122 = vpop.f32.mrb[0].mxu0
        %v2123 = vpop.f32.mrb[0].mxu0
        %v2124 = vpop.f32.mrb[0].mxu0
        %2125 = vdwg.mxu0
        %v2126 = vsel %vm1161, %v2075, -inf
        %2127 = vmax.xlane.f32.xlu0 %v2126
        %v2128 = vpop.xlane.xlu0 %2127
        %v2129 = vsel %vm1161, %v2121, -inf
        %2130 = vmax.xlane.f32.xlu0 %v2129
        %v2131 = vpop.xlane.xlu0 %2130
        %v2132 = vsub.f32 %v2075, %v2128
        %v2133 = vsub.f32 %v2121, %v2131
        %v2134 = vmul.f32 %v2132, 1.442695
        %v2135 = vpow.pop %v2134
        %v2136 = vmul.f32 %v2133, 1.442695
        %v2137 = vpow.pop %v2136
        %v2138 = vsel %vm1161, %v2135, 0.0
        %2139 = vadd.xlane.f32.xlu0 %v2138
        %v2140 = vpop.xlane.xlu0 %2139
        %v2141 = vsel %vm1161, %v2137, 0.0
        %2142 = vadd.xlane.f32.xlu0 %v2141
        %v2143 = vpop.xlane.xlu0 %2142
        %v2144 = vrcp.pop %v2140
        %v2145 = vrcp.pop %v2143
        %v2146 = vmul.f32 %v2135, %v2144
        %v2147 = vmul.f32 %v2137, %v2145
        %v2148 = vpack.c.bf16 %v2146, %v2146
        %v2149 = vpack.c.bf16 %v2147, %v2147
        %v2150 = vpack.c.bf16 %v1971, %v1971
        %v2151 = vpack.c.bf16 %v2023, %v2023
        %v2153 = vsel %vm1161, %v2148, 0
        %v2156 = vsel %vm1191, %v2150, 0
        %2158 = vmatprep.subr.bf16.mxu0 0
        %2159 = vmatpush1.bf16.msra.mxu0 %v2156
        %2160 = vmatprep.subr.bf16.mxu0 0
        %2161 = vmatpush1.bf16.msra.mxu0 0
        %2162 = vmatprep.subr.bf16.mxu0 0
        %2163 = vmatpush1.bf16.msra.mxu0 0
        %2164 = vmatprep.subr.bf16.mxu0 0
        %2165 = vmatpush1.bf16.msra.mxu0 0
        %2166 = vmatprep.subr.bf16.mxu0 0
        %2167 = vmatpush1.bf16.msra.mxu0 0
        %2168 = vmatprep.subr.bf16.mxu0 0
        %2169 = vmatpush1.bf16.msra.mxu0 0
        %2170 = vmatprep.subr.bf16.mxu0 0
        %2171 = vmatpush1.bf16.msra.mxu0 0
        %2172 = vmatprep.subr.bf16.mxu0 0
        %2173 = vmatpush1.bf16.msra.mxu0 0
        %2174 = vmatprep.subr.bf16.mxu0 0
        %2175 = vmatpush1.bf16.msra.mxu0 0
        %2176 = vmatprep.subr.bf16.mxu0 0
        %2177 = vmatpush1.bf16.msra.mxu0 0
        %2178 = vmatprep.subr.bf16.mxu0 0
        %2179 = vmatpush1.bf16.msra.mxu0 0
        %2180 = vmatprep.subr.bf16.mxu0 0
        %2181 = vmatpush1.bf16.msra.mxu0 0
        %2182 = vmatprep.subr.bf16.mxu0 0
        %2183 = vmatpush1.bf16.msra.mxu0 0
        %2184 = vmatprep.subr.bf16.mxu0 0
        %2185 = vmatpush1.bf16.msra.mxu0 0
        %2186 = vmatprep.subr.bf16.mxu0 0
        %2187 = vmatpush1.bf16.msra.mxu0 0
        %2188 = vmatprep.subr.bf16.mxu0 0
        %2189 = vmatpush1.bf16.msra.mxu0 0
        %2190 = vmatprep.mubr.bf16.mxu0 0
        %2191 = vmatmul.mubr.bf16.gmra.mrb[0].mxu0 %v2153
        %v2192 = vpop.f32.mrb[0].mxu0
        %v2193 = vadd.f32 0.0, %v2192
        %v2194 = vpop.f32.mrb[0].mxu0
        %v2195 = vpop.f32.mrb[0].mxu0
        %v2196 = vpop.f32.mrb[0].mxu0
        %2197 = vdwg.mxu0
        %v2199 = vsel %vm1161, %v2149, 0
        %v2202 = vsel %vm1191, %v2151, 0
        %2204 = vmatprep.subr.bf16.mxu0 0
        %2205 = vmatpush1.bf16.msra.mxu0 %v2202
        %2206 = vmatprep.subr.bf16.mxu0 0
        %2207 = vmatpush1.bf16.msra.mxu0 0
        %2208 = vmatprep.subr.bf16.mxu0 0
        %2209 = vmatpush1.bf16.msra.mxu0 0
        %2210 = vmatprep.subr.bf16.mxu0 0
        %2211 = vmatpush1.bf16.msra.mxu0 0
        %2212 = vmatprep.subr.bf16.mxu0 0
        %2213 = vmatpush1.bf16.msra.mxu0 0
        %2214 = vmatprep.subr.bf16.mxu0 0
        %2215 = vmatpush1.bf16.msra.mxu0 0
        %2216 = vmatprep.subr.bf16.mxu0 0
        %2217 = vmatpush1.bf16.msra.mxu0 0
        %2218 = vmatprep.subr.bf16.mxu0 0
        %2219 = vmatpush1.bf16.msra.mxu0 0
        %2220 = vmatprep.subr.bf16.mxu0 0
        %2221 = vmatpush1.bf16.msra.mxu0 0
        %2222 = vmatprep.subr.bf16.mxu0 0
        %2223 = vmatpush1.bf16.msra.mxu0 0
        %2224 = vmatprep.subr.bf16.mxu0 0
        %2225 = vmatpush1.bf16.msra.mxu0 0
        %2226 = vmatprep.subr.bf16.mxu0 0
        %2227 = vmatpush1.bf16.msra.mxu0 0
        %2228 = vmatprep.subr.bf16.mxu0 0
        %2229 = vmatpush1.bf16.msra.mxu0 0
        %2230 = vmatprep.subr.bf16.mxu0 0
        %2231 = vmatpush1.bf16.msra.mxu0 0
        %2232 = vmatprep.subr.bf16.mxu0 0
        %2233 = vmatpush1.bf16.msra.mxu0 0
        %2234 = vmatprep.subr.bf16.mxu0 0
        %2235 = vmatpush1.bf16.msra.mxu0 0
        %2236 = vmatprep.mubr.bf16.mxu0 0
        %2237 = vmatmul.mubr.bf16.gmra.mrb[0].mxu0 %v2199
        %v2238 = vpop.f32.mrb[0].mxu0
        %v2239 = vadd.f32 0.0, %v2238
        %v2240 = vpop.f32.mrb[0].mxu0
        %v2241 = vpop.f32.mrb[0].mxu0
        %v2242 = vpop.f32.mrb[0].mxu0
        %2243 = vdwg.mxu0
        %v2244 = vpack.c.bf16 %v2193, %v2193
        %v2245 = vpack.c.bf16 %v2239, %v2239
        %s2246 = scalar_lea.vmem %s6, 16
        %v2247 = vld [vmem:[%s2246] sm:$0xf]
        %v2248 = vld [vmem:[%s2246 + $0x4] sm:$0xf]
        %v2249 = vld [vmem:[%s2246 + $0x8] sm:$0xf]
        %v2250 = vld [vmem:[%s2246 + $0xc] sm:$0xf]
        %v2253 = vunpack.c.l.b16 %v2247
        %v2254 = vunpack.c.l.b16 %v2248
        %v2255 = vpack.c.b16 %v2254, %v2253
        %v2258 = vsel %vm1068, %v2244, 0
        %2260 = vmatprep.subr.bf16.mxu0 0
        %2261 = vmatpush1.bf16.msra.mxu0 %v2255
        %2262 = vmatprep.subr.bf16.mxu0 0
        %2263 = vmatpush1.bf16.msra.mxu0 0
        %2264 = vmatprep.subr.bf16.mxu0 0
        %2265 = vmatpush1.bf16.msra.mxu0 0
        %2266 = vmatprep.subr.bf16.mxu0 0
        %2267 = vmatpush1.bf16.msra.mxu0 0
        %2268 = vmatprep.subr.bf16.mxu0 0
        %2269 = vmatpush1.bf16.msra.mxu0 0
        %2270 = vmatprep.subr.bf16.mxu0 0
        %2271 = vmatpush1.bf16.msra.mxu0 0
        %2272 = vmatprep.subr.bf16.mxu0 0
        %2273 = vmatpush1.bf16.msra.mxu0 0
        %2274 = vmatprep.subr.bf16.mxu0 0
        %2275 = vmatpush1.bf16.msra.mxu0 0
        %2276 = vmatprep.subr.bf16.mxu0 0
        %2277 = vmatpush1.bf16.msra.mxu0 0
        %2278 = vmatprep.subr.bf16.mxu0 0
        %2279 = vmatpush1.bf16.msra.mxu0 0
        %2280 = vmatprep.subr.bf16.mxu0 0
        %2281 = vmatpush1.bf16.msra.mxu0 0
        %2282 = vmatprep.subr.bf16.mxu0 0
        %2283 = vmatpush1.bf16.msra.mxu0 0
        %2284 = vmatprep.subr.bf16.mxu0 0
        %2285 = vmatpush1.bf16.msra.mxu0 0
        %2286 = vmatprep.subr.bf16.mxu0 0
        %2287 = vmatpush1.bf16.msra.mxu0 0
        %2288 = vmatprep.subr.bf16.mxu0 0
        %2289 = vmatpush1.bf16.msra.mxu0 0
        %2290 = vmatprep.subr.bf16.mxu0 0
        %2291 = vmatpush1.bf16.msra.mxu0 0
        %2292 = vmatprep.mubr.bf16.mxu0 0
        %2293 = vmatmul.mubr.bf16.gmra.mrb[0].mxu0 %v2258
        %v2294 = vpop.f32.mrb[0].mxu0
        %v2295 = vadd.f32 0.0, %v2294
        %v2296 = vpop.f32.mrb[0].mxu0
        %v2297 = vpop.f32.mrb[0].mxu0
        %v2298 = vpop.f32.mrb[0].mxu0
        %2299 = vdwg.mxu0
        %v2302 = vunpack.c.l.b16 %v2249
        %v2303 = vunpack.c.l.b16 %v2250
        %v2304 = vpack.c.b16 %v2303, %v2302
        %v2307 = vsel %vm1068, %v2245, 0
        %2309 = vmatprep.subr.bf16.mxu0 0
        %2310 = vmatpush1.bf16.msra.mxu0 %v2304
        %2311 = vmatprep.subr.bf16.mxu0 0
        %2312 = vmatpush1.bf16.msra.mxu0 0
        %2313 = vmatprep.subr.bf16.mxu0 0
        %2314 = vmatpush1.bf16.msra.mxu0 0
        %2315 = vmatprep.subr.bf16.mxu0 0
        %2316 = vmatpush1.bf16.msra.mxu0 0
        %2317 = vmatprep.subr.bf16.mxu0 0
        %2318 = vmatpush1.bf16.msra.mxu0 0
        %2319 = vmatprep.subr.bf16.mxu0 0
        %2320 = vmatpush1.bf16.msra.mxu0 0
        %2321 = vmatprep.subr.bf16.mxu0 0
        %2322 = vmatpush1.bf16.msra.mxu0 0
        %2323 = vmatprep.subr.bf16.mxu0 0
        %2324 = vmatpush1.bf16.msra.mxu0 0
        %2325 = vmatprep.subr.bf16.mxu0 0
        %2326 = vmatpush1.bf16.msra.mxu0 0
        %2327 = vmatprep.subr.bf16.mxu0 0
        %2328 = vmatpush1.bf16.msra.mxu0 0
        %2329 = vmatprep.subr.bf16.mxu0 0
        %2330 = vmatpush1.bf16.msra.mxu0 0
        %2331 = vmatprep.subr.bf16.mxu0 0
        %2332 = vmatpush1.bf16.msra.mxu0 0
        %2333 = vmatprep.subr.bf16.mxu0 0
        %2334 = vmatpush1.bf16.msra.mxu0 0
        %2335 = vmatprep.subr.bf16.mxu0 0
        %2336 = vmatpush1.bf16.msra.mxu0 0
        %2337 = vmatprep.subr.bf16.mxu0 0
        %2338 = vmatpush1.bf16.msra.mxu0 0
        %2339 = vmatprep.subr.bf16.mxu0 0
        %2340 = vmatpush1.bf16.msra.mxu0 0
        %2341 = vmatprep.mubr.bf16.mxu0 0
        %2342 = vmatmul.mubr.bf16.gmra.mrb[0].mxu0 %v2307
        %v2343 = vpop.f32.mrb[0].mxu0
        %v2344 = vadd.f32 0.0, %v2343
        %v2345 = vpop.f32.mrb[0].mxu0
        %v2346 = vpop.f32.mrb[0].mxu0
        %v2347 = vpop.f32.mrb[0].mxu0
        %2348 = vdwg.mxu0
        %v2349 = vsel %vm645, %v2295, 0.0
        %v2350 = vsel %vm645, %v2344, 0.0
        %v2351 = vadd.f32 %v2349, %v2350
        %s2352 = scalar_lea.vmem %s7, 1
        %v2353 = vld [vmem:[%s2352] sm:$0x1]
        %v2355 = vlaneseq
        %v2356 = vshrl.u32 %v2355, 7
        %v2357 = vsub.s32 0, %v2356
        %v2358 = vrot.slane %v2353, %v2357
        %v2360 = vadd.f32 %v2351, %v2358
        %v2361 = vadd.f32 %v1643, %v2360
        %s2362 = scalar_lea.vmem %s8, 1
        %v2363 = vld [vmem:[%s2362] sm:$0x1]
        %s2364 = scalar_lea.vmem %s9, 1
        %v2365 = vld [vmem:[%s2364] sm:$0x1]
        %v2366 = vsel %vm645, %v2361, 0.0
        %2367 = vadd.xlane.f32.xlu0 %v2366
        %v2368 = vpop.xlane.xlu0 %2367
        %v2369 = vmul.f32 %v2368, %v649
        %v2370 = vsub.f32 %v2361, %v2369
        %v2371 = vmul.f32 %v2370, %v2370
        %v2372 = vsel %vm645, %v2371, 0.0
        %2373 = vadd.xlane.f32.xlu0 %v2372
        %v2374 = vpop.xlane.xlu0 %2373
        %v2375 = vmul.f32 %v2374, %v649
        %v2376 = vadd.f32 %v2375, 1e-12
        %v2377 = vrsqrt.pop %v2376
        %v2378 = vmul.f32 %v2370, %v2377
        %v2380 = vlaneseq
        %v2381 = vshrl.u32 %v2380, 7
        %v2382 = vsub.s32 0, %v2381
        %v2383 = vrot.slane %v2363, %v2382
        %v2385 = vmul.f32 %v2378, %v2383
        %v2387 = vlaneseq
        %v2388 = vshrl.u32 %v2387, 7
        %v2389 = vsub.s32 0, %v2388
        %v2390 = vrot.slane %v2365, %v2389
        %v2392 = vadd.f32 %v2385, %v2390
        %v2393 = vpack.c.bf16 %v2392, %v2392
        %s2394 = scalar_lea.vmem %s10, 16
        %v2395 = vld [vmem:[%s2394] sm:$0xf]
        %v2396 = vld [vmem:[%s2394 + $0x4] sm:$0xf]
        %v2397 = vld [vmem:[%s2394 + $0x8] sm:$0xf]
        %v2398 = vld [vmem:[%s2394 + $0xc] sm:$0xf]
        %s2399 = scalar_lea.vmem %s11, 1
        %v2400 = vld [vmem:[%s2399] sm:$0x1]
        %v2402 = vlaneseq
        %v2403 = vshrl.u32 %v2402, 7
        %v2404 = vsub.s32 0, %v2403
        %v2405 = vrot.slane %v2400, %v2404
        %v2411 = vunpack.c.l.b16 %v2395
        %v2412 = vunpack.c.l.b16 %v2396
        %v2413 = vunpack.c.l.b16 %v2397
        %v2414 = vunpack.c.l.b16 %v2398
        %v2415 = vpack.c.b16 %v2412, %v2411
        %v2416 = vpack.c.b16 %v2414, %v2413
        %v2420 = vsel %vm645, %v2393, 0
        %2422 = vmatprep.subr.bf16.mxu0 0
        %2423 = vmatpush1.bf16.msra.mxu0 %v2415
        %2424 = vmatprep.subr.bf16.mxu0 0
        %2425 = vmatpush1.bf16.msra.mxu0 %v2416
        %2426 = vmatprep.subr.bf16.mxu0 0
        %2427 = vmatpush1.bf16.msra.mxu0 0
        %2428 = vmatprep.subr.bf16.mxu0 0
        %2429 = vmatpush1.bf16.msra.mxu0 0
        %2430 = vmatprep.subr.bf16.mxu0 0
        %2431 = vmatpush1.bf16.msra.mxu0 0
        %2432 = vmatprep.subr.bf16.mxu0 0
        %2433 = vmatpush1.bf16.msra.mxu0 0
        %2434 = vmatprep.subr.bf16.mxu0 0
        %2435 = vmatpush1.bf16.msra.mxu0 0
        %2436 = vmatprep.subr.bf16.mxu0 0
        %2437 = vmatpush1.bf16.msra.mxu0 0
        %2438 = vmatprep.subr.bf16.mxu0 0
        %2439 = vmatpush1.bf16.msra.mxu0 0
        %2440 = vmatprep.subr.bf16.mxu0 0
        %2441 = vmatpush1.bf16.msra.mxu0 0
        %2442 = vmatprep.subr.bf16.mxu0 0
        %2443 = vmatpush1.bf16.msra.mxu0 0
        %2444 = vmatprep.subr.bf16.mxu0 0
        %2445 = vmatpush1.bf16.msra.mxu0 0
        %2446 = vmatprep.subr.bf16.mxu0 0
        %2447 = vmatpush1.bf16.msra.mxu0 0
        %2448 = vmatprep.subr.bf16.mxu0 0
        %2449 = vmatpush1.bf16.msra.mxu0 0
        %2450 = vmatprep.subr.bf16.mxu0 0
        %2451 = vmatpush1.bf16.msra.mxu0 0
        %2452 = vmatprep.subr.bf16.mxu0 0
        %2453 = vmatpush1.bf16.msra.mxu0 0
        %2454 = vmatprep.mubr.bf16.mxu0 0
        %2455 = vmatmul.mubr.bf16.gmra.mrb[0].mxu0 %v2420
        %v2456 = vpop.f32.mrb[0].mxu0
        %v2457 = vadd.f32 %v2405, %v2456
        %v2458 = vpop.f32.mrb[0].mxu0
        %v2459 = vpop.f32.mrb[0].mxu0
        %v2460 = vpop.f32.mrb[0].mxu0
        %2461 = vdwg.mxu0
        %v2462 = vmul.f32 %v2457, 0.5
        %v2463 = vmul.f32 %v2457, 0.044715
        %v2464 = vmul.f32 %v2463, %v2457
        %v2465 = vmul.f32 %v2464, %v2457
        %v2466 = vadd.f32 %v2457, %v2465
        %v2467 = vmul.f32 %v2466, 0.7978846
        %v2468 = vtanh.pop %v2467
        %v2469 = vadd.f32 %v2468, 1.0
        %v2470 = vmul.f32 %v2462, %v2469
        %v2471 = vpack.c.bf16 %v2470, %v2470
        %s2472 = scalar_lea.vmem %s12, 64
        %v2473 = vld [vmem:[%s2472] sm:$0xf]
        %v2474 = vld [vmem:[%s2472 + $0x4] sm:$0xf]
        %v2475 = vld [vmem:[%s2472 + $0x8] sm:$0xf]
        %v2476 = vld [vmem:[%s2472 + $0xc] sm:$0xf]
        %v2477 = vld [vmem:[%s2472 + $0x10] sm:$0xf]
        %v2478 = vld [vmem:[%s2472 + $0x14] sm:$0xf]
        %v2479 = vld [vmem:[%s2472 + $0x18] sm:$0xf]
        %v2480 = vld [vmem:[%s2472 + $0x1c] sm:$0xf]
        %v2481 = vld [vmem:[%s2472 + $0x20] sm:$0xf]
        %v2482 = vld [vmem:[%s2472 + $0x24] sm:$0xf]
        %v2483 = vld [vmem:[%s2472 + $0x28] sm:$0xf]
        %v2484 = vld [vmem:[%s2472 + $0x2c] sm:$0xf]
        %v2485 = vld [vmem:[%s2472 + $0x30] sm:$0xf]
        %v2486 = vld [vmem:[%s2472 + $0x34] sm:$0xf]
        %v2487 = vld [vmem:[%s2472 + $0x38] sm:$0xf]
        %v2488 = vld [vmem:[%s2472 + $0x3c] sm:$0xf]
        %s2489 = scalar_lea.vmem %s13, 1
        %v2490 = vld [vmem:[%s2489] sm:$0x1]
        %v2492 = vlaneseq
        %v2493 = vshrl.u32 %v2492, 7
        %v2494 = vsub.s32 0, %v2493
        %v2495 = vrot.slane %v2490, %v2494
        %v2513 = vunpack.c.l.b16 %v2473
        %v2514 = vunpack.c.l.b16 %v2474
        %v2515 = vunpack.c.l.b16 %v2475
        %v2516 = vunpack.c.l.b16 %v2476
        %v2517 = vunpack.c.l.b16 %v2477
        %v2518 = vunpack.c.l.b16 %v2478
        %v2519 = vunpack.c.l.b16 %v2479
        %v2520 = vunpack.c.l.b16 %v2480
        %v2521 = vunpack.c.l.b16 %v2481
        %v2522 = vunpack.c.l.b16 %v2482
        %v2523 = vunpack.c.l.b16 %v2483
        %v2524 = vunpack.c.l.b16 %v2484
        %v2525 = vunpack.c.l.b16 %v2485
        %v2526 = vunpack.c.l.b16 %v2486
        %v2527 = vunpack.c.l.b16 %v2487
        %v2528 = vunpack.c.l.b16 %v2488
        %v2529 = vpack.c.b16 %v2514, %v2513
        %v2530 = vpack.c.b16 %v2516, %v2515
        %v2531 = vpack.c.b16 %v2518, %v2517
        %v2532 = vpack.c.b16 %v2520, %v2519
        %v2533 = vpack.c.b16 %v2522, %v2521
        %v2534 = vpack.c.b16 %v2524, %v2523
        %v2535 = vpack.c.b16 %v2526, %v2525
        %v2536 = vpack.c.b16 %v2528, %v2527
        %2545 = vmatprep.subr.bf16.mxu0 0
        %2546 = vmatpush1.bf16.msra.mxu0 %v2529
        %2547 = vmatprep.subr.bf16.mxu0 0
        %2548 = vmatpush1.bf16.msra.mxu0 %v2530
        %2549 = vmatprep.subr.bf16.mxu0 0
        %2550 = vmatpush1.bf16.msra.mxu0 %v2531
        %2551 = vmatprep.subr.bf16.mxu0 0
        %2552 = vmatpush1.bf16.msra.mxu0 %v2532
        %2553 = vmatprep.subr.bf16.mxu0 0
        %2554 = vmatpush1.bf16.msra.mxu0 %v2533
        %2555 = vmatprep.subr.bf16.mxu0 0
        %2556 = vmatpush1.bf16.msra.mxu0 %v2534
        %2557 = vmatprep.subr.bf16.mxu0 0
        %2558 = vmatpush1.bf16.msra.mxu0 %v2535
        %2559 = vmatprep.subr.bf16.mxu0 0
        %2560 = vmatpush1.bf16.msra.mxu0 %v2536
        %2561 = vmatprep.subr.bf16.mxu0 0
        %2562 = vmatpush1.bf16.msra.mxu0 0
        %2563 = vmatprep.subr.bf16.mxu0 0
        %2564 = vmatpush1.bf16.msra.mxu0 0
        %2565 = vmatprep.subr.bf16.mxu0 0
        %2566 = vmatpush1.bf16.msra.mxu0 0
        %2567 = vmatprep.subr.bf16.mxu0 0
        %2568 = vmatpush1.bf16.msra.mxu0 0
        %2569 = vmatprep.subr.bf16.mxu0 0
        %2570 = vmatpush1.bf16.msra.mxu0 0
        %2571 = vmatprep.subr.bf16.mxu0 0
        %2572 = vmatpush1.bf16.msra.mxu0 0
        %2573 = vmatprep.subr.bf16.mxu0 0
        %2574 = vmatpush1.bf16.msra.mxu0 0
        %2575 = vmatprep.subr.bf16.mxu0 0
        %2576 = vmatpush1.bf16.msra.mxu0 0
        %2577 = vmatprep.mubr.bf16.mxu0 0
        %2578 = vmatmul.mubr.bf16.gmra.mrb[0].mxu0 %v2471
        %v2579 = vpop.f32.mrb[0].mxu0
        %v2580 = vadd.f32 %v2495, %v2579
        %v2581 = vpop.f32.mrb[0].mxu0
        %v2582 = vpop.f32.mrb[0].mxu0
        %v2583 = vpop.f32.mrb[0].mxu0
        %2584 = vdwg.mxu0
        %v2585 = vadd.f32 %v2392, %v2580
        %s2586 = scalar_lea.vmem %s14, 1
        %v2587 = vld [vmem:[%s2586] sm:$0x1]
        %s2588 = scalar_lea.vmem %s15, 1
        %v2589 = vld [vmem:[%s2588] sm:$0x1]
        %v2590 = vsel %vm645, %v2585, 0.0
        %2591 = vadd.xlane.f32.xlu0 %v2590
        %v2592 = vpop.xlane.xlu0 %2591
        %v2593 = vmul.f32 %v2592, %v649
        %v2594 = vsub.f32 %v2585, %v2593
        %v2595 = vmul.f32 %v2594, %v2594
        %v2596 = vsel %vm645, %v2595, 0.0
        %2597 = vadd.xlane.f32.xlu0 %v2596
        %v2598 = vpop.xlane.xlu0 %2597
        %v2599 = vmul.f32 %v2598, %v649
        %v2600 = vadd.f32 %v2599, 1e-12
        %v2601 = vrsqrt.pop %v2600
        %v2602 = vmul.f32 %v2594, %v2601
        %v2604 = vlaneseq
        %v2605 = vshrl.u32 %v2604, 7
        %v2606 = vsub.s32 0, %v2605
        %v2607 = vrot.slane %v2587, %v2606
        %v2609 = vmul.f32 %v2602, %v2607
        %v2611 = vlaneseq
        %v2612 = vshrl.u32 %v2611, 7
        %v2613 = vsub.s32 0, %v2612
        %v2614 = vrot.slane %v2589, %v2613
        %v2616 = vadd.f32 %v2609, %v2614
        %v2617 = vpack.c.bf16 %v2616, %v2616
        %v2618 = vld [vmem:[%s16] sm:$0xf]
        %v2619 = vld [vmem:[%s16 + $0x4] sm:$0xf]
        %v2620 = vld [vmem:[%s16 + $0x8] sm:$0xf]
        %v2621 = vld [vmem:[%s16 + $0xc] sm:$0xf]
        %v2622 = vld [vmem:[%s17] sm:$0x1]
        %v2627 = vunpack.c.l.b16 %v2618
        %v2628 = vunpack.c.l.b16 %v2619
        %v2629 = vunpack.c.l.b16 %v2620
        %v2630 = vunpack.c.l.b16 %v2621
        %v2631 = vpack.c.b16 %v2628, %v2627
        %v2632 = vpack.c.b16 %v2630, %v2629
        %v2636 = vsel %vm645, %v2617, 0
        %2638 = vmatprep.subr.bf16.mxu0 0
        %2639 = vmatpush1.bf16.msra.mxu0 %v2631
        %2640 = vmatprep.subr.bf16.mxu0 0
        %2641 = vmatpush1.bf16.msra.mxu0 %v2632
        %2642 = vmatprep.subr.bf16.mxu0 0
        %2643 = vmatpush1.bf16.msra.mxu0 0
        %2644 = vmatprep.subr.bf16.mxu0 0
        %2645 = vmatpush1.bf16.msra.mxu0 0
        %2646 = vmatprep.subr.bf16.mxu0 0
        %2647 = vmatpush1.bf16.msra.mxu0 0
        %2648 = vmatprep.subr.bf16.mxu0 0
        %2649 = vmatpush1.bf16.msra.mxu0 0
        %2650 = vmatprep.subr.bf16.mxu0 0
        %2651 = vmatpush1.bf16.msra.mxu0 0
        %2652 = vmatprep.subr.bf16.mxu0 0
        %2653 = vmatpush1.bf16.msra.mxu0 0
        %2654 = vmatprep.subr.bf16.mxu0 0
        %2655 = vmatpush1.bf16.msra.mxu0 0
        %2656 = vmatprep.subr.bf16.mxu0 0
        %2657 = vmatpush1.bf16.msra.mxu0 0
        %2658 = vmatprep.subr.bf16.mxu0 0
        %2659 = vmatpush1.bf16.msra.mxu0 0
        %2660 = vmatprep.subr.bf16.mxu0 0
        %2661 = vmatpush1.bf16.msra.mxu0 0
        %2662 = vmatprep.subr.bf16.mxu0 0
        %2663 = vmatpush1.bf16.msra.mxu0 0
        %2664 = vmatprep.subr.bf16.mxu0 0
        %2665 = vmatpush1.bf16.msra.mxu0 0
        %2666 = vmatprep.subr.bf16.mxu0 0
        %2667 = vmatpush1.bf16.msra.mxu0 0
        %2668 = vmatprep.subr.bf16.mxu0 0
        %2669 = vmatpush1.bf16.msra.mxu0 0
        %2670 = vmatprep.mubr.bf16.mxu0 0
        %2671 = vmatmul.mubr.bf16.gmra.mrb[0].mxu0 %v2636
        %v2672 = vpop.f32.mrb[0].mxu0
        %v2673 = vadd.f32 %v2622, %v2672
        %v2674 = vpop.f32.mrb[0].mxu0
        %v2675 = vpop.f32.mrb[0].mxu0
        %v2676 = vpop.f32.mrb[0].mxu0
        %2677 = vdwg.mxu0
        %v2678 = vtanh.pop %v2673
        %v2679 = vpack.c.bf16 %v2678, %v2678
        %v2680 = vld [vmem:[%s18] sm:$0xf]
        %v2681 = vld [vmem:[%s18 + $0x4] sm:$0xf]
        %v2682 = vld [vmem:[%s18 + $0x8] sm:$0xf]
        %v2683 = vld [vmem:[%s18 + $0xc] sm:$0xf]
        %v2684 = vld [vmem:[%s19] sm:$0x1]
        %v2689 = vunpack.c.l.b16 %v2680
        %v2690 = vunpack.c.l.b16 %v2681
        %v2691 = vunpack.c.l.b16 %v2682
        %v2692 = vunpack.c.l.b16 %v2683
        %v2693 = vpack.c.b16 %v2690, %v2689
        %v2694 = vpack.c.b16 %v2692, %v2691
        %v2698 = vsel %vm645, %v2679, 0
        %2700 = vmatprep.subr.bf16.mxu0 0
        %2701 = vmatpush1.bf16.msra.mxu0 %v2693
        %2702 = vmatprep.subr.bf16.mxu0 0
        %2703 = vmatpush1.bf16.msra.mxu0 %v2694
        %2704 = vmatprep.subr.bf16.mxu0 0
        %2705 = vmatpush1.bf16.msra.mxu0 0
        %2706 = vmatprep.subr.bf16.mxu0 0
        %2707 = vmatpush1.bf16.msra.mxu0 0
        %2708 = vmatprep.subr.bf16.mxu0 0
        %2709 = vmatpush1.bf16.msra.mxu0 0
        %2710 = vmatprep.subr.bf16.mxu0 0
        %2711 = vmatpush1.bf16.msra.mxu0 0
        %2712 = vmatprep.subr.bf16.mxu0 0
        %2713 = vmatpush1.bf16.msra.mxu0 0
        %2714 = vmatprep.subr.bf16.mxu0 0
        %2715 = vmatpush1.bf16.msra.mxu0 0
        %2716 = vmatprep.subr.bf16.mxu0 0
        %2717 = vmatpush1.bf16.msra.mxu0 0
        %2718 = vmatprep.subr.bf16.mxu0 0
        %2719 = vmatpush1.bf16.msra.mxu0 0
        %2720 = vmatprep.subr.bf16.mxu0 0
        %2721 = vmatpush1.bf16.msra.mxu0 0
        %2722 = vmatprep.subr.bf16.mxu0 0
        %2723 = vmatpush1.bf16.msra.mxu0 0
        %2724 = vmatprep.subr.bf16.mxu0 0
        %2725 = vmatpush1.bf16.msra.mxu0 0
        %2726 = vmatprep.subr.bf16.mxu0 0
        %2727 = vmatpush1.bf16.msra.mxu0 0
        %2728 = vmatprep.subr.bf16.mxu0 0
        %2729 = vmatpush1.bf16.msra.mxu0 0
        %2730 = vmatprep.subr.bf16.mxu0 0
        %2731 = vmatpush1.bf16.msra.mxu0 0
        %2732 = vmatprep.mubr.bf16.mxu0 0
        %2733 = vmatmul.mubr.bf16.gmra.mrb[0].mxu0 %v2698
        %v2734 = vpop.f32.mrb[0].mxu0
        %v2735 = vadd.f32 %v2684, %v2734
        %v2736 = vpop.f32.mrb[0].mxu0
        %v2737 = vpop.f32.mrb[0].mxu0
        %v2738 = vpop.f32.mrb[0].mxu0
        %2739 = vdwg.mxu0
        %vm2740 = vcmask 8192
        %2741 = vst.msk [vmem:[%s630] sm:$0x1] %vm2740, %v2735
        %s2742 = sand.u32 %s472, 1
        %s2743 = scalar_lea.sflag [#allocation3], %s2742
        %s2744 = sand.u32 %s472, 1
        %s2745 = scalar_lea.vmem [#allocation2], %s2744
        // Predicated region
        $region101: #{bert_sentiment_forward.1} parent=99 // pred_check
          %p2746 = pneg %p482
        $region102: #{bert_sentiment_forward.1} parent=99 // pred_check_branch
          %2748 = sbr.rel (%p2746) target = $region104
        $region103: #{bert_sentiment_forward.1} parent=99 // pred_region
          %s2750 = ssub.s32 16, 16
          %2751 = vsyncadd %s2743, %s2750
          %s2752 = smul.addr %s34, 16
          %s2753 = scalar_lea.hbm %s20, %s2752
          %s2755 = sshll.u32 %s2745, 4
          %s2756 = int_to_ptr.vmem [resolvable:$true] %s2755
          %2758 = dma.vmem_to_hbm [thread:$0]  %s2756, 16, %s2753, %s2743
        $region104: #{bert_sentiment_forward.1} parent=99 // pred_fallthru
          _
      $region100: #{bert_sentiment_forward.1} parent=5 // pred_fallthru
        _
      %p2759 = scmp.le.s32.totalorder 2, %s29
      // Predicated region
      $region105: #{bert_sentiment_forward.1} parent=5 // pred_check
        %p2760 = pneg %p2759
      $region106: #{bert_sentiment_forward.1} parent=5 // pred_check_branch
        %2762 = sbr.rel (%p2760) target = $region108
      $region107: #{bert_sentiment_forward.1} parent=5 // pred_region
        %s2763 = ssub.s32 %s29, 2
        // Predicated region
        $region109: #{bert_sentiment_forward.1} parent=107 // pred_check
          %p2764 = pneg %p488
        $region110: #{bert_sentiment_forward.1} parent=107 // pred_check_branch
          %2766 = sbr.rel (%p2764) target = $region112
        $region111: #{bert_sentiment_forward.1} parent=107 // pred_region
          %s2767 = sand.u32 %s473, 1
          %s2768 = scalar_lea.sflag [#allocation3], %s2767
          %s2769 = sand.u32 %s473, 1
          %s2770 = scalar_lea.vmem [#allocation2], %s2769
          %2771 = dma.done %s2768, 16
        $region112: #{bert_sentiment_forward.1} parent=107 // pred_fallthru
          _
      $region108: #{bert_sentiment_forward.1} parent=5 // pred_fallthru
        _
    $region6: #{bert_sentiment_forward.1} parent=1 // loop_footer
      %s33 = sadd.s32 1, %s29
    $region7: #{bert_sentiment_forward.1} parent=1 // loop_footer_branch
      %28 = sbr.rel target = $region3
    $region8: #{bert_sentiment_forward.1} parent=1 // loop_exit
      _
    %2772 = vsyncpa [#allocation3], 1
    %s2773 = scalar_lea.sflag [#allocation3], 1
    %2774 = vsyncpa %s2773, 1

</llo_original>
